<compile_context>
chip_gen: v6e
topology: v6e:2x2x1
jax: 0.10.0
libtpu: 0.0.40
codegen_flags: <defaults>
</compile_context>

<pallas_src>
import functools

import jax
import jax.numpy as jnp
from jax.experimental import pallas as pl
from jax.experimental.pallas import tpu as pltpu


def _round_up(v, m):
    return ((v + m - 1) // m) * m


# ----------------------------------------------------------------------------
# In-kernel exact GELU (erf-based, f32 accuracy, EUP-friendly)
# ----------------------------------------------------------------------------

def _gelu_erf(x):
    """nn.GELU() (approximate='none'): 0.5 * x * (1 + erf(x / sqrt(2))).

    erf via Abramowitz & Stegun 7.1.26 (|abs err| < 1.5e-7).  The divide is an
    EUP approximate reciprocal + one Newton step (restores ~f32 accuracy while
    keeping the expensive part off the VALU); exp also runs on the EUP slot.
    """
    a1 = 0.254829592
    a2 = -0.284496736
    a3 = 1.421413741
    a4 = -1.453152027
    a5 = 1.061405429
    p = 0.3275911
    z = x * 0.7071067811865476
    za = jnp.abs(z)
    d = 1.0 + p * za
    r = pl.reciprocal(d, approx=True)
    r = r * (2.0 - d * r)                      # one Newton refinement
    poly = ((((a5 * r + a4) * r + a3) * r + a2) * r + a1) * r
    y = 1.0 - poly * jnp.exp(-(za * za))
    erf = jnp.where(z < 0.0, -y, y)
    return 0.5 * x * (1.0 + erf)


# ----------------------------------------------------------------------------
# Fused FFN kernel: fc1 + bias + GELU + fc2 + bias (+ residual)
# ----------------------------------------------------------------------------

def _ffn_kernel(*refs, add_residual, has_identity):
    if has_identity:
        x_ref, id_ref, w1_ref, b1_ref, w2_ref, b2_ref, o_ref = refs
    else:
        x_ref, w1_ref, b1_ref, w2_ref, b2_ref, o_ref = refs
        id_ref = None

    x = x_ref[...]                                        # (TM, C) f32 or bf16
    # fc1 + bias + exact GELU.  The (TM, F) hidden never leaves VMEM/vregs.
    h = jnp.dot(x, w1_ref[...], preferred_element_type=jnp.float32)
    h = _gelu_erf(h + b1_ref[...])
    # fc2 + bias (+ fused residual).
    out = jnp.dot(h.astype(w2_ref.dtype), w2_ref[...],
                  preferred_element_type=jnp.float32)
    out = out + b2_ref[...]
    if add_residual:
        res = id_ref[...] if has_identity else x
        out = out + res.astype(jnp.float32)
    o_ref[...] = out.astype(o_ref.dtype)


# ----------------------------------------------------------------------------
# Wrapper
# ----------------------------------------------------------------------------

def ffn_forward(x, params, identity=None, *, add_identity=True, block_m=512,
                use_bf16=True, out_dtype=jnp.float32, interpret=False):
    """Eval-mode FFN forward.  x: (..., C) -> (..., C)."""
    orig_shape = x.shape
    C = orig_shape[-1]
    w1, b1 = params["w1"], params["b1"]
    w2, b2 = params["w2"], params["b2"]
    F = w1.shape[1]
    assert w1.shape == (C, F) and w2.shape == (F, C), (w1.shape, w2.shape)

    comp_dt = jnp.bfloat16 if use_bf16 else jnp.float32
    x2 = x.reshape(-1, C).astype(comp_dt)                 # bf16 x -> half DMA
    M = x2.shape[0]

    # M-tile: big enough to amortize per-step overhead (v6e), but keep >= 4
    # grid steps so v7x's two TensorCores each get >= 2 steps.  No jnp.pad:
    # Pallas masks the ragged last block.
    tm = _round_up(pl.cdiv(M, 4), 8)
    tm = max(128, min(tm, block_m))
    tm = min(tm, _round_up(M, 8))
    tm = max(8, tm)
    num_m = pl.cdiv(M, tm)

    w1c = w1.astype(comp_dt)
    w2c = w2.astype(comp_dt)
    b1r = b1.reshape(1, F).astype(jnp.float32)
    b2r = b2.reshape(1, C).astype(jnp.float32)

    has_identity = add_identity and (identity is not None)

    def _row_spec():
        return pl.BlockSpec((tm, C), lambda i: (i, 0))

    def _resident(shape):
        # Constant index_map -> DMA'd once, VMEM-resident; single-buffered so
        # Pallas does not allocate a useless second copy.
        return pl.BlockSpec(shape, lambda i: (0, 0), pipeline_mode=pl.Buffered(1))

    inputs = [x2]
    in_specs = [_row_spec()]
    if has_identity:
        idy = identity.reshape(-1, C).astype(jnp.float32)
        inputs.append(idy)
        in_specs.append(_row_spec())
    inputs += [w1c, b1r, w2c, b2r]
    in_specs += [_resident((C, F)), _resident((1, F)),
                 _resident((F, C)), _resident((1, C))]

    # VMEM budget from the actual working set (weights single-buffered, x /
    # identity / out double-buffered, (tm, F) hidden + margin).
    wbytes = jnp.dtype(comp_dt).itemsize
    obytes = jnp.dtype(out_dtype).itemsize
    ws = (C * F + F * C) * wbytes                     # resident weights (x1)
    ws += (F + C) * 4                                 # biases
    ws += 2 * tm * C * wbytes                         # x tiles (double-buffered)
    if has_identity:
        ws += 2 * tm * C * 4                          # identity tiles
    ws += 2 * tm * C * obytes                         # out tiles
    ws += tm * F * 4                                  # hidden activation
    vmem_limit = int(min(48 * 1024 * 1024,
                         max(int(ws * 1.5) + (4 << 20), 16 * 1024 * 1024)))

    bytes_accessed = (x2.size * x2.dtype.itemsize
                      + (inputs[1].size * 4 if has_identity else 0)
                      + w1c.size * wbytes + w2c.size * wbytes
                      + (F + C) * 4
                      + M * C * obytes)
    cost = pl.CostEstimate(flops=4 * M * C * F,
                           transcendentals=2 * M * F,        # exp + vrcp
                           bytes_accessed=int(bytes_accessed))

    kernel = functools.partial(_ffn_kernel,
                               add_residual=add_identity,
                               has_identity=has_identity)

    out = pl.pallas_call(
        kernel,
        grid=(num_m,),
        in_specs=in_specs,
        out_specs=pl.BlockSpec((tm, C), lambda i: (i, 0)),
        out_shape=jax.ShapeDtypeStruct((M, C), out_dtype),
        compiler_params=pltpu.CompilerParams(
            dimension_semantics=("parallel",),
            vmem_limit_bytes=vmem_limit,
        ),
        cost_estimate=cost,
        interpret=interpret,
    )(*inputs)

    return out.reshape(orig_shape)


# ----------------------------------------------------------------------------
# Main
# ----------------------------------------------------------------------------

if __name__ == "__main__":
    embed_dims = 256              # FFN defaults
    feedforward_channels = 1024
    B, L = 2, 256

    root = jax.random.PRNGKey(0)
    kw1, kb1, kw2, kb2, kx, kid = jax.random.split(root, 6)
    params = dict(
        w1=0.02 * jax.random.normal(kw1, (embed_dims, feedforward_channels), jnp.float32),
        b1=0.02 * jax.random.normal(kb1, (feedforward_channels,), jnp.float32),
        w2=0.02 * jax.random.normal(kw2, (feedforward_channels, embed_dims), jnp.float32),
        b2=0.02 * jax.random.normal(kb2, (embed_dims,), jnp.float32),
    )
    x = jax.random.normal(kx, (B, L, embed_dims), jnp.float32)
    idy = jax.random.normal(kid, (B, L, embed_dims), jnp.float32)

    fwd = jax.jit(ffn_forward,
                  static_argnames=("add_identity", "block_m", "use_bf16",
                                   "out_dtype", "interpret"))

    # --- default path: bf16 operands, fused self-residual -------------------
    out = fwd(x, params)
    jax.block_until_ready(out)
    assert out.shape == x.shape, out.shape
    assert bool(jnp.all(jnp.isfinite(out)))

    # Matched-precision reference (same operand dtypes as the kernel).
    xb = x.astype(jnp.bfloat16)
    w1b = params["w1"].astype(jnp.bfloat16)
    w2b = params["w2"].astype(jnp.bfloat16)
    h_m = jax.nn.gelu(jnp.dot(xb, w1b, preferred_element_type=jnp.float32)
                      + params["b1"], approximate=False)
    core_m = (jnp.dot(h_m.astype(jnp.bfloat16), w2b,
                      preferred_element_type=jnp.float32) + params["b2"])
    err_matched = float(jnp.max(jnp.abs(out - (xb.astype(jnp.float32) + core_m))))
    assert err_matched < 1e-3, err_matched

    # Full-f32 PyTorch-semantics reference (loose bound for the bf16 path).
    h_ref = jax.nn.gelu(x @ params["w1"] + params["b1"], approximate=False)
    ref_f32 = x + (h_ref @ params["w2"] + params["b2"])
    err_f32path = float(jnp.max(jnp.abs(out - ref_f32)))
    assert err_f32path < 5e-2, err_f32path

    # --- external-identity path (fused in-kernel) ----------------------------
    out_id = fwd(x, params, idy)
    jax.block_until_ready(out_id)
    err_id = float(jnp.max(jnp.abs(out_id - (idy + core_m))))
    assert err_id < 1e-3, err_id

    # --- full-precision (f32 operand) path -----------------------------------
    out_f32 = fwd(x, params, use_bf16=False)
    jax.block_until_ready(out_f32)
    err_exact = float(jnp.max(jnp.abs(out_f32 - ref_f32)))
    assert err_exact < 1e-3, err_exact

    print("KERNEL_OK")
</pallas_src>

<mosaic_0001>
module attributes {stable_mosaic.version = 11 : i64} {
  func.func @_ffn_kernel(%arg0: i32, %arg1: memref<128x256xbf16, #tpu.memory_space<vmem>>, %arg2: memref<256x1024xbf16, #tpu.memory_space<vmem>>, %arg3: memref<1x1024xf32, #tpu.memory_space<vmem>>, %arg4: memref<1024x256xbf16, #tpu.memory_space<vmem>>, %arg5: memref<1x256xf32, #tpu.memory_space<vmem>>, %arg6: memref<128x256xf32, #tpu.memory_space<vmem>>) attributes {dimension_semantics = [#tpu.dimension_semantics<parallel>], iteration_bounds = array<i64: 4>, scalar_prefetch = 0 : i64, scratch_operands = 0 : i64, tpu.core_type = #tpu.core_type<tc>, window_params = [{transform_indices = @transform_0, window_bounds = array<i64: 128, 256>}, {pipeline_mode = #tpu.pipeline_mode<synchronous>, transform_indices = @transform_1, window_bounds = array<i64: 256, 1024>}, {pipeline_mode = #tpu.pipeline_mode<synchronous>, transform_indices = @transform_2, window_bounds = array<i64: 1, 1024>}, {pipeline_mode = #tpu.pipeline_mode<synchronous>, transform_indices = @transform_3, window_bounds = array<i64: 1024, 256>}, {pipeline_mode = #tpu.pipeline_mode<synchronous>, transform_indices = @transform_4, window_bounds = array<i64: 1, 256>}, {transform_indices = @transform_5, window_bounds = array<i64: 128, 256>}]} {
    %c0 = arith.constant 0 : index
    %c0_0 = arith.constant 0 : index
    %0 = vector.load %arg1[%c0, %c0_0] : memref<128x256xbf16, #tpu.memory_space<vmem>>, vector<128x256xbf16>
    %c0_1 = arith.constant 0 : index
    %c0_2 = arith.constant 0 : index
    %1 = vector.load %arg2[%c0_1, %c0_2] : memref<256x1024xbf16, #tpu.memory_space<vmem>>, vector<256x1024xbf16>
    %cst = arith.constant dense<0.000000e+00> : vector<128x1024xf32>
    %2 = tpu.matmul %0, %1, %cst {dimension_numbers = #tpu.dot_dimension_numbers<[1], [0], [0], [1], [0, 0, 1, 1], [], []>} : vector<128x256xbf16>, vector<256x1024xbf16>, vector<128x1024xf32> -> vector<128x1024xf32>
    %c0_3 = arith.constant 0 : index
    %c0_4 = arith.constant 0 : index
    %3 = vector.load %arg3[%c0_3, %c0_4] : memref<1x1024xf32, #tpu.memory_space<vmem>>, vector<1x1024xf32>
    %4 = vector.broadcast %3 : vector<1x1024xf32> to vector<128x1024xf32>
    %5 = arith.addf %2, %4 : vector<128x1024xf32>
    %cst_5 = arith.constant 0.707106769 : f32
    %6 = vector.broadcast %cst_5 : f32 to vector<128x1024xf32>
    %7 = arith.mulf %5, %6 : vector<128x1024xf32>
    %8 = math.absf %7 : vector<128x1024xf32>
    %cst_6 = arith.constant 0.327591091 : f32
    %9 = vector.broadcast %cst_6 : f32 to vector<128x1024xf32>
    %10 = arith.mulf %9, %8 : vector<128x1024xf32>
    %cst_7 = arith.constant 1.000000e+00 : f32
    %11 = vector.broadcast %cst_7 : f32 to vector<128x1024xf32>
    %12 = arith.addf %11, %10 : vector<128x1024xf32>
    %13 = tpu.reciprocal %12 {approx = true} : vector<128x1024xf32> -> vector<128x1024xf32>
    %14 = arith.mulf %12, %13 : vector<128x1024xf32>
    %cst_8 = arith.constant 2.000000e+00 : f32
    %15 = vector.broadcast %cst_8 : f32 to vector<128x1024xf32>
    %16 = arith.subf %15, %14 : vector<128x1024xf32>
    %17 = arith.mulf %13, %16 : vector<128x1024xf32>
    %cst_9 = arith.constant 1.06140542 : f32
    %18 = vector.broadcast %cst_9 : f32 to vector<128x1024xf32>
    %19 = arith.mulf %18, %17 : vector<128x1024xf32>
    %cst_10 = arith.constant -1.45315206 : f32
    %20 = vector.broadcast %cst_10 : f32 to vector<128x1024xf32>
    %21 = arith.addf %19, %20 : vector<128x1024xf32>
    %22 = arith.mulf %21, %17 : vector<128x1024xf32>
    %cst_11 = arith.constant 1.42141378 : f32
    %23 = vector.broadcast %cst_11 : f32 to vector<128x1024xf32>
    %24 = arith.addf %22, %23 : vector<128x1024xf32>
    %25 = arith.mulf %24, %17 : vector<128x1024xf32>
    %cst_12 = arith.constant -0.284496725 : f32
    %26 = vector.broadcast %cst_12 : f32 to vector<128x1024xf32>
    %27 = arith.addf %25, %26 : vector<128x1024xf32>
    %28 = arith.mulf %27, %17 : vector<128x1024xf32>
    %cst_13 = arith.constant 0.254829586 : f32
    %29 = vector.broadcast %cst_13 : f32 to vector<128x1024xf32>
    %30 = arith.addf %28, %29 : vector<128x1024xf32>
    %31 = arith.mulf %30, %17 : vector<128x1024xf32>
    %32 = arith.mulf %8, %8 : vector<128x1024xf32>
    %cst_14 = arith.constant 0.000000e+00 : f32
    %33 = vector.broadcast %cst_14 : f32 to vector<128x1024xf32>
    %34 = arith.subf %33, %32 : vector<128x1024xf32>
    %35 = math.exp %34 : vector<128x1024xf32>
    %36 = arith.mulf %31, %35 : vector<128x1024xf32>
    %cst_15 = arith.constant 1.000000e+00 : f32
    %37 = vector.broadcast %cst_15 : f32 to vector<128x1024xf32>
    %38 = arith.subf %37, %36 : vector<128x1024xf32>
    %cst_16 = arith.constant 0.000000e+00 : f32
    %39 = vector.broadcast %cst_16 : f32 to vector<128x1024xf32>
    %40 = arith.cmpf olt, %7, %39 : vector<128x1024xf32>
    %cst_17 = arith.constant 0.000000e+00 : f32
    %41 = vector.broadcast %cst_17 : f32 to vector<128x1024xf32>
    %42 = arith.subf %41, %38 : vector<128x1024xf32>
    %43 = arith.select %40, %42, %38 : vector<128x1024xi1>, vector<128x1024xf32>
    %cst_18 = arith.constant 5.000000e-01 : f32
    %44 = vector.broadcast %cst_18 : f32 to vector<128x1024xf32>
    %45 = arith.mulf %44, %5 : vector<128x1024xf32>
    %cst_19 = arith.constant 1.000000e+00 : f32
    %46 = vector.broadcast %cst_19 : f32 to vector<128x1024xf32>
    %47 = arith.addf %46, %43 : vector<128x1024xf32>
    %48 = arith.mulf %45, %47 : vector<128x1024xf32>
    %49 = arith.truncf %48 : vector<128x1024xf32> to vector<128x1024xbf16>
    %c0_20 = arith.constant 0 : index
    %c0_21 = arith.constant 0 : index
    %50 = vector.load %arg4[%c0_20, %c0_21] : memref<1024x256xbf16, #tpu.memory_space<vmem>>, vector<1024x256xbf16>
    %cst_22 = arith.constant dense<0.000000e+00> : vector<128x256xf32>
    %51 = tpu.matmul %49, %50, %cst_22 {dimension_numbers = #tpu.dot_dimension_numbers<[1], [0], [0], [1], [0, 0, 1, 1], [], []>} : vector<128x1024xbf16>, vector<1024x256xbf16>, vector<128x256xf32> -> vector<128x256xf32>
    %c0_23 = arith.constant 0 : index
    %c0_24 = arith.constant 0 : index
    %52 = vector.load %arg5[%c0_23, %c0_24] : memref<1x256xf32, #tpu.memory_space<vmem>>, vector<1x256xf32>
    %53 = vector.broadcast %52 : vector<1x256xf32> to vector<128x256xf32>
    %54 = arith.addf %51, %53 : vector<128x256xf32>
    %55 = arith.extf %0 : vector<128x256xbf16> to vector<128x256xf32>
    %56 = arith.addf %54, %55 : vector<128x256xf32>
    %c0_25 = arith.constant 0 : index
    %c0_26 = arith.constant 0 : index
    %57 = vector.load %arg6[%c0_25, %c0_26] : memref<128x256xf32, #tpu.memory_space<vmem>>, vector<128x256xf32>
    tpu.vector_store %arg6[%c0_25, %c0_26], %56 {strides = array<i32>} : memref<128x256xf32, #tpu.memory_space<vmem>>, vector<128x256xf32>,
    return
  }
  func.func @transform_0(%arg0: i32) -> (i32, i32) {
    %c0_i32 = arith.constant 0 : i32
    %c0_i32_0 = arith.constant 0 : i32
    return %arg0, %c0_i32 : i32, i32
  }
  func.func @transform_1(%arg0: i32) -> (i32, i32) {
    %c0_i32 = arith.constant 0 : i32
    %c0_i32_0 = arith.constant 0 : i32
    %c0_i32_1 = arith.constant 0 : i32
    return %c0_i32, %c0_i32_0 : i32, i32
  }
  func.func @transform_2(%arg0: i32) -> (i32, i32) {
    %c0_i32 = arith.constant 0 : i32
    %c0_i32_0 = arith.constant 0 : i32
    %c0_i32_1 = arith.constant 0 : i32
    return %c0_i32, %c0_i32_0 : i32, i32
  }
  func.func @transform_3(%arg0: i32) -> (i32, i32) {
    %c0_i32 = arith.constant 0 : i32
    %c0_i32_0 = arith.constant 0 : i32
    %c0_i32_1 = arith.constant 0 : i32
    return %c0_i32, %c0_i32_0 : i32, i32
  }
  func.func @transform_4(%arg0: i32) -> (i32, i32) {
    %c0_i32 = arith.constant 0 : i32
    %c0_i32_0 = arith.constant 0 : i32
    %c0_i32_1 = arith.constant 0 : i32
    return %c0_i32, %c0_i32_0 : i32, i32
  }
  func.func @transform_5(%arg0: i32) -> (i32, i32) {
    %c0_i32 = arith.constant 0 : i32
    %c0_i32_0 = arith.constant 0 : i32
    return %arg0, %c0_i32 : i32, i32
  }
}

</mosaic_0001>

<llo_original>
// kernel: ffn_forward.1
$region0: #{ffn_forward.1}
  #allocation0 [shape = 'u32[]', space=smem, size = 0x4, offset = 0x4, fixed_abs, tag = 'smem constant byte address 0x4 - core index']
  #allocation1 [shape = 'u32[144,128]{1,0:T(1,128)}', space=vmem, size = 0x12000, scoped, tag = 'internal scratch']
  %s0 = inlined_call_operand.vmem [shape: bf16[512,256], index: 0, kind: input, shape index: {}]
  %s1 = inlined_call_operand.vmem [shape: bf16[256,1024], index: 1, kind: input, shape index: {}]
  %s2 = inlined_call_operand.vmem [shape: f32[1,1024], index: 2, kind: input, shape index: {}]
  %s3 = inlined_call_operand.vmem [shape: bf16[1024,256], index: 3, kind: input, shape index: {}]
  %s4 = inlined_call_operand.vmem [shape: f32[1,256], index: 4, kind: input, shape index: {}]
  %s5 = inlined_call_operand.hbm [shape: f32[512,256], index: 5, kind: output, shape index: {}]
  %s6 = sld [smem:[#allocation0]]
  $region53: #{ffn_forward.1} parent=0
    _
  %s8 = ssub.s32 1, %s6
  %s9 = scalar_select 0, %s8, %s6
  $region1: #{ffn_forward.1} parent=0
    #allocation2 [shape = 'u8[262144]{0}', space=vmem, size = 0x40000, scoped, tag = 'output window, operand 0']
    #allocation3 [shape = 's32[2]{0}', space=sflag, size = 0x8, scoped, tag = 'scoped memory for ffn_forward.1']
    %10 = vsyncpa [#allocation3], 0
    %s11 = scalar_lea.sflag [#allocation3], 1
    %12 = vsyncpa %s11, 0
    loop: start=0, step=1, limit=6
    $region2: #{ffn_forward.1} parent=1 // loop_pre_header
      _
    $region3: #{ffn_forward.1} parent=1 // loop_header
      %s14 = sphi 0, %s18
      %p15 = scmp.ge.s32.totalorder %s14, 6
      %s24 = sphi 0, %s26
      %s27 = sphi 0, %s24
      %s28 = sphi 0, %s27
      %s44 = sphi 0, %s28
      %s48 = sphi 0, %s48
      %s50 = sphi 0, %s48
      %s51 = sphi 0, %s50
      %s65 = sphi 0, %s51
      %s69 = sphi 0, %s69
      %s71 = sphi 0, %s69
      %s72 = sphi 0, %s71
      %s86 = sphi 0, %s72
      %s90 = sphi 0, %s90
      %s92 = sphi 0, %s90
      %s93 = sphi 0, %s92
      %s107 = sphi 0, %s93
      %s111 = sphi 0, %s111
      %s113 = sphi 0, %s111
      %s114 = sphi 0, %s113
      %s128 = sphi 0, %s114
      %s134 = sphi 0, %s136
      %s137 = sphi 0, %s134
      %s138 = sphi 0, %s137
      %s154 = sphi 0, %s138
    $region4: #{ffn_forward.1} parent=1 // loop_header_branch
      %17 = sbr.rel (%p15) target = $region8
    $region5: #{ffn_forward.1} parent=1 // loop_body
      %s19 = ssub.s32 %s14, 1
      %s20 = ssub.s32 %s14, 2
      %s21 = sadd.s32 %s14, 1
      %s22 = ssub.s32 %s14, %s21
      %p23 = scmp.eq.s32.totalorder %s22, 0
      %s25 = sadd.s32 %s24, 1
      %s26 = scalar_select %p23, %s24, %s25
      %p29 = pneg %p23
      %p30 = scmp.eq.s32.totalorder %s14, 3
      %p31 = por %p29, %p30
      %p32 = scmp.ne.s32.totalorder %s24, %s27
      %p33 = scmp.eq.s32.totalorder %s14, 0
      %p34 = por %p32, %p33
      %p35 = scmp.ne.s32.totalorder %s24, %s27
      %p36 = scmp.eq.s32.totalorder %s19, 3
      %p37 = por %p35, %p36
      %p38 = scmp.ne.s32.totalorder %s27, %s28
      %p39 = scmp.eq.s32.totalorder %s19, 0
      %p40 = por %p38, %p39
      %p41 = scmp.ne.s32.totalorder %s27, %s28
      %p42 = scmp.eq.s32.totalorder %s20, 3
      %p43 = por %p41, %p42
      %p45 = scmp.ne.s32.totalorder %s28, %s44
      %p46 = scmp.eq.s32.totalorder %s20, 0
      %p47 = por %p45, %p46
      %s49 = sadd.s32 %s48, 1
      %p52 = scmp.eq.s32.totalorder %s14, 3
      %p53 = scmp.ne.s32.totalorder %s48, %s50
      %p54 = scmp.eq.s32.totalorder %s14, 0
      %p55 = por %p53, %p54
      %p56 = scmp.ne.s32.totalorder %s48, %s50
      %p57 = scmp.eq.s32.totalorder %s19, 3
      %p58 = por %p56, %p57
      %p59 = scmp.ne.s32.totalorder %s50, %s51
      %p60 = scmp.eq.s32.totalorder %s19, 0
      %p61 = por %p59, %p60
      %p62 = scmp.ne.s32.totalorder %s50, %s51
      %p63 = scmp.eq.s32.totalorder %s20, 3
      %p64 = por %p62, %p63
      %p66 = scmp.ne.s32.totalorder %s51, %s65
      %p67 = scmp.eq.s32.totalorder %s20, 0
      %p68 = por %p66, %p67
      %s70 = sadd.s32 %s69, 1
      %p73 = scmp.eq.s32.totalorder %s14, 3
      %p74 = scmp.ne.s32.totalorder %s69, %s71
      %p75 = scmp.eq.s32.totalorder %s14, 0
      %p76 = por %p74, %p75
      %p77 = scmp.ne.s32.totalorder %s69, %s71
      %p78 = scmp.eq.s32.totalorder %s19, 3
      %p79 = por %p77, %p78
      %p80 = scmp.ne.s32.totalorder %s71, %s72
      %p81 = scmp.eq.s32.totalorder %s19, 0
      %p82 = por %p80, %p81
      %p83 = scmp.ne.s32.totalorder %s71, %s72
      %p84 = scmp.eq.s32.totalorder %s20, 3
      %p85 = por %p83, %p84
      %p87 = scmp.ne.s32.totalorder %s72, %s86
      %p88 = scmp.eq.s32.totalorder %s20, 0
      %p89 = por %p87, %p88
      %s91 = sadd.s32 %s90, 1
      %p94 = scmp.eq.s32.totalorder %s14, 3
      %p95 = scmp.ne.s32.totalorder %s90, %s92
      %p96 = scmp.eq.s32.totalorder %s14, 0
      %p97 = por %p95, %p96
      %p98 = scmp.ne.s32.totalorder %s90, %s92
      %p99 = scmp.eq.s32.totalorder %s19, 3
      %p100 = por %p98, %p99
      %p101 = scmp.ne.s32.totalorder %s92, %s93
      %p102 = scmp.eq.s32.totalorder %s19, 0
      %p103 = por %p101, %p102
      %p104 = scmp.ne.s32.totalorder %s92, %s93
      %p105 = scmp.eq.s32.totalorder %s20, 3
      %p106 = por %p104, %p105
      %p108 = scmp.ne.s32.totalorder %s93, %s107
      %p109 = scmp.eq.s32.totalorder %s20, 0
      %p110 = por %p108, %p109
      %s112 = sadd.s32 %s111, 1
      %p115 = scmp.eq.s32.totalorder %s14, 3
      %p116 = scmp.ne.s32.totalorder %s111, %s113
      %p117 = scmp.eq.s32.totalorder %s14, 0
      %p118 = por %p116, %p117
      %p119 = scmp.ne.s32.totalorder %s111, %s113
      %p120 = scmp.eq.s32.totalorder %s19, 3
      %p121 = por %p119, %p120
      %p122 = scmp.ne.s32.totalorder %s113, %s114
      %p123 = scmp.eq.s32.totalorder %s19, 0
      %p124 = por %p122, %p123
      %p125 = scmp.ne.s32.totalorder %s113, %s114
      %p126 = scmp.eq.s32.totalorder %s20, 3
      %p127 = por %p125, %p126
      %p129 = scmp.ne.s32.totalorder %s114, %s128
      %p130 = scmp.eq.s32.totalorder %s20, 0
      %p131 = por %p129, %p130
      %s132 = ssub.s32 %s14, %s21
      %p133 = scmp.eq.s32.totalorder %s132, 0
      %s135 = sadd.s32 %s134, 1
      %s136 = scalar_select %p133, %s134, %s135
      %p139 = pneg %p133
      %p140 = scmp.eq.s32.totalorder %s14, 3
      %p141 = por %p139, %p140
      %p142 = scmp.ne.s32.totalorder %s134, %s137
      %p143 = scmp.eq.s32.totalorder %s14, 0
      %p144 = por %p142, %p143
      %p145 = scmp.ne.s32.totalorder %s134, %s137
      %p146 = scmp.eq.s32.totalorder %s19, 3
      %p147 = por %p145, %p146
      %p148 = scmp.ne.s32.totalorder %s137, %s138
      %p149 = scmp.eq.s32.totalorder %s19, 0
      %p150 = por %p148, %p149
      %p151 = scmp.ne.s32.totalorder %s137, %s138
      %p152 = scmp.eq.s32.totalorder %s20, 3
      %p153 = por %p151, %p152
      %p155 = scmp.ne.s32.totalorder %s138, %s154
      %p156 = scmp.eq.s32.totalorder %s20, 0
      %p157 = por %p155, %p156
      %p158 = scmp.le.s32.totalorder 1, %s14
      %p159 = scmp.lt.s32.totalorder %s14, 5
      %p160 = pnand %p158, %p159
      %p161 = pneg %p160
      // Predicated region
      $region9: #{ffn_forward.1} parent=5 // pred_check
        _
      $region10: #{ffn_forward.1} parent=5 // pred_check_branch
        %163 = sbr.rel (%p160) target = $region12
      $region11: #{ffn_forward.1} parent=5 // pred_region
        %s164 = ssub.s32 %s14, 1
        // Predicated region
        $region13: #{ffn_forward.1} parent=11 // pred_check
          %p165 = pneg %p61
        $region14: #{ffn_forward.1} parent=11 // pred_check_branch
          %167 = sbr.rel (%p165) target = $region16
        $region15: #{ffn_forward.1} parent=11 // pred_region
          _
        $region16: #{ffn_forward.1} parent=11 // pred_fallthru
          _
        // Predicated region
        $region17: #{ffn_forward.1} parent=11 // pred_check
          %p168 = pneg %p82
        $region18: #{ffn_forward.1} parent=11 // pred_check_branch
          %170 = sbr.rel (%p168) target = $region20
        $region19: #{ffn_forward.1} parent=11 // pred_region
          _
        $region20: #{ffn_forward.1} parent=11 // pred_fallthru
          _
        // Predicated region
        $region21: #{ffn_forward.1} parent=11 // pred_check
          %p171 = pneg %p103
        $region22: #{ffn_forward.1} parent=11 // pred_check_branch
          %173 = sbr.rel (%p171) target = $region24
        $region23: #{ffn_forward.1} parent=11 // pred_region
          _
        $region24: #{ffn_forward.1} parent=11 // pred_fallthru
          _
        // Predicated region
        $region25: #{ffn_forward.1} parent=11 // pred_check
          %p174 = pneg %p124
        $region26: #{ffn_forward.1} parent=11 // pred_check_branch
          %176 = sbr.rel (%p174) target = $region28
        $region27: #{ffn_forward.1} parent=11 // pred_region
          _
        $region28: #{ffn_forward.1} parent=11 // pred_fallthru
          _
      $region12: #{ffn_forward.1} parent=5 // pred_fallthru
        _
      %p177 = scmp.lt.s32.totalorder %s14, 4
      // Predicated region
      $region29: #{ffn_forward.1} parent=5 // pred_check
        %p178 = pneg %p177
      $region30: #{ffn_forward.1} parent=5 // pred_check_branch
        %180 = sbr.rel (%p178) target = $region32
      $region31: #{ffn_forward.1} parent=5 // pred_region
        // Predicated region
        $region33: #{ffn_forward.1} parent=31 // pred_check
          %p181 = pneg %p34
        $region34: #{ffn_forward.1} parent=31 // pred_check_branch
          %183 = sbr.rel (%p181) target = $region36
        $region35: #{ffn_forward.1} parent=31 // pred_region
          %s184 = smul.u32 16, %s14
          %p185 = scmp.lt.s32.totalorder %s184, 63
          %s186 = scalar_select %p185, %s184, 63
          %s187 = smul.addr %s186, 2
          %s188 = smul.addr %s187, 4
          %s189 = scalar_lea.vmem %s0, %s188
          %s190 = smul.u32 16, %s14
        $region36: #{ffn_forward.1} parent=31 // pred_fallthru
          _
      $region32: #{ffn_forward.1} parent=5 // pred_fallthru
        _
      %p191 = scmp.le.s32.totalorder 1, %s14
      %p192 = scmp.lt.s32.totalorder %s14, 5
      %p193 = pnand %p191, %p192
      %p194 = pneg %p193
      // Predicated region
      $region37: #{ffn_forward.1} parent=5 // pred_check
        _
      $region38: #{ffn_forward.1} parent=5 // pred_check_branch
        %196 = sbr.rel (%p193) target = $region40
      $region39: #{ffn_forward.1} parent=5 // pred_region
        %s197 = ssub.s32 %s14, 1
        %s198 = smul.u32 16, %s19
        %p199 = scmp.lt.s32.totalorder %s198, 63
        %s200 = scalar_select %p199, %s198, 63
        %s201 = smul.addr %s200, 2
        %s202 = smul.addr %s201, 4
        %s203 = scalar_lea.vmem %s0, %s202
        %p204 = pneg %p40
        %p205 = pneg %p37
        %p206 = pneg %p61
        %p207 = pneg %p58
        %p208 = pneg %p82
        %p209 = pneg %p79
        %p210 = pneg %p103
        %p211 = pneg %p100
        %p212 = pneg %p124
        %p213 = pneg %p121
        %p214 = pneg %p150
        %p215 = pneg %p147
        %s216 = sand.u32 %s137, 1
        %s217 = scalar_lea.sflag [#allocation3], %s216
        %s218 = sand.u32 %s137, 1
        %s219 = smul.addr %s218, 256
        %s220 = scalar_lea.vmem [#allocation2], %s219
        %s221 = smul.u32 16, %s19
        %p222 = scmp.lt.s32.totalorder %s221, 63
        %s223 = scalar_select %p222, %s221, 63
        %s224 = smul.addr %s223, 2
        %s225 = smul.addr %s224, 4
        %s226 = scalar_lea.vmem %s0, %s225
        %s227 = smul.u32 16, %s19
        %s228 = smul.u32 16, %s19
        %v229 = vld [vmem:[%s226] sm:$0xff]
        %v230 = vld [vmem:[%s226 + $0x8] sm:$0xff]
        %v231 = vld [vmem:[%s226 + $0x10] sm:$0xff]
        %v232 = vld [vmem:[%s226 + $0x18] sm:$0xff]
        %v233 = vld [vmem:[%s226 + $0x20] sm:$0xff]
        %v234 = vld [vmem:[%s226 + $0x28] sm:$0xff]
        %v235 = vld [vmem:[%s226 + $0x30] sm:$0xff]
        %v236 = vld [vmem:[%s226 + $0x38] sm:$0xff]
        %v237 = vld [vmem:[%s226 + $0x40] sm:$0xff]
        %v238 = vld [vmem:[%s226 + $0x48] sm:$0xff]
        %v239 = vld [vmem:[%s226 + $0x50] sm:$0xff]
        %v240 = vld [vmem:[%s226 + $0x58] sm:$0xff]
        %v241 = vld [vmem:[%s226 + $0x60] sm:$0xff]
        %v242 = vld [vmem:[%s226 + $0x68] sm:$0xff]
        %v243 = vld [vmem:[%s226 + $0x70] sm:$0xff]
        %v244 = vld [vmem:[%s226 + $0x78] sm:$0xff]
        %v245 = vld [vmem:[%s1] sm:$0xff]
        %v246 = vld [vmem:[%s1 + $0x8] sm:$0xff]
        %v247 = vld [vmem:[%s1 + $0x10] sm:$0xff]
        %v248 = vld [vmem:[%s1 + $0x18] sm:$0xff]
        %v249 = vld [vmem:[%s1 + $0x20] sm:$0xff]
        %v250 = vld [vmem:[%s1 + $0x28] sm:$0xff]
        %v251 = vld [vmem:[%s1 + $0x30] sm:$0xff]
        %v252 = vld [vmem:[%s1 + $0x38] sm:$0xff]
        %v253 = vld [vmem:[%s1 + $0x40] sm:$0xff]
        %v254 = vld [vmem:[%s1 + $0x48] sm:$0xff]
        %v255 = vld [vmem:[%s1 + $0x50] sm:$0xff]
        %v256 = vld [vmem:[%s1 + $0x58] sm:$0xff]
        %v257 = vld [vmem:[%s1 + $0x60] sm:$0xff]
        %v258 = vld [vmem:[%s1 + $0x68] sm:$0xff]
        %v259 = vld [vmem:[%s1 + $0x70] sm:$0xff]
        %v260 = vld [vmem:[%s1 + $0x78] sm:$0xff]
        %v261 = vld [vmem:[%s1 + $0x80] sm:$0xff]
        %v262 = vld [vmem:[%s1 + $0x88] sm:$0xff]
        %v263 = vld [vmem:[%s1 + $0x90] sm:$0xff]
        %v264 = vld [vmem:[%s1 + $0x98] sm:$0xff]
        %v265 = vld [vmem:[%s1 + $0xa0] sm:$0xff]
        %v266 = vld [vmem:[%s1 + $0xa8] sm:$0xff]
        %v267 = vld [vmem:[%s1 + $0xb0] sm:$0xff]
        %v268 = vld [vmem:[%s1 + $0xb8] sm:$0xff]
        %v269 = vld [vmem:[%s1 + $0xc0] sm:$0xff]
        %v270 = vld [vmem:[%s1 + $0xc8] sm:$0xff]
        %v271 = vld [vmem:[%s1 + $0xd0] sm:$0xff]
        %v272 = vld [vmem:[%s1 + $0xd8] sm:$0xff]
        %v273 = vld [vmem:[%s1 + $0xe0] sm:$0xff]
        %v274 = vld [vmem:[%s1 + $0xe8] sm:$0xff]
        %v275 = vld [vmem:[%s1 + $0xf0] sm:$0xff]
        %v276 = vld [vmem:[%s1 + $0xf8] sm:$0xff]
        %v277 = vld [vmem:[%s1 + $0x100] sm:$0xff]
        %v278 = vld [vmem:[%s1 + $0x108] sm:$0xff]
        %v279 = vld [vmem:[%s1 + $0x110] sm:$0xff]
        %v280 = vld [vmem:[%s1 + $0x118] sm:$0xff]
        %v281 = vld [vmem:[%s1 + $0x120] sm:$0xff]
        %v282 = vld [vmem:[%s1 + $0x128] sm:$0xff]
        %v283 = vld [vmem:[%s1 + $0x130] sm:$0xff]
        %v284 = vld [vmem:[%s1 + $0x138] sm:$0xff]
        %v285 = vld [vmem:[%s1 + $0x140] sm:$0xff]
        %v286 = vld [vmem:[%s1 + $0x148] sm:$0xff]
        %v287 = vld [vmem:[%s1 + $0x150] sm:$0xff]
        %v288 = vld [vmem:[%s1 + $0x158] sm:$0xff]
        %v289 = vld [vmem:[%s1 + $0x160] sm:$0xff]
        %v290 = vld [vmem:[%s1 + $0x168] sm:$0xff]
        %v291 = vld [vmem:[%s1 + $0x170] sm:$0xff]
        %v292 = vld [vmem:[%s1 + $0x178] sm:$0xff]
        %v293 = vld [vmem:[%s1 + $0x180] sm:$0xff]
        %v294 = vld [vmem:[%s1 + $0x188] sm:$0xff]
        %v295 = vld [vmem:[%s1 + $0x190] sm:$0xff]
        %v296 = vld [vmem:[%s1 + $0x198] sm:$0xff]
        %v297 = vld [vmem:[%s1 + $0x1a0] sm:$0xff]
        %v298 = vld [vmem:[%s1 + $0x1a8] sm:$0xff]
        %v299 = vld [vmem:[%s1 + $0x1b0] sm:$0xff]
        %v300 = vld [vmem:[%s1 + $0x1b8] sm:$0xff]
        %v301 = vld [vmem:[%s1 + $0x1c0] sm:$0xff]
        %v302 = vld [vmem:[%s1 + $0x1c8] sm:$0xff]
        %v303 = vld [vmem:[%s1 + $0x1d0] sm:$0xff]
        %v304 = vld [vmem:[%s1 + $0x1d8] sm:$0xff]
        %v305 = vld [vmem:[%s1 + $0x1e0] sm:$0xff]
        %v306 = vld [vmem:[%s1 + $0x1e8] sm:$0xff]
        %v307 = vld [vmem:[%s1 + $0x1f0] sm:$0xff]
        %v308 = vld [vmem:[%s1 + $0x1f8] sm:$0xff]
        %v309 = vld [vmem:[%s1 + $0x200] sm:$0xff]
        %v310 = vld [vmem:[%s1 + $0x208] sm:$0xff]
        %v311 = vld [vmem:[%s1 + $0x210] sm:$0xff]
        %v312 = vld [vmem:[%s1 + $0x218] sm:$0xff]
        %v313 = vld [vmem:[%s1 + $0x220] sm:$0xff]
        %v314 = vld [vmem:[%s1 + $0x228] sm:$0xff]
        %v315 = vld [vmem:[%s1 + $0x230] sm:$0xff]
        %v316 = vld [vmem:[%s1 + $0x238] sm:$0xff]
        %v317 = vld [vmem:[%s1 + $0x240] sm:$0xff]
        %v318 = vld [vmem:[%s1 + $0x248] sm:$0xff]
        %v319 = vld [vmem:[%s1 + $0x250] sm:$0xff]
        %v320 = vld [vmem:[%s1 + $0x258] sm:$0xff]
        %v321 = vld [vmem:[%s1 + $0x260] sm:$0xff]
        %v322 = vld [vmem:[%s1 + $0x268] sm:$0xff]
        %v323 = vld [vmem:[%s1 + $0x270] sm:$0xff]
        %v324 = vld [vmem:[%s1 + $0x278] sm:$0xff]
        %v325 = vld [vmem:[%s1 + $0x280] sm:$0xff]
        %v326 = vld [vmem:[%s1 + $0x288] sm:$0xff]
        %v327 = vld [vmem:[%s1 + $0x290] sm:$0xff]
        %v328 = vld [vmem:[%s1 + $0x298] sm:$0xff]
        %v329 = vld [vmem:[%s1 + $0x2a0] sm:$0xff]
        %v330 = vld [vmem:[%s1 + $0x2a8] sm:$0xff]
        %v331 = vld [vmem:[%s1 + $0x2b0] sm:$0xff]
        %v332 = vld [vmem:[%s1 + $0x2b8] sm:$0xff]
        %v333 = vld [vmem:[%s1 + $0x2c0] sm:$0xff]
        %v334 = vld [vmem:[%s1 + $0x2c8] sm:$0xff]
        %v335 = vld [vmem:[%s1 + $0x2d0] sm:$0xff]
        %v336 = vld [vmem:[%s1 + $0x2d8] sm:$0xff]
        %v337 = vld [vmem:[%s1 + $0x2e0] sm:$0xff]
        %v338 = vld [vmem:[%s1 + $0x2e8] sm:$0xff]
        %v339 = vld [vmem:[%s1 + $0x2f0] sm:$0xff]
        %v340 = vld [vmem:[%s1 + $0x2f8] sm:$0xff]
        %v341 = vld [vmem:[%s1 + $0x300] sm:$0xff]
        %v342 = vld [vmem:[%s1 + $0x308] sm:$0xff]
        %v343 = vld [vmem:[%s1 + $0x310] sm:$0xff]
        %v344 = vld [vmem:[%s1 + $0x318] sm:$0xff]
        %v345 = vld [vmem:[%s1 + $0x320] sm:$0xff]
        %v346 = vld [vmem:[%s1 + $0x328] sm:$0xff]
        %v347 = vld [vmem:[%s1 + $0x330] sm:$0xff]
        %v348 = vld [vmem:[%s1 + $0x338] sm:$0xff]
        %v349 = vld [vmem:[%s1 + $0x340] sm:$0xff]
        %v350 = vld [vmem:[%s1 + $0x348] sm:$0xff]
        %v351 = vld [vmem:[%s1 + $0x350] sm:$0xff]
        %v352 = vld [vmem:[%s1 + $0x358] sm:$0xff]
        %v353 = vld [vmem:[%s1 + $0x360] sm:$0xff]
        %v354 = vld [vmem:[%s1 + $0x368] sm:$0xff]
        %v355 = vld [vmem:[%s1 + $0x370] sm:$0xff]
        %v356 = vld [vmem:[%s1 + $0x378] sm:$0xff]
        %v357 = vld [vmem:[%s1 + $0x380] sm:$0xff]
        %v358 = vld [vmem:[%s1 + $0x388] sm:$0xff]
        %v359 = vld [vmem:[%s1 + $0x390] sm:$0xff]
        %v360 = vld [vmem:[%s1 + $0x398] sm:$0xff]
        %v361 = vld [vmem:[%s1 + $0x3a0] sm:$0xff]
        %v362 = vld [vmem:[%s1 + $0x3a8] sm:$0xff]
        %v363 = vld [vmem:[%s1 + $0x3b0] sm:$0xff]
        %v364 = vld [vmem:[%s1 + $0x3b8] sm:$0xff]
        %v365 = vld [vmem:[%s1 + $0x3c0] sm:$0xff]
        %v366 = vld [vmem:[%s1 + $0x3c8] sm:$0xff]
        %v367 = vld [vmem:[%s1 + $0x3d0] sm:$0xff]
        %v368 = vld [vmem:[%s1 + $0x3d8] sm:$0xff]
        %v369 = vld [vmem:[%s1 + $0x3e0] sm:$0xff]
        %v370 = vld [vmem:[%s1 + $0x3e8] sm:$0xff]
        %v371 = vld [vmem:[%s1 + $0x3f0] sm:$0xff]
        %v372 = vld [vmem:[%s1 + $0x3f8] sm:$0xff]
        %v373 = vld [vmem:[%s2] sm:$0xff]
        %v375 = vlaneseq
        %v376 = vshrl.u32 %v375, 7
        %v377 = vsub.s32 0, %v376
        %v378 = vrot.slane %v373, %v377
        %v379 = vlaneseq
        %v380 = vshrl.u32 %v379, 7
        %v381 = vsub.s32 1, %v380
        %v382 = vrot.slane %v373, %v381
        %v383 = vlaneseq
        %v384 = vshrl.u32 %v383, 7
        %v385 = vsub.s32 2, %v384
        %v386 = vrot.slane %v373, %v385
        %v387 = vlaneseq
        %v388 = vshrl.u32 %v387, 7
        %v389 = vsub.s32 3, %v388
        %v390 = vrot.slane %v373, %v389
        %v391 = vlaneseq
        %v392 = vshrl.u32 %v391, 7
        %v393 = vsub.s32 4, %v392
        %v394 = vrot.slane %v373, %v393
        %v395 = vlaneseq
        %v396 = vshrl.u32 %v395, 7
        %v397 = vsub.s32 5, %v396
        %v398 = vrot.slane %v373, %v397
        %v399 = vlaneseq
        %v400 = vshrl.u32 %v399, 7
        %v401 = vsub.s32 6, %v400
        %v402 = vrot.slane %v373, %v401
        %v403 = vlaneseq
        %v404 = vshrl.u32 %v403, 7
        %v405 = vsub.s32 7, %v404
        %v406 = vrot.slane %v373, %v405
        %v431 = vunpack.c.l.b16 %v229
        %v432 = vunpack.c.h.b16 %v229
        %v433 = vunpack.c.l.b16 %v230
        %v434 = vunpack.c.h.b16 %v230
        %v435 = vunpack.c.l.b16 %v231
        %v436 = vunpack.c.h.b16 %v231
        %v437 = vunpack.c.l.b16 %v232
        %v438 = vunpack.c.h.b16 %v232
        %v439 = vunpack.c.l.b16 %v233
        %v440 = vunpack.c.h.b16 %v233
        %v441 = vunpack.c.l.b16 %v234
        %v442 = vunpack.c.h.b16 %v234
        %v443 = vunpack.c.l.b16 %v235
        %v444 = vunpack.c.h.b16 %v235
        %v445 = vunpack.c.l.b16 %v236
        %v446 = vunpack.c.h.b16 %v236
        %v447 = vunpack.c.l.b16 %v237
        %v448 = vunpack.c.h.b16 %v237
        %v449 = vunpack.c.l.b16 %v238
        %v450 = vunpack.c.h.b16 %v238
        %v451 = vunpack.c.l.b16 %v239
        %v452 = vunpack.c.h.b16 %v239
        %v453 = vunpack.c.l.b16 %v240
        %v454 = vunpack.c.h.b16 %v240
        %v455 = vunpack.c.l.b16 %v241
        %v456 = vunpack.c.h.b16 %v241
        %v457 = vunpack.c.l.b16 %v242
        %v458 = vunpack.c.h.b16 %v242
        %v459 = vunpack.c.l.b16 %v243
        %v460 = vunpack.c.h.b16 %v243
        %v461 = vunpack.c.l.b16 %v244
        %v462 = vunpack.c.h.b16 %v244
        %v463 = vpack.c.b16 %v433, %v431
        %v464 = vpack.c.b16 %v434, %v432
        %v465 = vpack.c.b16 %v437, %v435
        %v466 = vpack.c.b16 %v438, %v436
        %v467 = vpack.c.b16 %v441, %v439
        %v468 = vpack.c.b16 %v442, %v440
        %v469 = vpack.c.b16 %v445, %v443
        %v470 = vpack.c.b16 %v446, %v444
        %v471 = vpack.c.b16 %v449, %v447
        %v472 = vpack.c.b16 %v450, %v448
        %v473 = vpack.c.b16 %v453, %v451
        %v474 = vpack.c.b16 %v454, %v452
        %v475 = vpack.c.b16 %v457, %v455
        %v476 = vpack.c.b16 %v458, %v456
        %v477 = vpack.c.b16 %v461, %v459
        %v478 = vpack.c.b16 %v462, %v460
        %v623 = vunpack.c.l.b16 %v245
        %v624 = vunpack.c.h.b16 %v245
        %v625 = vunpack.c.l.b16 %v246
        %v626 = vunpack.c.h.b16 %v246
        %v627 = vunpack.c.l.b16 %v247
        %v628 = vunpack.c.h.b16 %v247
        %v629 = vunpack.c.l.b16 %v248
        %v630 = vunpack.c.h.b16 %v248
        %v631 = vunpack.c.l.b16 %v249
        %v632 = vunpack.c.h.b16 %v249
        %v633 = vunpack.c.l.b16 %v250
        %v634 = vunpack.c.h.b16 %v250
        %v635 = vunpack.c.l.b16 %v251
        %v636 = vunpack.c.h.b16 %v251
        %v637 = vunpack.c.l.b16 %v252
        %v638 = vunpack.c.h.b16 %v252
        %v639 = vunpack.c.l.b16 %v253
        %v640 = vunpack.c.h.b16 %v253
        %v641 = vunpack.c.l.b16 %v254
        %v642 = vunpack.c.h.b16 %v254
        %v643 = vunpack.c.l.b16 %v255
        %v644 = vunpack.c.h.b16 %v255
        %v645 = vunpack.c.l.b16 %v256
        %v646 = vunpack.c.h.b16 %v256
        %v647 = vunpack.c.l.b16 %v257
        %v648 = vunpack.c.h.b16 %v257
        %v649 = vunpack.c.l.b16 %v258
        %v650 = vunpack.c.h.b16 %v258
        %v651 = vunpack.c.l.b16 %v259
        %v652 = vunpack.c.h.b16 %v259
        %v653 = vunpack.c.l.b16 %v260
        %v654 = vunpack.c.h.b16 %v260
        %v655 = vunpack.c.l.b16 %v261
        %v656 = vunpack.c.h.b16 %v261
        %v657 = vunpack.c.l.b16 %v262
        %v658 = vunpack.c.h.b16 %v262
        %v659 = vunpack.c.l.b16 %v263
        %v660 = vunpack.c.h.b16 %v263
        %v661 = vunpack.c.l.b16 %v264
        %v662 = vunpack.c.h.b16 %v264
        %v663 = vunpack.c.l.b16 %v265
        %v664 = vunpack.c.h.b16 %v265
        %v665 = vunpack.c.l.b16 %v266
        %v666 = vunpack.c.h.b16 %v266
        %v667 = vunpack.c.l.b16 %v267
        %v668 = vunpack.c.h.b16 %v267
        %v669 = vunpack.c.l.b16 %v268
        %v670 = vunpack.c.h.b16 %v268
        %v671 = vunpack.c.l.b16 %v269
        %v672 = vunpack.c.h.b16 %v269
        %v673 = vunpack.c.l.b16 %v270
        %v674 = vunpack.c.h.b16 %v270
        %v675 = vunpack.c.l.b16 %v271
        %v676 = vunpack.c.h.b16 %v271
        %v677 = vunpack.c.l.b16 %v272
        %v678 = vunpack.c.h.b16 %v272
        %v679 = vunpack.c.l.b16 %v273
        %v680 = vunpack.c.h.b16 %v273
        %v681 = vunpack.c.l.b16 %v274
        %v682 = vunpack.c.h.b16 %v274
        %v683 = vunpack.c.l.b16 %v275
        %v684 = vunpack.c.h.b16 %v275
        %v685 = vunpack.c.l.b16 %v276
        %v686 = vunpack.c.h.b16 %v276
        %v687 = vunpack.c.l.b16 %v277
        %v688 = vunpack.c.h.b16 %v277
        %v689 = vunpack.c.l.b16 %v278
        %v690 = vunpack.c.h.b16 %v278
        %v691 = vunpack.c.l.b16 %v279
        %v692 = vunpack.c.h.b16 %v279
        %v693 = vunpack.c.l.b16 %v280
        %v694 = vunpack.c.h.b16 %v280
        %v695 = vunpack.c.l.b16 %v281
        %v696 = vunpack.c.h.b16 %v281
        %v697 = vunpack.c.l.b16 %v282
        %v698 = vunpack.c.h.b16 %v282
        %v699 = vunpack.c.l.b16 %v283
        %v700 = vunpack.c.h.b16 %v283
        %v701 = vunpack.c.l.b16 %v284
        %v702 = vunpack.c.h.b16 %v284
        %v703 = vunpack.c.l.b16 %v285
        %v704 = vunpack.c.h.b16 %v285
        %v705 = vunpack.c.l.b16 %v286
        %v706 = vunpack.c.h.b16 %v286
        %v707 = vunpack.c.l.b16 %v287
        %v708 = vunpack.c.h.b16 %v287
        %v709 = vunpack.c.l.b16 %v288
        %v710 = vunpack.c.h.b16 %v288
        %v711 = vunpack.c.l.b16 %v289
        %v712 = vunpack.c.h.b16 %v289
        %v713 = vunpack.c.l.b16 %v290
        %v714 = vunpack.c.h.b16 %v290
        %v715 = vunpack.c.l.b16 %v291
        %v716 = vunpack.c.h.b16 %v291
        %v717 = vunpack.c.l.b16 %v292
        %v718 = vunpack.c.h.b16 %v292
        %v719 = vunpack.c.l.b16 %v293
        %v720 = vunpack.c.h.b16 %v293
        %v721 = vunpack.c.l.b16 %v294
        %v722 = vunpack.c.h.b16 %v294
        %v723 = vunpack.c.l.b16 %v295
        %v724 = vunpack.c.h.b16 %v295
        %v725 = vunpack.c.l.b16 %v296
        %v726 = vunpack.c.h.b16 %v296
        %v727 = vunpack.c.l.b16 %v297
        %v728 = vunpack.c.h.b16 %v297
        %v729 = vunpack.c.l.b16 %v298
        %v730 = vunpack.c.h.b16 %v298
        %v731 = vunpack.c.l.b16 %v299
        %v732 = vunpack.c.h.b16 %v299
        %v733 = vunpack.c.l.b16 %v300
        %v734 = vunpack.c.h.b16 %v300
        %v735 = vunpack.c.l.b16 %v301
        %v736 = vunpack.c.h.b16 %v301
        %v737 = vunpack.c.l.b16 %v302
        %v738 = vunpack.c.h.b16 %v302
        %v739 = vunpack.c.l.b16 %v303
        %v740 = vunpack.c.h.b16 %v303
        %v741 = vunpack.c.l.b16 %v304
        %v742 = vunpack.c.h.b16 %v304
        %v743 = vunpack.c.l.b16 %v305
        %v744 = vunpack.c.h.b16 %v305
        %v745 = vunpack.c.l.b16 %v306
        %v746 = vunpack.c.h.b16 %v306
        %v747 = vunpack.c.l.b16 %v307
        %v748 = vunpack.c.h.b16 %v307
        %v749 = vunpack.c.l.b16 %v308
        %v750 = vunpack.c.h.b16 %v308
        %v751 = vunpack.c.l.b16 %v309
        %v752 = vunpack.c.h.b16 %v309
        %v753 = vunpack.c.l.b16 %v310
        %v754 = vunpack.c.h.b16 %v310
        %v755 = vunpack.c.l.b16 %v311
        %v756 = vunpack.c.h.b16 %v311
        %v757 = vunpack.c.l.b16 %v312
        %v758 = vunpack.c.h.b16 %v312
        %v759 = vunpack.c.l.b16 %v313
        %v760 = vunpack.c.h.b16 %v313
        %v761 = vunpack.c.l.b16 %v314
        %v762 = vunpack.c.h.b16 %v314
        %v763 = vunpack.c.l.b16 %v315
        %v764 = vunpack.c.h.b16 %v315
        %v765 = vunpack.c.l.b16 %v316
        %v766 = vunpack.c.h.b16 %v316
        %v767 = vunpack.c.l.b16 %v317
        %v768 = vunpack.c.h.b16 %v317
        %v769 = vunpack.c.l.b16 %v318
        %v770 = vunpack.c.h.b16 %v318
        %v771 = vunpack.c.l.b16 %v319
        %v772 = vunpack.c.h.b16 %v319
        %v773 = vunpack.c.l.b16 %v320
        %v774 = vunpack.c.h.b16 %v320
        %v775 = vunpack.c.l.b16 %v321
        %v776 = vunpack.c.h.b16 %v321
        %v777 = vunpack.c.l.b16 %v322
        %v778 = vunpack.c.h.b16 %v322
        %v779 = vunpack.c.l.b16 %v323
        %v780 = vunpack.c.h.b16 %v323
        %v781 = vunpack.c.l.b16 %v324
        %v782 = vunpack.c.h.b16 %v324
        %v783 = vunpack.c.l.b16 %v325
        %v784 = vunpack.c.h.b16 %v325
        %v785 = vunpack.c.l.b16 %v326
        %v786 = vunpack.c.h.b16 %v326
        %v787 = vunpack.c.l.b16 %v327
        %v788 = vunpack.c.h.b16 %v327
        %v789 = vunpack.c.l.b16 %v328
        %v790 = vunpack.c.h.b16 %v328
        %v791 = vunpack.c.l.b16 %v329
        %v792 = vunpack.c.h.b16 %v329
        %v793 = vunpack.c.l.b16 %v330
        %v794 = vunpack.c.h.b16 %v330
        %v795 = vunpack.c.l.b16 %v331
        %v796 = vunpack.c.h.b16 %v331
        %v797 = vunpack.c.l.b16 %v332
        %v798 = vunpack.c.h.b16 %v332
        %v799 = vunpack.c.l.b16 %v333
        %v800 = vunpack.c.h.b16 %v333
        %v801 = vunpack.c.l.b16 %v334
        %v802 = vunpack.c.h.b16 %v334
        %v803 = vunpack.c.l.b16 %v335
        %v804 = vunpack.c.h.b16 %v335
        %v805 = vunpack.c.l.b16 %v336
        %v806 = vunpack.c.h.b16 %v336
        %v807 = vunpack.c.l.b16 %v337
        %v808 = vunpack.c.h.b16 %v337
        %v809 = vunpack.c.l.b16 %v338
        %v810 = vunpack.c.h.b16 %v338
        %v811 = vunpack.c.l.b16 %v339
        %v812 = vunpack.c.h.b16 %v339
        %v813 = vunpack.c.l.b16 %v340
        %v814 = vunpack.c.h.b16 %v340
        %v815 = vunpack.c.l.b16 %v341
        %v816 = vunpack.c.h.b16 %v341
        %v817 = vunpack.c.l.b16 %v342
        %v818 = vunpack.c.h.b16 %v342
        %v819 = vunpack.c.l.b16 %v343
        %v820 = vunpack.c.h.b16 %v343
        %v821 = vunpack.c.l.b16 %v344
        %v822 = vunpack.c.h.b16 %v344
        %v823 = vunpack.c.l.b16 %v345
        %v824 = vunpack.c.h.b16 %v345
        %v825 = vunpack.c.l.b16 %v346
        %v826 = vunpack.c.h.b16 %v346
        %v827 = vunpack.c.l.b16 %v347
        %v828 = vunpack.c.h.b16 %v347
        %v829 = vunpack.c.l.b16 %v348
        %v830 = vunpack.c.h.b16 %v348
        %v831 = vunpack.c.l.b16 %v349
        %v832 = vunpack.c.h.b16 %v349
        %v833 = vunpack.c.l.b16 %v350
        %v834 = vunpack.c.h.b16 %v350
        %v835 = vunpack.c.l.b16 %v351
        %v836 = vunpack.c.h.b16 %v351
        %v837 = vunpack.c.l.b16 %v352
        %v838 = vunpack.c.h.b16 %v352
        %v839 = vunpack.c.l.b16 %v353
        %v840 = vunpack.c.h.b16 %v353
        %v841 = vunpack.c.l.b16 %v354
        %v842 = vunpack.c.h.b16 %v354
        %v843 = vunpack.c.l.b16 %v355
        %v844 = vunpack.c.h.b16 %v355
        %v845 = vunpack.c.l.b16 %v356
        %v846 = vunpack.c.h.b16 %v356
        %v847 = vunpack.c.l.b16 %v357
        %v848 = vunpack.c.h.b16 %v357
        %v849 = vunpack.c.l.b16 %v358
        %v850 = vunpack.c.h.b16 %v358
        %v851 = vunpack.c.l.b16 %v359
        %v852 = vunpack.c.h.b16 %v359
        %v853 = vunpack.c.l.b16 %v360
        %v854 = vunpack.c.h.b16 %v360
        %v855 = vunpack.c.l.b16 %v361
        %v856 = vunpack.c.h.b16 %v361
        %v857 = vunpack.c.l.b16 %v362
        %v858 = vunpack.c.h.b16 %v362
        %v859 = vunpack.c.l.b16 %v363
        %v860 = vunpack.c.h.b16 %v363
        %v861 = vunpack.c.l.b16 %v364
        %v862 = vunpack.c.h.b16 %v364
        %v863 = vunpack.c.l.b16 %v365
        %v864 = vunpack.c.h.b16 %v365
        %v865 = vunpack.c.l.b16 %v366
        %v866 = vunpack.c.h.b16 %v366
        %v867 = vunpack.c.l.b16 %v367
        %v868 = vunpack.c.h.b16 %v367
        %v869 = vunpack.c.l.b16 %v368
        %v870 = vunpack.c.h.b16 %v368
        %v871 = vunpack.c.l.b16 %v369
        %v872 = vunpack.c.h.b16 %v369
        %v873 = vunpack.c.l.b16 %v370
        %v874 = vunpack.c.h.b16 %v370
        %v875 = vunpack.c.l.b16 %v371
        %v876 = vunpack.c.h.b16 %v371
        %v877 = vunpack.c.l.b16 %v372
        %v878 = vunpack.c.h.b16 %v372
        %v879 = vpack.c.b16 %v631, %v623
        %v880 = vpack.c.b16 %v632, %v624
        %v881 = vpack.c.b16 %v633, %v625
        %v882 = vpack.c.b16 %v634, %v626
        %v883 = vpack.c.b16 %v635, %v627
        %v884 = vpack.c.b16 %v636, %v628
        %v885 = vpack.c.b16 %v637, %v629
        %v886 = vpack.c.b16 %v638, %v630
        %v887 = vpack.c.b16 %v647, %v639
        %v888 = vpack.c.b16 %v648, %v640
        %v889 = vpack.c.b16 %v649, %v641
        %v890 = vpack.c.b16 %v650, %v642
        %v891 = vpack.c.b16 %v651, %v643
        %v892 = vpack.c.b16 %v652, %v644
        %v893 = vpack.c.b16 %v653, %v645
        %v894 = vpack.c.b16 %v654, %v646
        %v895 = vpack.c.b16 %v663, %v655
        %v896 = vpack.c.b16 %v664, %v656
        %v897 = vpack.c.b16 %v665, %v657
        %v898 = vpack.c.b16 %v666, %v658
        %v899 = vpack.c.b16 %v667, %v659
        %v900 = vpack.c.b16 %v668, %v660
        %v901 = vpack.c.b16 %v669, %v661
        %v902 = vpack.c.b16 %v670, %v662
        %v903 = vpack.c.b16 %v679, %v671
        %v904 = vpack.c.b16 %v680, %v672
        %v905 = vpack.c.b16 %v681, %v673
        %v906 = vpack.c.b16 %v682, %v674
        %v907 = vpack.c.b16 %v683, %v675
        %v908 = vpack.c.b16 %v684, %v676
        %v909 = vpack.c.b16 %v685, %v677
        %v910 = vpack.c.b16 %v686, %v678
        %v911 = vpack.c.b16 %v695, %v687
        %v912 = vpack.c.b16 %v696, %v688
        %v913 = vpack.c.b16 %v697, %v689
        %v914 = vpack.c.b16 %v698, %v690
        %v915 = vpack.c.b16 %v699, %v691
        %v916 = vpack.c.b16 %v700, %v692
        %v917 = vpack.c.b16 %v701, %v693
        %v918 = vpack.c.b16 %v702, %v694
        %v919 = vpack.c.b16 %v711, %v703
        %v920 = vpack.c.b16 %v712, %v704
        %v921 = vpack.c.b16 %v713, %v705
        %v922 = vpack.c.b16 %v714, %v706
        %v923 = vpack.c.b16 %v715, %v707
        %v924 = vpack.c.b16 %v716, %v708
        %v925 = vpack.c.b16 %v717, %v709
        %v926 = vpack.c.b16 %v718, %v710
        %v927 = vpack.c.b16 %v727, %v719
        %v928 = vpack.c.b16 %v728, %v720
        %v929 = vpack.c.b16 %v729, %v721
        %v930 = vpack.c.b16 %v730, %v722
        %v931 = vpack.c.b16 %v731, %v723
        %v932 = vpack.c.b16 %v732, %v724
        %v933 = vpack.c.b16 %v733, %v725
        %v934 = vpack.c.b16 %v734, %v726
        %v935 = vpack.c.b16 %v743, %v735
        %v936 = vpack.c.b16 %v744, %v736
        %v937 = vpack.c.b16 %v745, %v737
        %v938 = vpack.c.b16 %v746, %v738
        %v939 = vpack.c.b16 %v747, %v739
        %v940 = vpack.c.b16 %v748, %v740
        %v941 = vpack.c.b16 %v749, %v741
        %v942 = vpack.c.b16 %v750, %v742
        %v943 = vpack.c.b16 %v759, %v751
        %v944 = vpack.c.b16 %v760, %v752
        %v945 = vpack.c.b16 %v761, %v753
        %v946 = vpack.c.b16 %v762, %v754
        %v947 = vpack.c.b16 %v763, %v755
        %v948 = vpack.c.b16 %v764, %v756
        %v949 = vpack.c.b16 %v765, %v757
        %v950 = vpack.c.b16 %v766, %v758
        %v951 = vpack.c.b16 %v775, %v767
        %v952 = vpack.c.b16 %v776, %v768
        %v953 = vpack.c.b16 %v777, %v769
        %v954 = vpack.c.b16 %v778, %v770
        %v955 = vpack.c.b16 %v779, %v771
        %v956 = vpack.c.b16 %v780, %v772
        %v957 = vpack.c.b16 %v781, %v773
        %v958 = vpack.c.b16 %v782, %v774
        %v959 = vpack.c.b16 %v791, %v783
        %v960 = vpack.c.b16 %v792, %v784
        %v961 = vpack.c.b16 %v793, %v785
        %v962 = vpack.c.b16 %v794, %v786
        %v963 = vpack.c.b16 %v795, %v787
        %v964 = vpack.c.b16 %v796, %v788
        %v965 = vpack.c.b16 %v797, %v789
        %v966 = vpack.c.b16 %v798, %v790
        %v967 = vpack.c.b16 %v807, %v799
        %v968 = vpack.c.b16 %v808, %v800
        %v969 = vpack.c.b16 %v809, %v801
        %v970 = vpack.c.b16 %v810, %v802
        %v971 = vpack.c.b16 %v811, %v803
        %v972 = vpack.c.b16 %v812, %v804
        %v973 = vpack.c.b16 %v813, %v805
        %v974 = vpack.c.b16 %v814, %v806
        %v975 = vpack.c.b16 %v823, %v815
        %v976 = vpack.c.b16 %v824, %v816
        %v977 = vpack.c.b16 %v825, %v817
        %v978 = vpack.c.b16 %v826, %v818
        %v979 = vpack.c.b16 %v827, %v819
        %v980 = vpack.c.b16 %v828, %v820
        %v981 = vpack.c.b16 %v829, %v821
        %v982 = vpack.c.b16 %v830, %v822
        %v983 = vpack.c.b16 %v839, %v831
        %v984 = vpack.c.b16 %v840, %v832
        %v985 = vpack.c.b16 %v841, %v833
        %v986 = vpack.c.b16 %v842, %v834
        %v987 = vpack.c.b16 %v843, %v835
        %v988 = vpack.c.b16 %v844, %v836
        %v989 = vpack.c.b16 %v845, %v837
        %v990 = vpack.c.b16 %v846, %v838
        %v991 = vpack.c.b16 %v855, %v847
        %v992 = vpack.c.b16 %v856, %v848
        %v993 = vpack.c.b16 %v857, %v849
        %v994 = vpack.c.b16 %v858, %v850
        %v995 = vpack.c.b16 %v859, %v851
        %v996 = vpack.c.b16 %v860, %v852
        %v997 = vpack.c.b16 %v861, %v853
        %v998 = vpack.c.b16 %v862, %v854
        %v999 = vpack.c.b16 %v871, %v863
        %v1000 = vpack.c.b16 %v872, %v864
        %v1001 = vpack.c.b16 %v873, %v865
        %v1002 = vpack.c.b16 %v874, %v866
        %v1003 = vpack.c.b16 %v875, %v867
        %v1004 = vpack.c.b16 %v876, %v868
        %v1005 = vpack.c.b16 %v877, %v869
        %v1006 = vpack.c.b16 %v878, %v870
        %1135 = vmatprep.subr.bf16.mxu0 %v936
        %1136 = vmatpush1.bf16.msra.mxu0 %v935
        %1137 = vmatprep.subr.bf16.mxu0 %v928
        %1138 = vmatpush1.bf16.msra.mxu0 %v927
        %1139 = vmatprep.subr.bf16.mxu0 %v920
        %1140 = vmatpush1.bf16.msra.mxu0 %v919
        %1141 = vmatprep.subr.bf16.mxu0 %v912
        %1142 = vmatpush1.bf16.msra.mxu0 %v911
        %1143 = vmatprep.subr.bf16.mxu0 %v904
        %1144 = vmatpush1.bf16.msra.mxu0 %v903
        %1145 = vmatprep.subr.bf16.mxu0 %v896
        %1146 = vmatpush1.bf16.msra.mxu0 %v895
        %1147 = vmatprep.subr.bf16.mxu0 %v888
        %1148 = vmatpush1.bf16.msra.mxu0 %v887
        %1149 = vmatprep.subr.bf16.mxu0 %v880
        %1150 = vmatpush1.bf16.msra.mxu0 %v879
        %1151 = vmatprep.subr.bf16.mxu0 %v1000
        %1152 = vmatpush2.bf16.msra.mxu0 %v999
        %1153 = vmatprep.subr.bf16.mxu0 %v992
        %1154 = vmatpush2.bf16.msra.mxu0 %v991
        %1155 = vmatprep.subr.bf16.mxu0 %v984
        %1156 = vmatpush2.bf16.msra.mxu0 %v983
        %1157 = vmatprep.subr.bf16.mxu0 %v976
        %1158 = vmatpush2.bf16.msra.mxu0 %v975
        %1159 = vmatprep.subr.bf16.mxu0 %v968
        %1160 = vmatpush2.bf16.msra.mxu0 %v967
        %1161 = vmatprep.subr.bf16.mxu0 %v960
        %1162 = vmatpush2.bf16.msra.mxu0 %v959
        %1163 = vmatprep.subr.bf16.mxu0 %v952
        %1164 = vmatpush2.bf16.msra.mxu0 %v951
        %1165 = vmatprep.subr.bf16.mxu0 %v944
        %1166 = vmatpush2.bf16.msra.mxu0 %v943
        %1167 = vmatprep.mubr.bf16.mxu0 %v464
        %1168 = vmatmul.mubr.bf16.gmra.mxu0 %v463
        %v1169 = vpop.f32.mrf.mxu0
        %v1170 = vadd.f32 %v378, %v1169
        %v1171 = vpop.f32.mrf.mxu0
        %v1172 = vadd.f32 %v382, %v1171
        %v1173 = vpop.f32.mrf.mxu0
        %v1174 = vadd.f32 %v378, %v1173
        %v1175 = vpop.f32.mrf.mxu0
        %v1176 = vadd.f32 %v382, %v1175
        %1177 = vmatprep.mubr.bf16.mxu0 %v466
        %1178 = vmatmul.mubr.bf16.gmra.mxu0 %v465
        %v1179 = vpop.f32.mrf.mxu0
        %v1180 = vadd.f32 %v378, %v1179
        %v1181 = vpop.f32.mrf.mxu0
        %v1182 = vadd.f32 %v382, %v1181
        %v1183 = vpop.f32.mrf.mxu0
        %v1184 = vadd.f32 %v378, %v1183
        %v1185 = vpop.f32.mrf.mxu0
        %v1186 = vadd.f32 %v382, %v1185
        %1187 = vmatprep.mubr.bf16.mxu0 %v468
        %1188 = vmatmul.mubr.bf16.gmra.mxu0 %v467
        %v1189 = vpop.f32.mrf.mxu0
        %v1190 = vadd.f32 %v378, %v1189
        %v1191 = vpop.f32.mrf.mxu0
        %v1192 = vadd.f32 %v382, %v1191
        %v1193 = vpop.f32.mrf.mxu0
        %v1194 = vadd.f32 %v378, %v1193
        %v1195 = vpop.f32.mrf.mxu0
        %v1196 = vadd.f32 %v382, %v1195
        %1197 = vmatprep.mubr.bf16.mxu0 %v470
        %1198 = vmatmul.mubr.bf16.gmra.mxu0 %v469
        %v1199 = vpop.f32.mrf.mxu0
        %v1200 = vadd.f32 %v378, %v1199
        %v1201 = vpop.f32.mrf.mxu0
        %v1202 = vadd.f32 %v382, %v1201
        %v1203 = vpop.f32.mrf.mxu0
        %v1204 = vadd.f32 %v378, %v1203
        %v1205 = vpop.f32.mrf.mxu0
        %v1206 = vadd.f32 %v382, %v1205
        %1207 = vmatprep.mubr.bf16.mxu0 %v472
        %1208 = vmatmul.mubr.bf16.gmra.mxu0 %v471
        %v1209 = vpop.f32.mrf.mxu0
        %v1210 = vadd.f32 %v378, %v1209
        %v1211 = vpop.f32.mrf.mxu0
        %v1212 = vadd.f32 %v382, %v1211
        %v1213 = vpop.f32.mrf.mxu0
        %v1214 = vadd.f32 %v378, %v1213
        %v1215 = vpop.f32.mrf.mxu0
        %v1216 = vadd.f32 %v382, %v1215
        %1217 = vmatprep.mubr.bf16.mxu0 %v474
        %1218 = vmatmul.mubr.bf16.gmra.mxu0 %v473
        %v1219 = vpop.f32.mrf.mxu0
        %v1220 = vadd.f32 %v378, %v1219
        %v1221 = vpop.f32.mrf.mxu0
        %v1222 = vadd.f32 %v382, %v1221
        %v1223 = vpop.f32.mrf.mxu0
        %v1224 = vadd.f32 %v378, %v1223
        %v1225 = vpop.f32.mrf.mxu0
        %v1226 = vadd.f32 %v382, %v1225
        %1227 = vmatprep.mubr.bf16.mxu0 %v476
        %1228 = vmatmul.mubr.bf16.gmra.mxu0 %v475
        %v1229 = vpop.f32.mrf.mxu0
        %v1230 = vadd.f32 %v378, %v1229
        %v1231 = vpop.f32.mrf.mxu0
        %v1232 = vadd.f32 %v382, %v1231
        %v1233 = vpop.f32.mrf.mxu0
        %v1234 = vadd.f32 %v378, %v1233
        %v1235 = vpop.f32.mrf.mxu0
        %v1236 = vadd.f32 %v382, %v1235
        %1237 = vmatprep.mubr.bf16.mxu0 %v478
        %1238 = vmatmul.mubr.bf16.gmra.mxu0 %v477
        %v1239 = vpop.f32.mrf.mxu0
        %v1240 = vadd.f32 %v378, %v1239
        %v1241 = vpop.f32.mrf.mxu0
        %v1242 = vadd.f32 %v382, %v1241
        %v1243 = vpop.f32.mrf.mxu0
        %v1244 = vadd.f32 %v378, %v1243
        %v1245 = vpop.f32.mrf.mxu0
        %v1246 = vadd.f32 %v382, %v1245
        %1247 = vdwg.mxu0
        %1248 = vmatprep.subr.bf16.mxu0 %v938
        %1249 = vmatpush1.bf16.msra.mxu0 %v937
        %1250 = vmatprep.subr.bf16.mxu0 %v930
        %1251 = vmatpush1.bf16.msra.mxu0 %v929
        %1252 = vmatprep.subr.bf16.mxu0 %v922
        %1253 = vmatpush1.bf16.msra.mxu0 %v921
        %1254 = vmatprep.subr.bf16.mxu0 %v914
        %1255 = vmatpush1.bf16.msra.mxu0 %v913
        %1256 = vmatprep.subr.bf16.mxu0 %v906
        %1257 = vmatpush1.bf16.msra.mxu0 %v905
        %1258 = vmatprep.subr.bf16.mxu0 %v898
        %1259 = vmatpush1.bf16.msra.mxu0 %v897
        %1260 = vmatprep.subr.bf16.mxu0 %v890
        %1261 = vmatpush1.bf16.msra.mxu0 %v889
        %1262 = vmatprep.subr.bf16.mxu0 %v882
        %1263 = vmatpush1.bf16.msra.mxu0 %v881
        %1264 = vmatprep.subr.bf16.mxu0 %v1002
        %1265 = vmatpush2.bf16.msra.mxu0 %v1001
        %1266 = vmatprep.subr.bf16.mxu0 %v994
        %1267 = vmatpush2.bf16.msra.mxu0 %v993
        %1268 = vmatprep.subr.bf16.mxu0 %v986
        %1269 = vmatpush2.bf16.msra.mxu0 %v985
        %1270 = vmatprep.subr.bf16.mxu0 %v978
        %1271 = vmatpush2.bf16.msra.mxu0 %v977
        %1272 = vmatprep.subr.bf16.mxu0 %v970
        %1273 = vmatpush2.bf16.msra.mxu0 %v969
        %1274 = vmatprep.subr.bf16.mxu0 %v962
        %1275 = vmatpush2.bf16.msra.mxu0 %v961
        %1276 = vmatprep.subr.bf16.mxu0 %v954
        %1277 = vmatpush2.bf16.msra.mxu0 %v953
        %1278 = vmatprep.subr.bf16.mxu0 %v946
        %1279 = vmatpush2.bf16.msra.mxu0 %v945
        %1280 = vmatprep.mubr.bf16.mxu0 %v464
        %1281 = vmatmul.mubr.bf16.gmra.mxu0 %v463
        %v1282 = vpop.f32.mrf.mxu0
        %v1283 = vadd.f32 %v386, %v1282
        %v1284 = vpop.f32.mrf.mxu0
        %v1285 = vadd.f32 %v390, %v1284
        %v1286 = vpop.f32.mrf.mxu0
        %v1287 = vadd.f32 %v386, %v1286
        %v1288 = vpop.f32.mrf.mxu0
        %v1289 = vadd.f32 %v390, %v1288
        %1290 = vmatprep.mubr.bf16.mxu0 %v466
        %1291 = vmatmul.mubr.bf16.gmra.mxu0 %v465
        %v1292 = vpop.f32.mrf.mxu0
        %v1293 = vadd.f32 %v386, %v1292
        %v1294 = vpop.f32.mrf.mxu0
        %v1295 = vadd.f32 %v390, %v1294
        %v1296 = vpop.f32.mrf.mxu0
        %v1297 = vadd.f32 %v386, %v1296
        %v1298 = vpop.f32.mrf.mxu0
        %v1299 = vadd.f32 %v390, %v1298
        %1300 = vmatprep.mubr.bf16.mxu0 %v468
        %1301 = vmatmul.mubr.bf16.gmra.mxu0 %v467
        %v1302 = vpop.f32.mrf.mxu0
        %v1303 = vadd.f32 %v386, %v1302
        %v1304 = vpop.f32.mrf.mxu0
        %v1305 = vadd.f32 %v390, %v1304
        %v1306 = vpop.f32.mrf.mxu0
        %v1307 = vadd.f32 %v386, %v1306
        %v1308 = vpop.f32.mrf.mxu0
        %v1309 = vadd.f32 %v390, %v1308
        %1310 = vmatprep.mubr.bf16.mxu0 %v470
        %1311 = vmatmul.mubr.bf16.gmra.mxu0 %v469
        %v1312 = vpop.f32.mrf.mxu0
        %v1313 = vadd.f32 %v386, %v1312
        %v1314 = vpop.f32.mrf.mxu0
        %v1315 = vadd.f32 %v390, %v1314
        %v1316 = vpop.f32.mrf.mxu0
        %v1317 = vadd.f32 %v386, %v1316
        %v1318 = vpop.f32.mrf.mxu0
        %v1319 = vadd.f32 %v390, %v1318
        %1320 = vmatprep.mubr.bf16.mxu0 %v472
        %1321 = vmatmul.mubr.bf16.gmra.mxu0 %v471
        %v1322 = vpop.f32.mrf.mxu0
        %v1323 = vadd.f32 %v386, %v1322
        %v1324 = vpop.f32.mrf.mxu0
        %v1325 = vadd.f32 %v390, %v1324
        %v1326 = vpop.f32.mrf.mxu0
        %v1327 = vadd.f32 %v386, %v1326
        %v1328 = vpop.f32.mrf.mxu0
        %v1329 = vadd.f32 %v390, %v1328
        %1330 = vmatprep.mubr.bf16.mxu0 %v474
        %1331 = vmatmul.mubr.bf16.gmra.mxu0 %v473
        %v1332 = vpop.f32.mrf.mxu0
        %v1333 = vadd.f32 %v386, %v1332
        %v1334 = vpop.f32.mrf.mxu0
        %v1335 = vadd.f32 %v390, %v1334
        %v1336 = vpop.f32.mrf.mxu0
        %v1337 = vadd.f32 %v386, %v1336
        %v1338 = vpop.f32.mrf.mxu0
        %v1339 = vadd.f32 %v390, %v1338
        %1340 = vmatprep.mubr.bf16.mxu0 %v476
        %1341 = vmatmul.mubr.bf16.gmra.mxu0 %v475
        %v1342 = vpop.f32.mrf.mxu0
        %v1343 = vadd.f32 %v386, %v1342
        %v1344 = vpop.f32.mrf.mxu0
        %v1345 = vadd.f32 %v390, %v1344
        %v1346 = vpop.f32.mrf.mxu0
        %v1347 = vadd.f32 %v386, %v1346
        %v1348 = vpop.f32.mrf.mxu0
        %v1349 = vadd.f32 %v390, %v1348
        %1350 = vmatprep.mubr.bf16.mxu0 %v478
        %1351 = vmatmul.mubr.bf16.gmra.mxu0 %v477
        %v1352 = vpop.f32.mrf.mxu0
        %v1353 = vadd.f32 %v386, %v1352
        %v1354 = vpop.f32.mrf.mxu0
        %v1355 = vadd.f32 %v390, %v1354
        %v1356 = vpop.f32.mrf.mxu0
        %v1357 = vadd.f32 %v386, %v1356
        %v1358 = vpop.f32.mrf.mxu0
        %v1359 = vadd.f32 %v390, %v1358
        %1360 = vdwg.mxu0
        %1361 = vmatprep.subr.bf16.mxu0 %v940
        %1362 = vmatpush1.bf16.msra.mxu0 %v939
        %1363 = vmatprep.subr.bf16.mxu0 %v932
        %1364 = vmatpush1.bf16.msra.mxu0 %v931
        %1365 = vmatprep.subr.bf16.mxu0 %v924
        %1366 = vmatpush1.bf16.msra.mxu0 %v923
        %1367 = vmatprep.subr.bf16.mxu0 %v916
        %1368 = vmatpush1.bf16.msra.mxu0 %v915
        %1369 = vmatprep.subr.bf16.mxu0 %v908
        %1370 = vmatpush1.bf16.msra.mxu0 %v907
        %1371 = vmatprep.subr.bf16.mxu0 %v900
        %1372 = vmatpush1.bf16.msra.mxu0 %v899
        %1373 = vmatprep.subr.bf16.mxu0 %v892
        %1374 = vmatpush1.bf16.msra.mxu0 %v891
        %1375 = vmatprep.subr.bf16.mxu0 %v884
        %1376 = vmatpush1.bf16.msra.mxu0 %v883
        %1377 = vmatprep.subr.bf16.mxu0 %v1004
        %1378 = vmatpush2.bf16.msra.mxu0 %v1003
        %1379 = vmatprep.subr.bf16.mxu0 %v996
        %1380 = vmatpush2.bf16.msra.mxu0 %v995
        %1381 = vmatprep.subr.bf16.mxu0 %v988
        %1382 = vmatpush2.bf16.msra.mxu0 %v987
        %1383 = vmatprep.subr.bf16.mxu0 %v980
        %1384 = vmatpush2.bf16.msra.mxu0 %v979
        %1385 = vmatprep.subr.bf16.mxu0 %v972
        %1386 = vmatpush2.bf16.msra.mxu0 %v971
        %1387 = vmatprep.subr.bf16.mxu0 %v964
        %1388 = vmatpush2.bf16.msra.mxu0 %v963
        %1389 = vmatprep.subr.bf16.mxu0 %v956
        %1390 = vmatpush2.bf16.msra.mxu0 %v955
        %1391 = vmatprep.subr.bf16.mxu0 %v948
        %1392 = vmatpush2.bf16.msra.mxu0 %v947
        %1393 = vmatprep.mubr.bf16.mxu0 %v464
        %1394 = vmatmul.mubr.bf16.gmra.mxu0 %v463
        %v1395 = vpop.f32.mrf.mxu0
        %v1396 = vadd.f32 %v394, %v1395
        %v1397 = vpop.f32.mrf.mxu0
        %v1398 = vadd.f32 %v398, %v1397
        %v1399 = vpop.f32.mrf.mxu0
        %v1400 = vadd.f32 %v394, %v1399
        %v1401 = vpop.f32.mrf.mxu0
        %v1402 = vadd.f32 %v398, %v1401
        %1403 = vmatprep.mubr.bf16.mxu0 %v466
        %1404 = vmatmul.mubr.bf16.gmra.mxu0 %v465
        %v1405 = vpop.f32.mrf.mxu0
        %v1406 = vadd.f32 %v394, %v1405
        %v1407 = vpop.f32.mrf.mxu0
        %v1408 = vadd.f32 %v398, %v1407
        %v1409 = vpop.f32.mrf.mxu0
        %v1410 = vadd.f32 %v394, %v1409
        %v1411 = vpop.f32.mrf.mxu0
        %v1412 = vadd.f32 %v398, %v1411
        %1413 = vmatprep.mubr.bf16.mxu0 %v468
        %1414 = vmatmul.mubr.bf16.gmra.mxu0 %v467
        %v1415 = vpop.f32.mrf.mxu0
        %v1416 = vadd.f32 %v394, %v1415
        %v1417 = vpop.f32.mrf.mxu0
        %v1418 = vadd.f32 %v398, %v1417
        %v1419 = vpop.f32.mrf.mxu0
        %v1420 = vadd.f32 %v394, %v1419
        %v1421 = vpop.f32.mrf.mxu0
        %v1422 = vadd.f32 %v398, %v1421
        %1423 = vmatprep.mubr.bf16.mxu0 %v470
        %1424 = vmatmul.mubr.bf16.gmra.mxu0 %v469
        %v1425 = vpop.f32.mrf.mxu0
        %v1426 = vadd.f32 %v394, %v1425
        %v1427 = vpop.f32.mrf.mxu0
        %v1428 = vadd.f32 %v398, %v1427
        %v1429 = vpop.f32.mrf.mxu0
        %v1430 = vadd.f32 %v394, %v1429
        %v1431 = vpop.f32.mrf.mxu0
        %v1432 = vadd.f32 %v398, %v1431
        %1433 = vmatprep.mubr.bf16.mxu0 %v472
        %1434 = vmatmul.mubr.bf16.gmra.mxu0 %v471
        %v1435 = vpop.f32.mrf.mxu0
        %v1436 = vadd.f32 %v394, %v1435
        %v1437 = vpop.f32.mrf.mxu0
        %v1438 = vadd.f32 %v398, %v1437
        %v1439 = vpop.f32.mrf.mxu0
        %v1440 = vadd.f32 %v394, %v1439
        %v1441 = vpop.f32.mrf.mxu0
        %v1442 = vadd.f32 %v398, %v1441
        %1443 = vmatprep.mubr.bf16.mxu0 %v474
        %1444 = vmatmul.mubr.bf16.gmra.mxu0 %v473
        %v1445 = vpop.f32.mrf.mxu0
        %v1446 = vadd.f32 %v394, %v1445
        %v1447 = vpop.f32.mrf.mxu0
        %v1448 = vadd.f32 %v398, %v1447
        %v1449 = vpop.f32.mrf.mxu0
        %v1450 = vadd.f32 %v394, %v1449
        %v1451 = vpop.f32.mrf.mxu0
        %v1452 = vadd.f32 %v398, %v1451
        %1453 = vmatprep.mubr.bf16.mxu0 %v476
        %1454 = vmatmul.mubr.bf16.gmra.mxu0 %v475
        %v1455 = vpop.f32.mrf.mxu0
        %v1456 = vadd.f32 %v394, %v1455
        %v1457 = vpop.f32.mrf.mxu0
        %v1458 = vadd.f32 %v398, %v1457
        %v1459 = vpop.f32.mrf.mxu0
        %v1460 = vadd.f32 %v394, %v1459
        %v1461 = vpop.f32.mrf.mxu0
        %v1462 = vadd.f32 %v398, %v1461
        %1463 = vmatprep.mubr.bf16.mxu0 %v478
        %1464 = vmatmul.mubr.bf16.gmra.mxu0 %v477
        %v1465 = vpop.f32.mrf.mxu0
        %v1466 = vadd.f32 %v394, %v1465
        %v1467 = vpop.f32.mrf.mxu0
        %v1468 = vadd.f32 %v398, %v1467
        %v1469 = vpop.f32.mrf.mxu0
        %v1470 = vadd.f32 %v394, %v1469
        %v1471 = vpop.f32.mrf.mxu0
        %v1472 = vadd.f32 %v398, %v1471
        %1473 = vdwg.mxu0
        %1474 = vmatprep.subr.bf16.mxu0 %v942
        %1475 = vmatpush1.bf16.msra.mxu0 %v941
        %1476 = vmatprep.subr.bf16.mxu0 %v934
        %1477 = vmatpush1.bf16.msra.mxu0 %v933
        %1478 = vmatprep.subr.bf16.mxu0 %v926
        %1479 = vmatpush1.bf16.msra.mxu0 %v925
        %1480 = vmatprep.subr.bf16.mxu0 %v918
        %1481 = vmatpush1.bf16.msra.mxu0 %v917
        %1482 = vmatprep.subr.bf16.mxu0 %v910
        %1483 = vmatpush1.bf16.msra.mxu0 %v909
        %1484 = vmatprep.subr.bf16.mxu0 %v902
        %1485 = vmatpush1.bf16.msra.mxu0 %v901
        %1486 = vmatprep.subr.bf16.mxu0 %v894
        %1487 = vmatpush1.bf16.msra.mxu0 %v893
        %1488 = vmatprep.subr.bf16.mxu0 %v886
        %1489 = vmatpush1.bf16.msra.mxu0 %v885
        %1490 = vmatprep.subr.bf16.mxu0 %v1006
        %1491 = vmatpush2.bf16.msra.mxu0 %v1005
        %1492 = vmatprep.subr.bf16.mxu0 %v998
        %1493 = vmatpush2.bf16.msra.mxu0 %v997
        %1494 = vmatprep.subr.bf16.mxu0 %v990
        %1495 = vmatpush2.bf16.msra.mxu0 %v989
        %1496 = vmatprep.subr.bf16.mxu0 %v982
        %1497 = vmatpush2.bf16.msra.mxu0 %v981
        %1498 = vmatprep.subr.bf16.mxu0 %v974
        %1499 = vmatpush2.bf16.msra.mxu0 %v973
        %1500 = vmatprep.subr.bf16.mxu0 %v966
        %1501 = vmatpush2.bf16.msra.mxu0 %v965
        %1502 = vmatprep.subr.bf16.mxu0 %v958
        %1503 = vmatpush2.bf16.msra.mxu0 %v957
        %1504 = vmatprep.subr.bf16.mxu0 %v950
        %1505 = vmatpush2.bf16.msra.mxu0 %v949
        %1506 = vmatprep.mubr.bf16.mxu0 %v464
        %1507 = vmatmul.mubr.bf16.gmra.mxu0 %v463
        %v1508 = vpop.f32.mrf.mxu0
        %v1509 = vadd.f32 %v402, %v1508
        %v1510 = vpop.f32.mrf.mxu0
        %v1511 = vadd.f32 %v406, %v1510
        %v1512 = vpop.f32.mrf.mxu0
        %v1513 = vadd.f32 %v402, %v1512
        %v1514 = vpop.f32.mrf.mxu0
        %v1515 = vadd.f32 %v406, %v1514
        %1516 = vmatprep.mubr.bf16.mxu0 %v466
        %1517 = vmatmul.mubr.bf16.gmra.mxu0 %v465
        %v1518 = vpop.f32.mrf.mxu0
        %v1519 = vadd.f32 %v402, %v1518
        %v1520 = vpop.f32.mrf.mxu0
        %v1521 = vadd.f32 %v406, %v1520
        %v1522 = vpop.f32.mrf.mxu0
        %v1523 = vadd.f32 %v402, %v1522
        %v1524 = vpop.f32.mrf.mxu0
        %v1525 = vadd.f32 %v406, %v1524
        %1526 = vmatprep.mubr.bf16.mxu0 %v468
        %1527 = vmatmul.mubr.bf16.gmra.mxu0 %v467
        %v1528 = vpop.f32.mrf.mxu0
        %v1529 = vadd.f32 %v402, %v1528
        %v1530 = vpop.f32.mrf.mxu0
        %v1531 = vadd.f32 %v406, %v1530
        %v1532 = vpop.f32.mrf.mxu0
        %v1533 = vadd.f32 %v402, %v1532
        %v1534 = vpop.f32.mrf.mxu0
        %v1535 = vadd.f32 %v406, %v1534
        %1536 = vmatprep.mubr.bf16.mxu0 %v470
        %1537 = vmatmul.mubr.bf16.gmra.mxu0 %v469
        %v1538 = vpop.f32.mrf.mxu0
        %v1539 = vadd.f32 %v402, %v1538
        %v1540 = vpop.f32.mrf.mxu0
        %v1541 = vadd.f32 %v406, %v1540
        %v1542 = vpop.f32.mrf.mxu0
        %v1543 = vadd.f32 %v402, %v1542
        %v1544 = vpop.f32.mrf.mxu0
        %v1545 = vadd.f32 %v406, %v1544
        %1546 = vmatprep.mubr.bf16.mxu0 %v472
        %1547 = vmatmul.mubr.bf16.gmra.mxu0 %v471
        %v1548 = vpop.f32.mrf.mxu0
        %v1549 = vadd.f32 %v402, %v1548
        %v1550 = vpop.f32.mrf.mxu0
        %v1551 = vadd.f32 %v406, %v1550
        %v1552 = vpop.f32.mrf.mxu0
        %v1553 = vadd.f32 %v402, %v1552
        %v1554 = vpop.f32.mrf.mxu0
        %v1555 = vadd.f32 %v406, %v1554
        %1556 = vmatprep.mubr.bf16.mxu0 %v474
        %1557 = vmatmul.mubr.bf16.gmra.mxu0 %v473
        %v1558 = vpop.f32.mrf.mxu0
        %v1559 = vadd.f32 %v402, %v1558
        %v1560 = vpop.f32.mrf.mxu0
        %v1561 = vadd.f32 %v406, %v1560
        %v1562 = vpop.f32.mrf.mxu0
        %v1563 = vadd.f32 %v402, %v1562
        %v1564 = vpop.f32.mrf.mxu0
        %v1565 = vadd.f32 %v406, %v1564
        %1566 = vmatprep.mubr.bf16.mxu0 %v476
        %1567 = vmatmul.mubr.bf16.gmra.mxu0 %v475
        %v1568 = vpop.f32.mrf.mxu0
        %v1569 = vadd.f32 %v402, %v1568
        %v1570 = vpop.f32.mrf.mxu0
        %v1571 = vadd.f32 %v406, %v1570
        %v1572 = vpop.f32.mrf.mxu0
        %v1573 = vadd.f32 %v402, %v1572
        %v1574 = vpop.f32.mrf.mxu0
        %v1575 = vadd.f32 %v406, %v1574
        %1576 = vmatprep.mubr.bf16.mxu0 %v478
        %1577 = vmatmul.mubr.bf16.gmra.mxu0 %v477
        %v1578 = vpop.f32.mrf.mxu0
        %v1579 = vadd.f32 %v402, %v1578
        %v1580 = vpop.f32.mrf.mxu0
        %v1581 = vadd.f32 %v406, %v1580
        %v1582 = vpop.f32.mrf.mxu0
        %v1583 = vadd.f32 %v402, %v1582
        %v1584 = vpop.f32.mrf.mxu0
        %v1585 = vadd.f32 %v406, %v1584
        %1586 = vdwg.mxu0
        %v1587 = vmul.f32 %v1170, 0.70710677
        %v1588 = vmul.f32 %v1172, 0.70710677
        %v1589 = vmul.f32 %v1283, 0.70710677
        %v1590 = vmul.f32 %v1285, 0.70710677
        %v1591 = vmul.f32 %v1396, 0.70710677
        %v1592 = vmul.f32 %v1398, 0.70710677
        %v1593 = vmul.f32 %v1509, 0.70710677
        %v1594 = vmul.f32 %v1511, 0.70710677
        %v1595 = vmul.f32 %v1174, 0.70710677
        %v1596 = vmul.f32 %v1176, 0.70710677
        %v1597 = vmul.f32 %v1287, 0.70710677
        %v1598 = vmul.f32 %v1289, 0.70710677
        %v1599 = vmul.f32 %v1400, 0.70710677
        %v1600 = vmul.f32 %v1402, 0.70710677
        %v1601 = vmul.f32 %v1513, 0.70710677
        %v1602 = vmul.f32 %v1515, 0.70710677
        %v1603 = vmul.f32 %v1180, 0.70710677
        %v1604 = vmul.f32 %v1182, 0.70710677
        %v1605 = vmul.f32 %v1293, 0.70710677
        %v1606 = vmul.f32 %v1295, 0.70710677
        %v1607 = vmul.f32 %v1406, 0.70710677
        %v1608 = vmul.f32 %v1408, 0.70710677
        %v1609 = vmul.f32 %v1519, 0.70710677
        %v1610 = vmul.f32 %v1521, 0.70710677
        %v1611 = vmul.f32 %v1184, 0.70710677
        %v1612 = vmul.f32 %v1186, 0.70710677
        %v1613 = vmul.f32 %v1297, 0.70710677
        %v1614 = vmul.f32 %v1299, 0.70710677
        %v1615 = vmul.f32 %v1410, 0.70710677
        %v1616 = vmul.f32 %v1412, 0.70710677
        %v1617 = vmul.f32 %v1523, 0.70710677
        %v1618 = vmul.f32 %v1525, 0.70710677
        %v1619 = vmul.f32 %v1190, 0.70710677
        %v1620 = vmul.f32 %v1192, 0.70710677
        %v1621 = vmul.f32 %v1303, 0.70710677
        %v1622 = vmul.f32 %v1305, 0.70710677
        %v1623 = vmul.f32 %v1416, 0.70710677
        %v1624 = vmul.f32 %v1418, 0.70710677
        %v1625 = vmul.f32 %v1529, 0.70710677
        %v1626 = vmul.f32 %v1531, 0.70710677
        %v1627 = vmul.f32 %v1194, 0.70710677
        %v1628 = vmul.f32 %v1196, 0.70710677
        %v1629 = vmul.f32 %v1307, 0.70710677
        %v1630 = vmul.f32 %v1309, 0.70710677
        %v1631 = vmul.f32 %v1420, 0.70710677
        %v1632 = vmul.f32 %v1422, 0.70710677
        %v1633 = vmul.f32 %v1533, 0.70710677
        %v1634 = vmul.f32 %v1535, 0.70710677
        %v1635 = vmul.f32 %v1200, 0.70710677
        %v1636 = vmul.f32 %v1202, 0.70710677
        %v1637 = vmul.f32 %v1313, 0.70710677
        %v1638 = vmul.f32 %v1315, 0.70710677
        %v1639 = vmul.f32 %v1426, 0.70710677
        %v1640 = vmul.f32 %v1428, 0.70710677
        %v1641 = vmul.f32 %v1539, 0.70710677
        %v1642 = vmul.f32 %v1541, 0.70710677
        %v1643 = vmul.f32 %v1204, 0.70710677
        %v1644 = vmul.f32 %v1206, 0.70710677
        %v1645 = vmul.f32 %v1317, 0.70710677
        %v1646 = vmul.f32 %v1319, 0.70710677
        %v1647 = vmul.f32 %v1430, 0.70710677
        %v1648 = vmul.f32 %v1432, 0.70710677
        %v1649 = vmul.f32 %v1543, 0.70710677
        %v1650 = vmul.f32 %v1545, 0.70710677
        %v1651 = vmul.f32 %v1210, 0.70710677
        %v1652 = vmul.f32 %v1212, 0.70710677
        %v1653 = vmul.f32 %v1323, 0.70710677
        %v1654 = vmul.f32 %v1325, 0.70710677
        %v1655 = vmul.f32 %v1436, 0.70710677
        %v1656 = vmul.f32 %v1438, 0.70710677
        %v1657 = vmul.f32 %v1549, 0.70710677
        %v1658 = vmul.f32 %v1551, 0.70710677
        %v1659 = vmul.f32 %v1214, 0.70710677
        %v1660 = vmul.f32 %v1216, 0.70710677
        %v1661 = vmul.f32 %v1327, 0.70710677
        %v1662 = vmul.f32 %v1329, 0.70710677
        %v1663 = vmul.f32 %v1440, 0.70710677
        %v1664 = vmul.f32 %v1442, 0.70710677
        %v1665 = vmul.f32 %v1553, 0.70710677
        %v1666 = vmul.f32 %v1555, 0.70710677
        %v1667 = vmul.f32 %v1220, 0.70710677
        %v1668 = vmul.f32 %v1222, 0.70710677
        %v1669 = vmul.f32 %v1333, 0.70710677
        %v1670 = vmul.f32 %v1335, 0.70710677
        %v1671 = vmul.f32 %v1446, 0.70710677
        %v1672 = vmul.f32 %v1448, 0.70710677
        %v1673 = vmul.f32 %v1559, 0.70710677
        %v1674 = vmul.f32 %v1561, 0.70710677
        %v1675 = vmul.f32 %v1224, 0.70710677
        %v1676 = vmul.f32 %v1226, 0.70710677
        %v1677 = vmul.f32 %v1337, 0.70710677
        %v1678 = vmul.f32 %v1339, 0.70710677
        %v1679 = vmul.f32 %v1450, 0.70710677
        %v1680 = vmul.f32 %v1452, 0.70710677
        %v1681 = vmul.f32 %v1563, 0.70710677
        %v1682 = vmul.f32 %v1565, 0.70710677
        %v1683 = vmul.f32 %v1230, 0.70710677
        %v1684 = vmul.f32 %v1232, 0.70710677
        %v1685 = vmul.f32 %v1343, 0.70710677
        %v1686 = vmul.f32 %v1345, 0.70710677
        %v1687 = vmul.f32 %v1456, 0.70710677
        %v1688 = vmul.f32 %v1458, 0.70710677
        %v1689 = vmul.f32 %v1569, 0.70710677
        %v1690 = vmul.f32 %v1571, 0.70710677
        %v1691 = vmul.f32 %v1234, 0.70710677
        %v1692 = vmul.f32 %v1236, 0.70710677
        %v1693 = vmul.f32 %v1347, 0.70710677
        %v1694 = vmul.f32 %v1349, 0.70710677
        %v1695 = vmul.f32 %v1460, 0.70710677
        %v1696 = vmul.f32 %v1462, 0.70710677
        %v1697 = vmul.f32 %v1573, 0.70710677
        %v1698 = vmul.f32 %v1575, 0.70710677
        %v1699 = vmul.f32 %v1240, 0.70710677
        %v1700 = vmul.f32 %v1242, 0.70710677
        %v1701 = vmul.f32 %v1353, 0.70710677
        %v1702 = vmul.f32 %v1355, 0.70710677
        %v1703 = vmul.f32 %v1466, 0.70710677
        %v1704 = vmul.f32 %v1468, 0.70710677
        %v1705 = vmul.f32 %v1579, 0.70710677
        %v1706 = vmul.f32 %v1581, 0.70710677
        %v1707 = vmul.f32 %v1244, 0.70710677
        %v1708 = vmul.f32 %v1246, 0.70710677
        %v1709 = vmul.f32 %v1357, 0.70710677
        %v1710 = vmul.f32 %v1359, 0.70710677
        %v1711 = vmul.f32 %v1470, 0.70710677
        %v1712 = vmul.f32 %v1472, 0.70710677
        %v1713 = vmul.f32 %v1583, 0.70710677
        %v1714 = vmul.f32 %v1585, 0.70710677
        %v1715 = vand.u32 2147483647, %v1587
        %v1716 = vand.u32 2147483647, %v1588
        %v1717 = vand.u32 2147483647, %v1589
        %v1718 = vand.u32 2147483647, %v1590
        %v1719 = vand.u32 2147483647, %v1591
        %v1720 = vand.u32 2147483647, %v1592
        %v1721 = vand.u32 2147483647, %v1593
        %v1722 = vand.u32 2147483647, %v1594
        %v1723 = vand.u32 2147483647, %v1595
        %v1724 = vand.u32 2147483647, %v1596
        %v1725 = vand.u32 2147483647, %v1597
        %v1726 = vand.u32 2147483647, %v1598
        %v1727 = vand.u32 2147483647, %v1599
        %v1728 = vand.u32 2147483647, %v1600
        %v1729 = vand.u32 2147483647, %v1601
        %v1730 = vand.u32 2147483647, %v1602
        %v1731 = vand.u32 2147483647, %v1603
        %v1732 = vand.u32 2147483647, %v1604
        %v1733 = vand.u32 2147483647, %v1605
        %v1734 = vand.u32 2147483647, %v1606
        %v1735 = vand.u32 2147483647, %v1607
        %v1736 = vand.u32 2147483647, %v1608
        %v1737 = vand.u32 2147483647, %v1609
        %v1738 = vand.u32 2147483647, %v1610
        %v1739 = vand.u32 2147483647, %v1611
        %v1740 = vand.u32 2147483647, %v1612
        %v1741 = vand.u32 2147483647, %v1613
        %v1742 = vand.u32 2147483647, %v1614
        %v1743 = vand.u32 2147483647, %v1615
        %v1744 = vand.u32 2147483647, %v1616
        %v1745 = vand.u32 2147483647, %v1617
        %v1746 = vand.u32 2147483647, %v1618
        %v1747 = vand.u32 2147483647, %v1619
        %v1748 = vand.u32 2147483647, %v1620
        %v1749 = vand.u32 2147483647, %v1621
        %v1750 = vand.u32 2147483647, %v1622
        %v1751 = vand.u32 2147483647, %v1623
        %v1752 = vand.u32 2147483647, %v1624
        %v1753 = vand.u32 2147483647, %v1625
        %v1754 = vand.u32 2147483647, %v1626
        %v1755 = vand.u32 2147483647, %v1627
        %v1756 = vand.u32 2147483647, %v1628
        %v1757 = vand.u32 2147483647, %v1629
        %v1758 = vand.u32 2147483647, %v1630
        %v1759 = vand.u32 2147483647, %v1631
        %v1760 = vand.u32 2147483647, %v1632
        %v1761 = vand.u32 2147483647, %v1633
        %v1762 = vand.u32 2147483647, %v1634
        %v1763 = vand.u32 2147483647, %v1635
        %v1764 = vand.u32 2147483647, %v1636
        %v1765 = vand.u32 2147483647, %v1637
        %v1766 = vand.u32 2147483647, %v1638
        %v1767 = vand.u32 2147483647, %v1639
        %v1768 = vand.u32 2147483647, %v1640
        %v1769 = vand.u32 2147483647, %v1641
        %v1770 = vand.u32 2147483647, %v1642
        %v1771 = vand.u32 2147483647, %v1643
        %v1772 = vand.u32 2147483647, %v1644
        %v1773 = vand.u32 2147483647, %v1645
        %v1774 = vand.u32 2147483647, %v1646
        %v1775 = vand.u32 2147483647, %v1647
        %v1776 = vand.u32 2147483647, %v1648
        %v1777 = vand.u32 2147483647, %v1649
        %v1778 = vand.u32 2147483647, %v1650
        %v1779 = vand.u32 2147483647, %v1651
        %v1780 = vand.u32 2147483647, %v1652
        %v1781 = vand.u32 2147483647, %v1653
        %v1782 = vand.u32 2147483647, %v1654
        %v1783 = vand.u32 2147483647, %v1655
        %v1784 = vand.u32 2147483647, %v1656
        %v1785 = vand.u32 2147483647, %v1657
        %v1786 = vand.u32 2147483647, %v1658
        %v1787 = vand.u32 2147483647, %v1659
        %v1788 = vand.u32 2147483647, %v1660
        %v1789 = vand.u32 2147483647, %v1661
        %v1790 = vand.u32 2147483647, %v1662
        %v1791 = vand.u32 2147483647, %v1663
        %v1792 = vand.u32 2147483647, %v1664
        %v1793 = vand.u32 2147483647, %v1665
        %v1794 = vand.u32 2147483647, %v1666
        %v1795 = vand.u32 2147483647, %v1667
        %v1796 = vand.u32 2147483647, %v1668
        %v1797 = vand.u32 2147483647, %v1669
        %v1798 = vand.u32 2147483647, %v1670
        %v1799 = vand.u32 2147483647, %v1671
        %v1800 = vand.u32 2147483647, %v1672
        %v1801 = vand.u32 2147483647, %v1673
        %v1802 = vand.u32 2147483647, %v1674
        %v1803 = vand.u32 2147483647, %v1675
        %v1804 = vand.u32 2147483647, %v1676
        %v1805 = vand.u32 2147483647, %v1677
        %v1806 = vand.u32 2147483647, %v1678
        %v1807 = vand.u32 2147483647, %v1679
        %v1808 = vand.u32 2147483647, %v1680
        %v1809 = vand.u32 2147483647, %v1681
        %v1810 = vand.u32 2147483647, %v1682
        %v1811 = vand.u32 2147483647, %v1683
        %v1812 = vand.u32 2147483647, %v1684
        %v1813 = vand.u32 2147483647, %v1685
        %v1814 = vand.u32 2147483647, %v1686
        %v1815 = vand.u32 2147483647, %v1687
        %v1816 = vand.u32 2147483647, %v1688
        %v1817 = vand.u32 2147483647, %v1689
        %v1818 = vand.u32 2147483647, %v1690
        %v1819 = vand.u32 2147483647, %v1691
        %v1820 = vand.u32 2147483647, %v1692
        %v1821 = vand.u32 2147483647, %v1693
        %v1822 = vand.u32 2147483647, %v1694
        %v1823 = vand.u32 2147483647, %v1695
        %v1824 = vand.u32 2147483647, %v1696
        %v1825 = vand.u32 2147483647, %v1697
        %v1826 = vand.u32 2147483647, %v1698
        %v1827 = vand.u32 2147483647, %v1699
        %v1828 = vand.u32 2147483647, %v1700
        %v1829 = vand.u32 2147483647, %v1701
        %v1830 = vand.u32 2147483647, %v1702
        %v1831 = vand.u32 2147483647, %v1703
        %v1832 = vand.u32 2147483647, %v1704
        %v1833 = vand.u32 2147483647, %v1705
        %v1834 = vand.u32 2147483647, %v1706
        %v1835 = vand.u32 2147483647, %v1707
        %v1836 = vand.u32 2147483647, %v1708
        %v1837 = vand.u32 2147483647, %v1709
        %v1838 = vand.u32 2147483647, %v1710
        %v1839 = vand.u32 2147483647, %v1711
        %v1840 = vand.u32 2147483647, %v1712
        %v1841 = vand.u32 2147483647, %v1713
        %v1842 = vand.u32 2147483647, %v1714
        %v1843 = vmul.f32 %v1715, 0.3275911
        %v1844 = vmul.f32 %v1716, 0.3275911
        %v1845 = vmul.f32 %v1717, 0.3275911
        %v1846 = vmul.f32 %v1718, 0.3275911
        %v1847 = vmul.f32 %v1719, 0.3275911
        %v1848 = vmul.f32 %v1720, 0.3275911
        %v1849 = vmul.f32 %v1721, 0.3275911
        %v1850 = vmul.f32 %v1722, 0.3275911
        %v1851 = vmul.f32 %v1723, 0.3275911
        %v1852 = vmul.f32 %v1724, 0.3275911
        %v1853 = vmul.f32 %v1725, 0.3275911
        %v1854 = vmul.f32 %v1726, 0.3275911
        %v1855 = vmul.f32 %v1727, 0.3275911
        %v1856 = vmul.f32 %v1728, 0.3275911
        %v1857 = vmul.f32 %v1729, 0.3275911
        %v1858 = vmul.f32 %v1730, 0.3275911
        %v1859 = vmul.f32 %v1731, 0.3275911
        %v1860 = vmul.f32 %v1732, 0.3275911
        %v1861 = vmul.f32 %v1733, 0.3275911
        %v1862 = vmul.f32 %v1734, 0.3275911
        %v1863 = vmul.f32 %v1735, 0.3275911
        %v1864 = vmul.f32 %v1736, 0.3275911
        %v1865 = vmul.f32 %v1737, 0.3275911
        %v1866 = vmul.f32 %v1738, 0.3275911
        %v1867 = vmul.f32 %v1739, 0.3275911
        %v1868 = vmul.f32 %v1740, 0.3275911
        %v1869 = vmul.f32 %v1741, 0.3275911
        %v1870 = vmul.f32 %v1742, 0.3275911
        %v1871 = vmul.f32 %v1743, 0.3275911
        %v1872 = vmul.f32 %v1744, 0.3275911
        %v1873 = vmul.f32 %v1745, 0.3275911
        %v1874 = vmul.f32 %v1746, 0.3275911
        %v1875 = vmul.f32 %v1747, 0.3275911
        %v1876 = vmul.f32 %v1748, 0.3275911
        %v1877 = vmul.f32 %v1749, 0.3275911
        %v1878 = vmul.f32 %v1750, 0.3275911
        %v1879 = vmul.f32 %v1751, 0.3275911
        %v1880 = vmul.f32 %v1752, 0.3275911
        %v1881 = vmul.f32 %v1753, 0.3275911
        %v1882 = vmul.f32 %v1754, 0.3275911
        %v1883 = vmul.f32 %v1755, 0.3275911
        %v1884 = vmul.f32 %v1756, 0.3275911
        %v1885 = vmul.f32 %v1757, 0.3275911
        %v1886 = vmul.f32 %v1758, 0.3275911
        %v1887 = vmul.f32 %v1759, 0.3275911
        %v1888 = vmul.f32 %v1760, 0.3275911
        %v1889 = vmul.f32 %v1761, 0.3275911
        %v1890 = vmul.f32 %v1762, 0.3275911
        %v1891 = vmul.f32 %v1763, 0.3275911
        %v1892 = vmul.f32 %v1764, 0.3275911
        %v1893 = vmul.f32 %v1765, 0.3275911
        %v1894 = vmul.f32 %v1766, 0.3275911
        %v1895 = vmul.f32 %v1767, 0.3275911
        %v1896 = vmul.f32 %v1768, 0.3275911
        %v1897 = vmul.f32 %v1769, 0.3275911
        %v1898 = vmul.f32 %v1770, 0.3275911
        %v1899 = vmul.f32 %v1771, 0.3275911
        %v1900 = vmul.f32 %v1772, 0.3275911
        %v1901 = vmul.f32 %v1773, 0.3275911
        %v1902 = vmul.f32 %v1774, 0.3275911
        %v1903 = vmul.f32 %v1775, 0.3275911
        %v1904 = vmul.f32 %v1776, 0.3275911
        %v1905 = vmul.f32 %v1777, 0.3275911
        %v1906 = vmul.f32 %v1778, 0.3275911
        %v1907 = vmul.f32 %v1779, 0.3275911
        %v1908 = vmul.f32 %v1780, 0.3275911
        %v1909 = vmul.f32 %v1781, 0.3275911
        %v1910 = vmul.f32 %v1782, 0.3275911
        %v1911 = vmul.f32 %v1783, 0.3275911
        %v1912 = vmul.f32 %v1784, 0.3275911
        %v1913 = vmul.f32 %v1785, 0.3275911
        %v1914 = vmul.f32 %v1786, 0.3275911
        %v1915 = vmul.f32 %v1787, 0.3275911
        %v1916 = vmul.f32 %v1788, 0.3275911
        %v1917 = vmul.f32 %v1789, 0.3275911
        %v1918 = vmul.f32 %v1790, 0.3275911
        %v1919 = vmul.f32 %v1791, 0.3275911
        %v1920 = vmul.f32 %v1792, 0.3275911
        %v1921 = vmul.f32 %v1793, 0.3275911
        %v1922 = vmul.f32 %v1794, 0.3275911
        %v1923 = vmul.f32 %v1795, 0.3275911
        %v1924 = vmul.f32 %v1796, 0.3275911
        %v1925 = vmul.f32 %v1797, 0.3275911
        %v1926 = vmul.f32 %v1798, 0.3275911
        %v1927 = vmul.f32 %v1799, 0.3275911
        %v1928 = vmul.f32 %v1800, 0.3275911
        %v1929 = vmul.f32 %v1801, 0.3275911
        %v1930 = vmul.f32 %v1802, 0.3275911
        %v1931 = vmul.f32 %v1803, 0.3275911
        %v1932 = vmul.f32 %v1804, 0.3275911
        %v1933 = vmul.f32 %v1805, 0.3275911
        %v1934 = vmul.f32 %v1806, 0.3275911
        %v1935 = vmul.f32 %v1807, 0.3275911
        %v1936 = vmul.f32 %v1808, 0.3275911
        %v1937 = vmul.f32 %v1809, 0.3275911
        %v1938 = vmul.f32 %v1810, 0.3275911
        %v1939 = vmul.f32 %v1811, 0.3275911
        %v1940 = vmul.f32 %v1812, 0.3275911
        %v1941 = vmul.f32 %v1813, 0.3275911
        %v1942 = vmul.f32 %v1814, 0.3275911
        %v1943 = vmul.f32 %v1815, 0.3275911
        %v1944 = vmul.f32 %v1816, 0.3275911
        %v1945 = vmul.f32 %v1817, 0.3275911
        %v1946 = vmul.f32 %v1818, 0.3275911
        %v1947 = vmul.f32 %v1819, 0.3275911
        %v1948 = vmul.f32 %v1820, 0.3275911
        %v1949 = vmul.f32 %v1821, 0.3275911
        %v1950 = vmul.f32 %v1822, 0.3275911
        %v1951 = vmul.f32 %v1823, 0.3275911
        %v1952 = vmul.f32 %v1824, 0.3275911
        %v1953 = vmul.f32 %v1825, 0.3275911
        %v1954 = vmul.f32 %v1826, 0.3275911
        %v1955 = vmul.f32 %v1827, 0.3275911
        %v1956 = vmul.f32 %v1828, 0.3275911
        %v1957 = vmul.f32 %v1829, 0.3275911
        %v1958 = vmul.f32 %v1830, 0.3275911
        %v1959 = vmul.f32 %v1831, 0.3275911
        %v1960 = vmul.f32 %v1832, 0.3275911
        %v1961 = vmul.f32 %v1833, 0.3275911
        %v1962 = vmul.f32 %v1834, 0.3275911
        %v1963 = vmul.f32 %v1835, 0.3275911
        %v1964 = vmul.f32 %v1836, 0.3275911
        %v1965 = vmul.f32 %v1837, 0.3275911
        %v1966 = vmul.f32 %v1838, 0.3275911
        %v1967 = vmul.f32 %v1839, 0.3275911
        %v1968 = vmul.f32 %v1840, 0.3275911
        %v1969 = vmul.f32 %v1841, 0.3275911
        %v1970 = vmul.f32 %v1842, 0.3275911
        %v1971 = vadd.f32 %v1843, 1.0
        %v1972 = vadd.f32 %v1844, 1.0
        %v1973 = vadd.f32 %v1845, 1.0
        %v1974 = vadd.f32 %v1846, 1.0
        %v1975 = vadd.f32 %v1847, 1.0
        %v1976 = vadd.f32 %v1848, 1.0
        %v1977 = vadd.f32 %v1849, 1.0
        %v1978 = vadd.f32 %v1850, 1.0
        %v1979 = vadd.f32 %v1851, 1.0
        %v1980 = vadd.f32 %v1852, 1.0
        %v1981 = vadd.f32 %v1853, 1.0
        %v1982 = vadd.f32 %v1854, 1.0
        %v1983 = vadd.f32 %v1855, 1.0
        %v1984 = vadd.f32 %v1856, 1.0
        %v1985 = vadd.f32 %v1857, 1.0
        %v1986 = vadd.f32 %v1858, 1.0
        %v1987 = vadd.f32 %v1859, 1.0
        %v1988 = vadd.f32 %v1860, 1.0
        %v1989 = vadd.f32 %v1861, 1.0
        %v1990 = vadd.f32 %v1862, 1.0
        %v1991 = vadd.f32 %v1863, 1.0
        %v1992 = vadd.f32 %v1864, 1.0
        %v1993 = vadd.f32 %v1865, 1.0
        %v1994 = vadd.f32 %v1866, 1.0
        %v1995 = vadd.f32 %v1867, 1.0
        %v1996 = vadd.f32 %v1868, 1.0
        %v1997 = vadd.f32 %v1869, 1.0
        %v1998 = vadd.f32 %v1870, 1.0
        %v1999 = vadd.f32 %v1871, 1.0
        %v2000 = vadd.f32 %v1872, 1.0
        %v2001 = vadd.f32 %v1873, 1.0
        %v2002 = vadd.f32 %v1874, 1.0
        %v2003 = vadd.f32 %v1875, 1.0
        %v2004 = vadd.f32 %v1876, 1.0
        %v2005 = vadd.f32 %v1877, 1.0
        %v2006 = vadd.f32 %v1878, 1.0
        %v2007 = vadd.f32 %v1879, 1.0
        %v2008 = vadd.f32 %v1880, 1.0
        %v2009 = vadd.f32 %v1881, 1.0
        %v2010 = vadd.f32 %v1882, 1.0
        %v2011 = vadd.f32 %v1883, 1.0
        %v2012 = vadd.f32 %v1884, 1.0
        %v2013 = vadd.f32 %v1885, 1.0
        %v2014 = vadd.f32 %v1886, 1.0
        %v2015 = vadd.f32 %v1887, 1.0
        %v2016 = vadd.f32 %v1888, 1.0
        %v2017 = vadd.f32 %v1889, 1.0
        %v2018 = vadd.f32 %v1890, 1.0
        %v2019 = vadd.f32 %v1891, 1.0
        %v2020 = vadd.f32 %v1892, 1.0
        %v2021 = vadd.f32 %v1893, 1.0
        %v2022 = vadd.f32 %v1894, 1.0
        %v2023 = vadd.f32 %v1895, 1.0
        %v2024 = vadd.f32 %v1896, 1.0
        %v2025 = vadd.f32 %v1897, 1.0
        %v2026 = vadd.f32 %v1898, 1.0
        %v2027 = vadd.f32 %v1899, 1.0
        %v2028 = vadd.f32 %v1900, 1.0
        %v2029 = vadd.f32 %v1901, 1.0
        %v2030 = vadd.f32 %v1902, 1.0
        %v2031 = vadd.f32 %v1903, 1.0
        %v2032 = vadd.f32 %v1904, 1.0
        %v2033 = vadd.f32 %v1905, 1.0
        %v2034 = vadd.f32 %v1906, 1.0
        %v2035 = vadd.f32 %v1907, 1.0
        %v2036 = vadd.f32 %v1908, 1.0
        %v2037 = vadd.f32 %v1909, 1.0
        %v2038 = vadd.f32 %v1910, 1.0
        %v2039 = vadd.f32 %v1911, 1.0
        %v2040 = vadd.f32 %v1912, 1.0
        %v2041 = vadd.f32 %v1913, 1.0
        %v2042 = vadd.f32 %v1914, 1.0
        %v2043 = vadd.f32 %v1915, 1.0
        %v2044 = vadd.f32 %v1916, 1.0
        %v2045 = vadd.f32 %v1917, 1.0
        %v2046 = vadd.f32 %v1918, 1.0
        %v2047 = vadd.f32 %v1919, 1.0
        %v2048 = vadd.f32 %v1920, 1.0
        %v2049 = vadd.f32 %v1921, 1.0
        %v2050 = vadd.f32 %v1922, 1.0
        %v2051 = vadd.f32 %v1923, 1.0
        %v2052 = vadd.f32 %v1924, 1.0
        %v2053 = vadd.f32 %v1925, 1.0
        %v2054 = vadd.f32 %v1926, 1.0
        %v2055 = vadd.f32 %v1927, 1.0
        %v2056 = vadd.f32 %v1928, 1.0
        %v2057 = vadd.f32 %v1929, 1.0
        %v2058 = vadd.f32 %v1930, 1.0
        %v2059 = vadd.f32 %v1931, 1.0
        %v2060 = vadd.f32 %v1932, 1.0
        %v2061 = vadd.f32 %v1933, 1.0
        %v2062 = vadd.f32 %v1934, 1.0
        %v2063 = vadd.f32 %v1935, 1.0
        %v2064 = vadd.f32 %v1936, 1.0
        %v2065 = vadd.f32 %v1937, 1.0
        %v2066 = vadd.f32 %v1938, 1.0
        %v2067 = vadd.f32 %v1939, 1.0
        %v2068 = vadd.f32 %v1940, 1.0
        %v2069 = vadd.f32 %v1941, 1.0
        %v2070 = vadd.f32 %v1942, 1.0
        %v2071 = vadd.f32 %v1943, 1.0
        %v2072 = vadd.f32 %v1944, 1.0
        %v2073 = vadd.f32 %v1945, 1.0
        %v2074 = vadd.f32 %v1946, 1.0
        %v2075 = vadd.f32 %v1947, 1.0
        %v2076 = vadd.f32 %v1948, 1.0
        %v2077 = vadd.f32 %v1949, 1.0
        %v2078 = vadd.f32 %v1950, 1.0
        %v2079 = vadd.f32 %v1951, 1.0
        %v2080 = vadd.f32 %v1952, 1.0
        %v2081 = vadd.f32 %v1953, 1.0
        %v2082 = vadd.f32 %v1954, 1.0
        %v2083 = vadd.f32 %v1955, 1.0
        %v2084 = vadd.f32 %v1956, 1.0
        %v2085 = vadd.f32 %v1957, 1.0
        %v2086 = vadd.f32 %v1958, 1.0
        %v2087 = vadd.f32 %v1959, 1.0
        %v2088 = vadd.f32 %v1960, 1.0
        %v2089 = vadd.f32 %v1961, 1.0
        %v2090 = vadd.f32 %v1962, 1.0
        %v2091 = vadd.f32 %v1963, 1.0
        %v2092 = vadd.f32 %v1964, 1.0
        %v2093 = vadd.f32 %v1965, 1.0
        %v2094 = vadd.f32 %v1966, 1.0
        %v2095 = vadd.f32 %v1967, 1.0
        %v2096 = vadd.f32 %v1968, 1.0
        %v2097 = vadd.f32 %v1969, 1.0
        %v2098 = vadd.f32 %v1970, 1.0
        %v2099 = vrcp.pop %v1971
        %v2100 = vrcp.pop %v1972
        %v2101 = vrcp.pop %v1973
        %v2102 = vrcp.pop %v1974
        %v2103 = vrcp.pop %v1975
        %v2104 = vrcp.pop %v1976
        %v2105 = vrcp.pop %v1977
        %v2106 = vrcp.pop %v1978
        %v2107 = vrcp.pop %v1979
        %v2108 = vrcp.pop %v1980
        %v2109 = vrcp.pop %v1981
        %v2110 = vrcp.pop %v1982
        %v2111 = vrcp.pop %v1983
        %v2112 = vrcp.pop %v1984
        %v2113 = vrcp.pop %v1985
        %v2114 = vrcp.pop %v1986
        %v2115 = vrcp.pop %v1987
        %v2116 = vrcp.pop %v1988
        %v2117 = vrcp.pop %v1989
        %v2118 = vrcp.pop %v1990
        %v2119 = vrcp.pop %v1991
        %v2120 = vrcp.pop %v1992
        %v2121 = vrcp.pop %v1993
        %v2122 = vrcp.pop %v1994
        %v2123 = vrcp.pop %v1995
        %v2124 = vrcp.pop %v1996
        %v2125 = vrcp.pop %v1997
        %v2126 = vrcp.pop %v1998
        %v2127 = vrcp.pop %v1999
        %v2128 = vrcp.pop %v2000
        %v2129 = vrcp.pop %v2001
        %v2130 = vrcp.pop %v2002
        %v2131 = vrcp.pop %v2003
        %v2132 = vrcp.pop %v2004
        %v2133 = vrcp.pop %v2005
        %v2134 = vrcp.pop %v2006
        %v2135 = vrcp.pop %v2007
        %v2136 = vrcp.pop %v2008
        %v2137 = vrcp.pop %v2009
        %v2138 = vrcp.pop %v2010
        %v2139 = vrcp.pop %v2011
        %v2140 = vrcp.pop %v2012
        %v2141 = vrcp.pop %v2013
        %v2142 = vrcp.pop %v2014
        %v2143 = vrcp.pop %v2015
        %v2144 = vrcp.pop %v2016
        %v2145 = vrcp.pop %v2017
        %v2146 = vrcp.pop %v2018
        %v2147 = vrcp.pop %v2019
        %v2148 = vrcp.pop %v2020
        %v2149 = vrcp.pop %v2021
        %v2150 = vrcp.pop %v2022
        %v2151 = vrcp.pop %v2023
        %v2152 = vrcp.pop %v2024
        %v2153 = vrcp.pop %v2025
        %v2154 = vrcp.pop %v2026
        %v2155 = vrcp.pop %v2027
        %v2156 = vrcp.pop %v2028
        %v2157 = vrcp.pop %v2029
        %v2158 = vrcp.pop %v2030
        %v2159 = vrcp.pop %v2031
        %v2160 = vrcp.pop %v2032
        %v2161 = vrcp.pop %v2033
        %v2162 = vrcp.pop %v2034
        %v2163 = vrcp.pop %v2035
        %v2164 = vrcp.pop %v2036
        %v2165 = vrcp.pop %v2037
        %v2166 = vrcp.pop %v2038
        %v2167 = vrcp.pop %v2039
        %v2168 = vrcp.pop %v2040
        %v2169 = vrcp.pop %v2041
        %v2170 = vrcp.pop %v2042
        %v2171 = vrcp.pop %v2043
        %v2172 = vrcp.pop %v2044
        %v2173 = vrcp.pop %v2045
        %v2174 = vrcp.pop %v2046
        %v2175 = vrcp.pop %v2047
        %v2176 = vrcp.pop %v2048
        %v2177 = vrcp.pop %v2049
        %v2178 = vrcp.pop %v2050
        %v2179 = vrcp.pop %v2051
        %v2180 = vrcp.pop %v2052
        %v2181 = vrcp.pop %v2053
        %v2182 = vrcp.pop %v2054
        %v2183 = vrcp.pop %v2055
        %v2184 = vrcp.pop %v2056
        %v2185 = vrcp.pop %v2057
        %v2186 = vrcp.pop %v2058
        %v2187 = vrcp.pop %v2059
        %v2188 = vrcp.pop %v2060
        %v2189 = vrcp.pop %v2061
        %v2190 = vrcp.pop %v2062
        %v2191 = vrcp.pop %v2063
        %v2192 = vrcp.pop %v2064
        %v2193 = vrcp.pop %v2065
        %v2194 = vrcp.pop %v2066
        %v2195 = vrcp.pop %v2067
        %v2196 = vrcp.pop %v2068
        %v2197 = vrcp.pop %v2069
        %v2198 = vrcp.pop %v2070
        %v2199 = vrcp.pop %v2071
        %v2200 = vrcp.pop %v2072
        %v2201 = vrcp.pop %v2073
        %v2202 = vrcp.pop %v2074
        %v2203 = vrcp.pop %v2075
        %v2204 = vrcp.pop %v2076
        %v2205 = vrcp.pop %v2077
        %v2206 = vrcp.pop %v2078
        %v2207 = vrcp.pop %v2079
        %v2208 = vrcp.pop %v2080
        %v2209 = vrcp.pop %v2081
        %v2210 = vrcp.pop %v2082
        %v2211 = vrcp.pop %v2083
        %v2212 = vrcp.pop %v2084
        %v2213 = vrcp.pop %v2085
        %v2214 = vrcp.pop %v2086
        %v2215 = vrcp.pop %v2087
        %v2216 = vrcp.pop %v2088
        %v2217 = vrcp.pop %v2089
        %v2218 = vrcp.pop %v2090
        %v2219 = vrcp.pop %v2091
        %v2220 = vrcp.pop %v2092
        %v2221 = vrcp.pop %v2093
        %v2222 = vrcp.pop %v2094
        %v2223 = vrcp.pop %v2095
        %v2224 = vrcp.pop %v2096
        %v2225 = vrcp.pop %v2097
        %v2226 = vrcp.pop %v2098
        %v2227 = vmul.f32 %v1971, %v2099
        %v2228 = vmul.f32 %v1972, %v2100
        %v2229 = vmul.f32 %v1973, %v2101
        %v2230 = vmul.f32 %v1974, %v2102
        %v2231 = vmul.f32 %v1975, %v2103
        %v2232 = vmul.f32 %v1976, %v2104
        %v2233 = vmul.f32 %v1977, %v2105
        %v2234 = vmul.f32 %v1978, %v2106
        %v2235 = vmul.f32 %v1979, %v2107
        %v2236 = vmul.f32 %v1980, %v2108
        %v2237 = vmul.f32 %v1981, %v2109
        %v2238 = vmul.f32 %v1982, %v2110
        %v2239 = vmul.f32 %v1983, %v2111
        %v2240 = vmul.f32 %v1984, %v2112
        %v2241 = vmul.f32 %v1985, %v2113
        %v2242 = vmul.f32 %v1986, %v2114
        %v2243 = vmul.f32 %v1987, %v2115
        %v2244 = vmul.f32 %v1988, %v2116
        %v2245 = vmul.f32 %v1989, %v2117
        %v2246 = vmul.f32 %v1990, %v2118
        %v2247 = vmul.f32 %v1991, %v2119
        %v2248 = vmul.f32 %v1992, %v2120
        %v2249 = vmul.f32 %v1993, %v2121
        %v2250 = vmul.f32 %v1994, %v2122
        %v2251 = vmul.f32 %v1995, %v2123
        %v2252 = vmul.f32 %v1996, %v2124
        %v2253 = vmul.f32 %v1997, %v2125
        %v2254 = vmul.f32 %v1998, %v2126
        %v2255 = vmul.f32 %v1999, %v2127
        %v2256 = vmul.f32 %v2000, %v2128
        %v2257 = vmul.f32 %v2001, %v2129
        %v2258 = vmul.f32 %v2002, %v2130
        %v2259 = vmul.f32 %v2003, %v2131
        %v2260 = vmul.f32 %v2004, %v2132
        %v2261 = vmul.f32 %v2005, %v2133
        %v2262 = vmul.f32 %v2006, %v2134
        %v2263 = vmul.f32 %v2007, %v2135
        %v2264 = vmul.f32 %v2008, %v2136
        %v2265 = vmul.f32 %v2009, %v2137
        %v2266 = vmul.f32 %v2010, %v2138
        %v2267 = vmul.f32 %v2011, %v2139
        %v2268 = vmul.f32 %v2012, %v2140
        %v2269 = vmul.f32 %v2013, %v2141
        %v2270 = vmul.f32 %v2014, %v2142
        %v2271 = vmul.f32 %v2015, %v2143
        %v2272 = vmul.f32 %v2016, %v2144
        %v2273 = vmul.f32 %v2017, %v2145
        %v2274 = vmul.f32 %v2018, %v2146
        %v2275 = vmul.f32 %v2019, %v2147
        %v2276 = vmul.f32 %v2020, %v2148
        %v2277 = vmul.f32 %v2021, %v2149
        %v2278 = vmul.f32 %v2022, %v2150
        %v2279 = vmul.f32 %v2023, %v2151
        %v2280 = vmul.f32 %v2024, %v2152
        %v2281 = vmul.f32 %v2025, %v2153
        %v2282 = vmul.f32 %v2026, %v2154
        %v2283 = vmul.f32 %v2027, %v2155
        %v2284 = vmul.f32 %v2028, %v2156
        %v2285 = vmul.f32 %v2029, %v2157
        %v2286 = vmul.f32 %v2030, %v2158
        %v2287 = vmul.f32 %v2031, %v2159
        %v2288 = vmul.f32 %v2032, %v2160
        %v2289 = vmul.f32 %v2033, %v2161
        %v2290 = vmul.f32 %v2034, %v2162
        %v2291 = vmul.f32 %v2035, %v2163
        %v2292 = vmul.f32 %v2036, %v2164
        %v2293 = vmul.f32 %v2037, %v2165
        %v2294 = vmul.f32 %v2038, %v2166
        %v2295 = vmul.f32 %v2039, %v2167
        %v2296 = vmul.f32 %v2040, %v2168
        %v2297 = vmul.f32 %v2041, %v2169
        %v2298 = vmul.f32 %v2042, %v2170
        %v2299 = vmul.f32 %v2043, %v2171
        %v2300 = vmul.f32 %v2044, %v2172
        %v2301 = vmul.f32 %v2045, %v2173
        %v2302 = vmul.f32 %v2046, %v2174
        %v2303 = vmul.f32 %v2047, %v2175
        %v2304 = vmul.f32 %v2048, %v2176
        %v2305 = vmul.f32 %v2049, %v2177
        %v2306 = vmul.f32 %v2050, %v2178
        %v2307 = vmul.f32 %v2051, %v2179
        %v2308 = vmul.f32 %v2052, %v2180
        %v2309 = vmul.f32 %v2053, %v2181
        %v2310 = vmul.f32 %v2054, %v2182
        %v2311 = vmul.f32 %v2055, %v2183
        %v2312 = vmul.f32 %v2056, %v2184
        %v2313 = vmul.f32 %v2057, %v2185
        %v2314 = vmul.f32 %v2058, %v2186
        %v2315 = vmul.f32 %v2059, %v2187
        %v2316 = vmul.f32 %v2060, %v2188
        %v2317 = vmul.f32 %v2061, %v2189
        %v2318 = vmul.f32 %v2062, %v2190
        %v2319 = vmul.f32 %v2063, %v2191
        %v2320 = vmul.f32 %v2064, %v2192
        %v2321 = vmul.f32 %v2065, %v2193
        %v2322 = vmul.f32 %v2066, %v2194
        %v2323 = vmul.f32 %v2067, %v2195
        %v2324 = vmul.f32 %v2068, %v2196
        %v2325 = vmul.f32 %v2069, %v2197
        %v2326 = vmul.f32 %v2070, %v2198
        %v2327 = vmul.f32 %v2071, %v2199
        %v2328 = vmul.f32 %v2072, %v2200
        %v2329 = vmul.f32 %v2073, %v2201
        %v2330 = vmul.f32 %v2074, %v2202
        %v2331 = vmul.f32 %v2075, %v2203
        %v2332 = vmul.f32 %v2076, %v2204
        %v2333 = vmul.f32 %v2077, %v2205
        %v2334 = vmul.f32 %v2078, %v2206
        %v2335 = vmul.f32 %v2079, %v2207
        %v2336 = vmul.f32 %v2080, %v2208
        %v2337 = vmul.f32 %v2081, %v2209
        %v2338 = vmul.f32 %v2082, %v2210
        %v2339 = vmul.f32 %v2083, %v2211
        %v2340 = vmul.f32 %v2084, %v2212
        %v2341 = vmul.f32 %v2085, %v2213
        %v2342 = vmul.f32 %v2086, %v2214
        %v2343 = vmul.f32 %v2087, %v2215
        %v2344 = vmul.f32 %v2088, %v2216
        %v2345 = vmul.f32 %v2089, %v2217
        %v2346 = vmul.f32 %v2090, %v2218
        %v2347 = vmul.f32 %v2091, %v2219
        %v2348 = vmul.f32 %v2092, %v2220
        %v2349 = vmul.f32 %v2093, %v2221
        %v2350 = vmul.f32 %v2094, %v2222
        %v2351 = vmul.f32 %v2095, %v2223
        %v2352 = vmul.f32 %v2096, %v2224
        %v2353 = vmul.f32 %v2097, %v2225
        %v2354 = vmul.f32 %v2098, %v2226
        %v2355 = vsub.f32 2.0, %v2227
        %v2356 = vsub.f32 2.0, %v2228
        %v2357 = vsub.f32 2.0, %v2229
        %v2358 = vsub.f32 2.0, %v2230
        %v2359 = vsub.f32 2.0, %v2231
        %v2360 = vsub.f32 2.0, %v2232
        %v2361 = vsub.f32 2.0, %v2233
        %v2362 = vsub.f32 2.0, %v2234
        %v2363 = vsub.f32 2.0, %v2235
        %v2364 = vsub.f32 2.0, %v2236
        %v2365 = vsub.f32 2.0, %v2237
        %v2366 = vsub.f32 2.0, %v2238
        %v2367 = vsub.f32 2.0, %v2239
        %v2368 = vsub.f32 2.0, %v2240
        %v2369 = vsub.f32 2.0, %v2241
        %v2370 = vsub.f32 2.0, %v2242
        %v2371 = vsub.f32 2.0, %v2243
        %v2372 = vsub.f32 2.0, %v2244
        %v2373 = vsub.f32 2.0, %v2245
        %v2374 = vsub.f32 2.0, %v2246
        %v2375 = vsub.f32 2.0, %v2247
        %v2376 = vsub.f32 2.0, %v2248
        %v2377 = vsub.f32 2.0, %v2249
        %v2378 = vsub.f32 2.0, %v2250
        %v2379 = vsub.f32 2.0, %v2251
        %v2380 = vsub.f32 2.0, %v2252
        %v2381 = vsub.f32 2.0, %v2253
        %v2382 = vsub.f32 2.0, %v2254
        %v2383 = vsub.f32 2.0, %v2255
        %v2384 = vsub.f32 2.0, %v2256
        %v2385 = vsub.f32 2.0, %v2257
        %v2386 = vsub.f32 2.0, %v2258
        %v2387 = vsub.f32 2.0, %v2259
        %v2388 = vsub.f32 2.0, %v2260
        %v2389 = vsub.f32 2.0, %v2261
        %v2390 = vsub.f32 2.0, %v2262
        %v2391 = vsub.f32 2.0, %v2263
        %v2392 = vsub.f32 2.0, %v2264
        %v2393 = vsub.f32 2.0, %v2265
        %v2394 = vsub.f32 2.0, %v2266
        %v2395 = vsub.f32 2.0, %v2267
        %v2396 = vsub.f32 2.0, %v2268
        %v2397 = vsub.f32 2.0, %v2269
        %v2398 = vsub.f32 2.0, %v2270
        %v2399 = vsub.f32 2.0, %v2271
        %v2400 = vsub.f32 2.0, %v2272
        %v2401 = vsub.f32 2.0, %v2273
        %v2402 = vsub.f32 2.0, %v2274
        %v2403 = vsub.f32 2.0, %v2275
        %v2404 = vsub.f32 2.0, %v2276
        %v2405 = vsub.f32 2.0, %v2277
        %v2406 = vsub.f32 2.0, %v2278
        %v2407 = vsub.f32 2.0, %v2279
        %v2408 = vsub.f32 2.0, %v2280
        %v2409 = vsub.f32 2.0, %v2281
        %v2410 = vsub.f32 2.0, %v2282
        %v2411 = vsub.f32 2.0, %v2283
        %v2412 = vsub.f32 2.0, %v2284
        %v2413 = vsub.f32 2.0, %v2285
        %v2414 = vsub.f32 2.0, %v2286
        %v2415 = vsub.f32 2.0, %v2287
        %v2416 = vsub.f32 2.0, %v2288
        %v2417 = vsub.f32 2.0, %v2289
        %v2418 = vsub.f32 2.0, %v2290
        %v2419 = vsub.f32 2.0, %v2291
        %v2420 = vsub.f32 2.0, %v2292
        %v2421 = vsub.f32 2.0, %v2293
        %v2422 = vsub.f32 2.0, %v2294
        %v2423 = vsub.f32 2.0, %v2295
        %v2424 = vsub.f32 2.0, %v2296
        %v2425 = vsub.f32 2.0, %v2297
        %v2426 = vsub.f32 2.0, %v2298
        %v2427 = vsub.f32 2.0, %v2299
        %v2428 = vsub.f32 2.0, %v2300
        %v2429 = vsub.f32 2.0, %v2301
        %v2430 = vsub.f32 2.0, %v2302
        %v2431 = vsub.f32 2.0, %v2303
        %v2432 = vsub.f32 2.0, %v2304
        %v2433 = vsub.f32 2.0, %v2305
        %v2434 = vsub.f32 2.0, %v2306
        %v2435 = vsub.f32 2.0, %v2307
        %v2436 = vsub.f32 2.0, %v2308
        %v2437 = vsub.f32 2.0, %v2309
        %v2438 = vsub.f32 2.0, %v2310
        %v2439 = vsub.f32 2.0, %v2311
        %v2440 = vsub.f32 2.0, %v2312
        %v2441 = vsub.f32 2.0, %v2313
        %v2442 = vsub.f32 2.0, %v2314
        %v2443 = vsub.f32 2.0, %v2315
        %v2444 = vsub.f32 2.0, %v2316
        %v2445 = vsub.f32 2.0, %v2317
        %v2446 = vsub.f32 2.0, %v2318
        %v2447 = vsub.f32 2.0, %v2319
        %v2448 = vsub.f32 2.0, %v2320
        %v2449 = vsub.f32 2.0, %v2321
        %v2450 = vsub.f32 2.0, %v2322
        %v2451 = vsub.f32 2.0, %v2323
        %v2452 = vsub.f32 2.0, %v2324
        %v2453 = vsub.f32 2.0, %v2325
        %v2454 = vsub.f32 2.0, %v2326
        %v2455 = vsub.f32 2.0, %v2327
        %v2456 = vsub.f32 2.0, %v2328
        %v2457 = vsub.f32 2.0, %v2329
        %v2458 = vsub.f32 2.0, %v2330
        %v2459 = vsub.f32 2.0, %v2331
        %v2460 = vsub.f32 2.0, %v2332
        %v2461 = vsub.f32 2.0, %v2333
        %v2462 = vsub.f32 2.0, %v2334
        %v2463 = vsub.f32 2.0, %v2335
        %v2464 = vsub.f32 2.0, %v2336
        %v2465 = vsub.f32 2.0, %v2337
        %v2466 = vsub.f32 2.0, %v2338
        %v2467 = vsub.f32 2.0, %v2339
        %v2468 = vsub.f32 2.0, %v2340
        %v2469 = vsub.f32 2.0, %v2341
        %v2470 = vsub.f32 2.0, %v2342
        %v2471 = vsub.f32 2.0, %v2343
        %v2472 = vsub.f32 2.0, %v2344
        %v2473 = vsub.f32 2.0, %v2345
        %v2474 = vsub.f32 2.0, %v2346
        %v2475 = vsub.f32 2.0, %v2347
        %v2476 = vsub.f32 2.0, %v2348
        %v2477 = vsub.f32 2.0, %v2349
        %v2478 = vsub.f32 2.0, %v2350
        %v2479 = vsub.f32 2.0, %v2351
        %v2480 = vsub.f32 2.0, %v2352
        %v2481 = vsub.f32 2.0, %v2353
        %v2482 = vsub.f32 2.0, %v2354
        %v2483 = vmul.f32 %v2099, %v2355
        %v2484 = vmul.f32 %v2100, %v2356
        %v2485 = vmul.f32 %v2101, %v2357
        %v2486 = vmul.f32 %v2102, %v2358
        %v2487 = vmul.f32 %v2103, %v2359
        %v2488 = vmul.f32 %v2104, %v2360
        %v2489 = vmul.f32 %v2105, %v2361
        %v2490 = vmul.f32 %v2106, %v2362
        %v2491 = vmul.f32 %v2107, %v2363
        %v2492 = vmul.f32 %v2108, %v2364
        %v2493 = vmul.f32 %v2109, %v2365
        %v2494 = vmul.f32 %v2110, %v2366
        %v2495 = vmul.f32 %v2111, %v2367
        %v2496 = vmul.f32 %v2112, %v2368
        %v2497 = vmul.f32 %v2113, %v2369
        %v2498 = vmul.f32 %v2114, %v2370
        %v2499 = vmul.f32 %v2115, %v2371
        %v2500 = vmul.f32 %v2116, %v2372
        %v2501 = vmul.f32 %v2117, %v2373
        %v2502 = vmul.f32 %v2118, %v2374
        %v2503 = vmul.f32 %v2119, %v2375
        %v2504 = vmul.f32 %v2120, %v2376
        %v2505 = vmul.f32 %v2121, %v2377
        %v2506 = vmul.f32 %v2122, %v2378
        %v2507 = vmul.f32 %v2123, %v2379
        %v2508 = vmul.f32 %v2124, %v2380
        %v2509 = vmul.f32 %v2125, %v2381
        %v2510 = vmul.f32 %v2126, %v2382
        %v2511 = vmul.f32 %v2127, %v2383
        %v2512 = vmul.f32 %v2128, %v2384
        %v2513 = vmul.f32 %v2129, %v2385
        %v2514 = vmul.f32 %v2130, %v2386
        %v2515 = vmul.f32 %v2131, %v2387
        %v2516 = vmul.f32 %v2132, %v2388
        %v2517 = vmul.f32 %v2133, %v2389
        %v2518 = vmul.f32 %v2134, %v2390
        %v2519 = vmul.f32 %v2135, %v2391
        %v2520 = vmul.f32 %v2136, %v2392
        %v2521 = vmul.f32 %v2137, %v2393
        %v2522 = vmul.f32 %v2138, %v2394
        %v2523 = vmul.f32 %v2139, %v2395
        %v2524 = vmul.f32 %v2140, %v2396
        %v2525 = vmul.f32 %v2141, %v2397
        %v2526 = vmul.f32 %v2142, %v2398
        %v2527 = vmul.f32 %v2143, %v2399
        %v2528 = vmul.f32 %v2144, %v2400
        %v2529 = vmul.f32 %v2145, %v2401
        %v2530 = vmul.f32 %v2146, %v2402
        %v2531 = vmul.f32 %v2147, %v2403
        %v2532 = vmul.f32 %v2148, %v2404
        %v2533 = vmul.f32 %v2149, %v2405
        %v2534 = vmul.f32 %v2150, %v2406
        %v2535 = vmul.f32 %v2151, %v2407
        %v2536 = vmul.f32 %v2152, %v2408
        %v2537 = vmul.f32 %v2153, %v2409
        %v2538 = vmul.f32 %v2154, %v2410
        %v2539 = vmul.f32 %v2155, %v2411
        %v2540 = vmul.f32 %v2156, %v2412
        %v2541 = vmul.f32 %v2157, %v2413
        %v2542 = vmul.f32 %v2158, %v2414
        %v2543 = vmul.f32 %v2159, %v2415
        %v2544 = vmul.f32 %v2160, %v2416
        %v2545 = vmul.f32 %v2161, %v2417
        %v2546 = vmul.f32 %v2162, %v2418
        %v2547 = vmul.f32 %v2163, %v2419
        %v2548 = vmul.f32 %v2164, %v2420
        %v2549 = vmul.f32 %v2165, %v2421
        %v2550 = vmul.f32 %v2166, %v2422
        %v2551 = vmul.f32 %v2167, %v2423
        %v2552 = vmul.f32 %v2168, %v2424
        %v2553 = vmul.f32 %v2169, %v2425
        %v2554 = vmul.f32 %v2170, %v2426
        %v2555 = vmul.f32 %v2171, %v2427
        %v2556 = vmul.f32 %v2172, %v2428
        %v2557 = vmul.f32 %v2173, %v2429
        %v2558 = vmul.f32 %v2174, %v2430
        %v2559 = vmul.f32 %v2175, %v2431
        %v2560 = vmul.f32 %v2176, %v2432
        %v2561 = vmul.f32 %v2177, %v2433
        %v2562 = vmul.f32 %v2178, %v2434
        %v2563 = vmul.f32 %v2179, %v2435
        %v2564 = vmul.f32 %v2180, %v2436
        %v2565 = vmul.f32 %v2181, %v2437
        %v2566 = vmul.f32 %v2182, %v2438
        %v2567 = vmul.f32 %v2183, %v2439
        %v2568 = vmul.f32 %v2184, %v2440
        %v2569 = vmul.f32 %v2185, %v2441
        %v2570 = vmul.f32 %v2186, %v2442
        %v2571 = vmul.f32 %v2187, %v2443
        %v2572 = vmul.f32 %v2188, %v2444
        %v2573 = vmul.f32 %v2189, %v2445
        %v2574 = vmul.f32 %v2190, %v2446
        %v2575 = vmul.f32 %v2191, %v2447
        %v2576 = vmul.f32 %v2192, %v2448
        %v2577 = vmul.f32 %v2193, %v2449
        %v2578 = vmul.f32 %v2194, %v2450
        %v2579 = vmul.f32 %v2195, %v2451
        %v2580 = vmul.f32 %v2196, %v2452
        %v2581 = vmul.f32 %v2197, %v2453
        %v2582 = vmul.f32 %v2198, %v2454
        %v2583 = vmul.f32 %v2199, %v2455
        %v2584 = vmul.f32 %v2200, %v2456
        %v2585 = vmul.f32 %v2201, %v2457
        %v2586 = vmul.f32 %v2202, %v2458
        %v2587 = vmul.f32 %v2203, %v2459
        %v2588 = vmul.f32 %v2204, %v2460
        %v2589 = vmul.f32 %v2205, %v2461
        %v2590 = vmul.f32 %v2206, %v2462
        %v2591 = vmul.f32 %v2207, %v2463
        %v2592 = vmul.f32 %v2208, %v2464
        %v2593 = vmul.f32 %v2209, %v2465
        %v2594 = vmul.f32 %v2210, %v2466
        %v2595 = vmul.f32 %v2211, %v2467
        %v2596 = vmul.f32 %v2212, %v2468
        %v2597 = vmul.f32 %v2213, %v2469
        %v2598 = vmul.f32 %v2214, %v2470
        %v2599 = vmul.f32 %v2215, %v2471
        %v2600 = vmul.f32 %v2216, %v2472
        %v2601 = vmul.f32 %v2217, %v2473
        %v2602 = vmul.f32 %v2218, %v2474
        %v2603 = vmul.f32 %v2219, %v2475
        %v2604 = vmul.f32 %v2220, %v2476
        %v2605 = vmul.f32 %v2221, %v2477
        %v2606 = vmul.f32 %v2222, %v2478
        %v2607 = vmul.f32 %v2223, %v2479
        %v2608 = vmul.f32 %v2224, %v2480
        %v2609 = vmul.f32 %v2225, %v2481
        %v2610 = vmul.f32 %v2226, %v2482
        %v2611 = vmul.f32 %v2483, 1.0614054
        %v2612 = vmul.f32 %v2484, 1.0614054
        %v2613 = vmul.f32 %v2485, 1.0614054
        %v2614 = vmul.f32 %v2486, 1.0614054
        %v2615 = vmul.f32 %v2487, 1.0614054
        %v2616 = vmul.f32 %v2488, 1.0614054
        %v2617 = vmul.f32 %v2489, 1.0614054
        %v2618 = vmul.f32 %v2490, 1.0614054
        %v2619 = vmul.f32 %v2491, 1.0614054
        %v2620 = vmul.f32 %v2492, 1.0614054
        %v2621 = vmul.f32 %v2493, 1.0614054
        %v2622 = vmul.f32 %v2494, 1.0614054
        %v2623 = vmul.f32 %v2495, 1.0614054
        %v2624 = vmul.f32 %v2496, 1.0614054
        %v2625 = vmul.f32 %v2497, 1.0614054
        %v2626 = vmul.f32 %v2498, 1.0614054
        %v2627 = vmul.f32 %v2499, 1.0614054
        %v2628 = vmul.f32 %v2500, 1.0614054
        %v2629 = vmul.f32 %v2501, 1.0614054
        %v2630 = vmul.f32 %v2502, 1.0614054
        %v2631 = vmul.f32 %v2503, 1.0614054
        %v2632 = vmul.f32 %v2504, 1.0614054
        %v2633 = vmul.f32 %v2505, 1.0614054
        %v2634 = vmul.f32 %v2506, 1.0614054
        %v2635 = vmul.f32 %v2507, 1.0614054
        %v2636 = vmul.f32 %v2508, 1.0614054
        %v2637 = vmul.f32 %v2509, 1.0614054
        %v2638 = vmul.f32 %v2510, 1.0614054
        %v2639 = vmul.f32 %v2511, 1.0614054
        %v2640 = vmul.f32 %v2512, 1.0614054
        %v2641 = vmul.f32 %v2513, 1.0614054
        %v2642 = vmul.f32 %v2514, 1.0614054
        %v2643 = vmul.f32 %v2515, 1.0614054
        %v2644 = vmul.f32 %v2516, 1.0614054
        %v2645 = vmul.f32 %v2517, 1.0614054
        %v2646 = vmul.f32 %v2518, 1.0614054
        %v2647 = vmul.f32 %v2519, 1.0614054
        %v2648 = vmul.f32 %v2520, 1.0614054
        %v2649 = vmul.f32 %v2521, 1.0614054
        %v2650 = vmul.f32 %v2522, 1.0614054
        %v2651 = vmul.f32 %v2523, 1.0614054
        %v2652 = vmul.f32 %v2524, 1.0614054
        %v2653 = vmul.f32 %v2525, 1.0614054
        %v2654 = vmul.f32 %v2526, 1.0614054
        %v2655 = vmul.f32 %v2527, 1.0614054
        %v2656 = vmul.f32 %v2528, 1.0614054
        %v2657 = vmul.f32 %v2529, 1.0614054
        %v2658 = vmul.f32 %v2530, 1.0614054
        %v2659 = vmul.f32 %v2531, 1.0614054
        %v2660 = vmul.f32 %v2532, 1.0614054
        %v2661 = vmul.f32 %v2533, 1.0614054
        %v2662 = vmul.f32 %v2534, 1.0614054
        %v2663 = vmul.f32 %v2535, 1.0614054
        %v2664 = vmul.f32 %v2536, 1.0614054
        %v2665 = vmul.f32 %v2537, 1.0614054
        %v2666 = vmul.f32 %v2538, 1.0614054
        %v2667 = vmul.f32 %v2539, 1.0614054
        %v2668 = vmul.f32 %v2540, 1.0614054
        %v2669 = vmul.f32 %v2541, 1.0614054
        %v2670 = vmul.f32 %v2542, 1.0614054
        %v2671 = vmul.f32 %v2543, 1.0614054
        %v2672 = vmul.f32 %v2544, 1.0614054
        %v2673 = vmul.f32 %v2545, 1.0614054
        %v2674 = vmul.f32 %v2546, 1.0614054
        %v2675 = vmul.f32 %v2547, 1.0614054
        %v2676 = vmul.f32 %v2548, 1.0614054
        %v2677 = vmul.f32 %v2549, 1.0614054
        %v2678 = vmul.f32 %v2550, 1.0614054
        %v2679 = vmul.f32 %v2551, 1.0614054
        %v2680 = vmul.f32 %v2552, 1.0614054
        %v2681 = vmul.f32 %v2553, 1.0614054
        %v2682 = vmul.f32 %v2554, 1.0614054
        %v2683 = vmul.f32 %v2555, 1.0614054
        %v2684 = vmul.f32 %v2556, 1.0614054
        %v2685 = vmul.f32 %v2557, 1.0614054
        %v2686 = vmul.f32 %v2558, 1.0614054
        %v2687 = vmul.f32 %v2559, 1.0614054
        %v2688 = vmul.f32 %v2560, 1.0614054
        %v2689 = vmul.f32 %v2561, 1.0614054
        %v2690 = vmul.f32 %v2562, 1.0614054
        %v2691 = vmul.f32 %v2563, 1.0614054
        %v2692 = vmul.f32 %v2564, 1.0614054
        %v2693 = vmul.f32 %v2565, 1.0614054
        %v2694 = vmul.f32 %v2566, 1.0614054
        %v2695 = vmul.f32 %v2567, 1.0614054
        %v2696 = vmul.f32 %v2568, 1.0614054
        %v2697 = vmul.f32 %v2569, 1.0614054
        %v2698 = vmul.f32 %v2570, 1.0614054
        %v2699 = vmul.f32 %v2571, 1.0614054
        %v2700 = vmul.f32 %v2572, 1.0614054
        %v2701 = vmul.f32 %v2573, 1.0614054
        %v2702 = vmul.f32 %v2574, 1.0614054
        %v2703 = vmul.f32 %v2575, 1.0614054
        %v2704 = vmul.f32 %v2576, 1.0614054
        %v2705 = vmul.f32 %v2577, 1.0614054
        %v2706 = vmul.f32 %v2578, 1.0614054
        %v2707 = vmul.f32 %v2579, 1.0614054
        %v2708 = vmul.f32 %v2580, 1.0614054
        %v2709 = vmul.f32 %v2581, 1.0614054
        %v2710 = vmul.f32 %v2582, 1.0614054
        %v2711 = vmul.f32 %v2583, 1.0614054
        %v2712 = vmul.f32 %v2584, 1.0614054
        %v2713 = vmul.f32 %v2585, 1.0614054
        %v2714 = vmul.f32 %v2586, 1.0614054
        %v2715 = vmul.f32 %v2587, 1.0614054
        %v2716 = vmul.f32 %v2588, 1.0614054
        %v2717 = vmul.f32 %v2589, 1.0614054
        %v2718 = vmul.f32 %v2590, 1.0614054
        %v2719 = vmul.f32 %v2591, 1.0614054
        %v2720 = vmul.f32 %v2592, 1.0614054
        %v2721 = vmul.f32 %v2593, 1.0614054
        %v2722 = vmul.f32 %v2594, 1.0614054
        %v2723 = vmul.f32 %v2595, 1.0614054
        %v2724 = vmul.f32 %v2596, 1.0614054
        %v2725 = vmul.f32 %v2597, 1.0614054
        %v2726 = vmul.f32 %v2598, 1.0614054
        %v2727 = vmul.f32 %v2599, 1.0614054
        %v2728 = vmul.f32 %v2600, 1.0614054
        %v2729 = vmul.f32 %v2601, 1.0614054
        %v2730 = vmul.f32 %v2602, 1.0614054
        %v2731 = vmul.f32 %v2603, 1.0614054
        %v2732 = vmul.f32 %v2604, 1.0614054
        %v2733 = vmul.f32 %v2605, 1.0614054
        %v2734 = vmul.f32 %v2606, 1.0614054
        %v2735 = vmul.f32 %v2607, 1.0614054
        %v2736 = vmul.f32 %v2608, 1.0614054
        %v2737 = vmul.f32 %v2609, 1.0614054
        %v2738 = vmul.f32 %v2610, 1.0614054
        %v2739 = vadd.f32 %v2611, -1.4531521
        %v2740 = vadd.f32 %v2612, -1.4531521
        %v2741 = vadd.f32 %v2613, -1.4531521
        %v2742 = vadd.f32 %v2614, -1.4531521
        %v2743 = vadd.f32 %v2615, -1.4531521
        %v2744 = vadd.f32 %v2616, -1.4531521
        %v2745 = vadd.f32 %v2617, -1.4531521
        %v2746 = vadd.f32 %v2618, -1.4531521
        %v2747 = vadd.f32 %v2619, -1.4531521
        %v2748 = vadd.f32 %v2620, -1.4531521
        %v2749 = vadd.f32 %v2621, -1.4531521
        %v2750 = vadd.f32 %v2622, -1.4531521
        %v2751 = vadd.f32 %v2623, -1.4531521
        %v2752 = vadd.f32 %v2624, -1.4531521
        %v2753 = vadd.f32 %v2625, -1.4531521
        %v2754 = vadd.f32 %v2626, -1.4531521
        %v2755 = vadd.f32 %v2627, -1.4531521
        %v2756 = vadd.f32 %v2628, -1.4531521
        %v2757 = vadd.f32 %v2629, -1.4531521
        %v2758 = vadd.f32 %v2630, -1.4531521
        %v2759 = vadd.f32 %v2631, -1.4531521
        %v2760 = vadd.f32 %v2632, -1.4531521
        %v2761 = vadd.f32 %v2633, -1.4531521
        %v2762 = vadd.f32 %v2634, -1.4531521
        %v2763 = vadd.f32 %v2635, -1.4531521
        %v2764 = vadd.f32 %v2636, -1.4531521
        %v2765 = vadd.f32 %v2637, -1.4531521
        %v2766 = vadd.f32 %v2638, -1.4531521
        %v2767 = vadd.f32 %v2639, -1.4531521
        %v2768 = vadd.f32 %v2640, -1.4531521
        %v2769 = vadd.f32 %v2641, -1.4531521
        %v2770 = vadd.f32 %v2642, -1.4531521
        %v2771 = vadd.f32 %v2643, -1.4531521
        %v2772 = vadd.f32 %v2644, -1.4531521
        %v2773 = vadd.f32 %v2645, -1.4531521
        %v2774 = vadd.f32 %v2646, -1.4531521
        %v2775 = vadd.f32 %v2647, -1.4531521
        %v2776 = vadd.f32 %v2648, -1.4531521
        %v2777 = vadd.f32 %v2649, -1.4531521
        %v2778 = vadd.f32 %v2650, -1.4531521
        %v2779 = vadd.f32 %v2651, -1.4531521
        %v2780 = vadd.f32 %v2652, -1.4531521
        %v2781 = vadd.f32 %v2653, -1.4531521
        %v2782 = vadd.f32 %v2654, -1.4531521
        %v2783 = vadd.f32 %v2655, -1.4531521
        %v2784 = vadd.f32 %v2656, -1.4531521
        %v2785 = vadd.f32 %v2657, -1.4531521
        %v2786 = vadd.f32 %v2658, -1.4531521
        %v2787 = vadd.f32 %v2659, -1.4531521
        %v2788 = vadd.f32 %v2660, -1.4531521
        %v2789 = vadd.f32 %v2661, -1.4531521
        %v2790 = vadd.f32 %v2662, -1.4531521
        %v2791 = vadd.f32 %v2663, -1.4531521
        %v2792 = vadd.f32 %v2664, -1.4531521
        %v2793 = vadd.f32 %v2665, -1.4531521
        %v2794 = vadd.f32 %v2666, -1.4531521
        %v2795 = vadd.f32 %v2667, -1.4531521
        %v2796 = vadd.f32 %v2668, -1.4531521
        %v2797 = vadd.f32 %v2669, -1.4531521
        %v2798 = vadd.f32 %v2670, -1.4531521
        %v2799 = vadd.f32 %v2671, -1.4531521
        %v2800 = vadd.f32 %v2672, -1.4531521
        %v2801 = vadd.f32 %v2673, -1.4531521
        %v2802 = vadd.f32 %v2674, -1.4531521
        %v2803 = vadd.f32 %v2675, -1.4531521
        %v2804 = vadd.f32 %v2676, -1.4531521
        %v2805 = vadd.f32 %v2677, -1.4531521
        %v2806 = vadd.f32 %v2678, -1.4531521
        %v2807 = vadd.f32 %v2679, -1.4531521
        %v2808 = vadd.f32 %v2680, -1.4531521
        %v2809 = vadd.f32 %v2681, -1.4531521
        %v2810 = vadd.f32 %v2682, -1.4531521
        %v2811 = vadd.f32 %v2683, -1.4531521
        %v2812 = vadd.f32 %v2684, -1.4531521
        %v2813 = vadd.f32 %v2685, -1.4531521
        %v2814 = vadd.f32 %v2686, -1.4531521
        %v2815 = vadd.f32 %v2687, -1.4531521
        %v2816 = vadd.f32 %v2688, -1.4531521
        %v2817 = vadd.f32 %v2689, -1.4531521
        %v2818 = vadd.f32 %v2690, -1.4531521
        %v2819 = vadd.f32 %v2691, -1.4531521
        %v2820 = vadd.f32 %v2692, -1.4531521
        %v2821 = vadd.f32 %v2693, -1.4531521
        %v2822 = vadd.f32 %v2694, -1.4531521
        %v2823 = vadd.f32 %v2695, -1.4531521
        %v2824 = vadd.f32 %v2696, -1.4531521
        %v2825 = vadd.f32 %v2697, -1.4531521
        %v2826 = vadd.f32 %v2698, -1.4531521
        %v2827 = vadd.f32 %v2699, -1.4531521
        %v2828 = vadd.f32 %v2700, -1.4531521
        %v2829 = vadd.f32 %v2701, -1.4531521
        %v2830 = vadd.f32 %v2702, -1.4531521
        %v2831 = vadd.f32 %v2703, -1.4531521
        %v2832 = vadd.f32 %v2704, -1.4531521
        %v2833 = vadd.f32 %v2705, -1.4531521
        %v2834 = vadd.f32 %v2706, -1.4531521
        %v2835 = vadd.f32 %v2707, -1.4531521
        %v2836 = vadd.f32 %v2708, -1.4531521
        %v2837 = vadd.f32 %v2709, -1.4531521
        %v2838 = vadd.f32 %v2710, -1.4531521
        %v2839 = vadd.f32 %v2711, -1.4531521
        %v2840 = vadd.f32 %v2712, -1.4531521
        %v2841 = vadd.f32 %v2713, -1.4531521
        %v2842 = vadd.f32 %v2714, -1.4531521
        %v2843 = vadd.f32 %v2715, -1.4531521
        %v2844 = vadd.f32 %v2716, -1.4531521
        %v2845 = vadd.f32 %v2717, -1.4531521
        %v2846 = vadd.f32 %v2718, -1.4531521
        %v2847 = vadd.f32 %v2719, -1.4531521
        %v2848 = vadd.f32 %v2720, -1.4531521
        %v2849 = vadd.f32 %v2721, -1.4531521
        %v2850 = vadd.f32 %v2722, -1.4531521
        %v2851 = vadd.f32 %v2723, -1.4531521
        %v2852 = vadd.f32 %v2724, -1.4531521
        %v2853 = vadd.f32 %v2725, -1.4531521
        %v2854 = vadd.f32 %v2726, -1.4531521
        %v2855 = vadd.f32 %v2727, -1.4531521
        %v2856 = vadd.f32 %v2728, -1.4531521
        %v2857 = vadd.f32 %v2729, -1.4531521
        %v2858 = vadd.f32 %v2730, -1.4531521
        %v2859 = vadd.f32 %v2731, -1.4531521
        %v2860 = vadd.f32 %v2732, -1.4531521
        %v2861 = vadd.f32 %v2733, -1.4531521
        %v2862 = vadd.f32 %v2734, -1.4531521
        %v2863 = vadd.f32 %v2735, -1.4531521
        %v2864 = vadd.f32 %v2736, -1.4531521
        %v2865 = vadd.f32 %v2737, -1.4531521
        %v2866 = vadd.f32 %v2738, -1.4531521
        %v2867 = vmul.f32 %v2739, %v2483
        %v2868 = vmul.f32 %v2740, %v2484
        %v2869 = vmul.f32 %v2741, %v2485
        %v2870 = vmul.f32 %v2742, %v2486
        %v2871 = vmul.f32 %v2743, %v2487
        %v2872 = vmul.f32 %v2744, %v2488
        %v2873 = vmul.f32 %v2745, %v2489
        %v2874 = vmul.f32 %v2746, %v2490
        %v2875 = vmul.f32 %v2747, %v2491
        %v2876 = vmul.f32 %v2748, %v2492
        %v2877 = vmul.f32 %v2749, %v2493
        %v2878 = vmul.f32 %v2750, %v2494
        %v2879 = vmul.f32 %v2751, %v2495
        %v2880 = vmul.f32 %v2752, %v2496
        %v2881 = vmul.f32 %v2753, %v2497
        %v2882 = vmul.f32 %v2754, %v2498
        %v2883 = vmul.f32 %v2755, %v2499
        %v2884 = vmul.f32 %v2756, %v2500
        %v2885 = vmul.f32 %v2757, %v2501
        %v2886 = vmul.f32 %v2758, %v2502
        %v2887 = vmul.f32 %v2759, %v2503
        %v2888 = vmul.f32 %v2760, %v2504
        %v2889 = vmul.f32 %v2761, %v2505
        %v2890 = vmul.f32 %v2762, %v2506
        %v2891 = vmul.f32 %v2763, %v2507
        %v2892 = vmul.f32 %v2764, %v2508
        %v2893 = vmul.f32 %v2765, %v2509
        %v2894 = vmul.f32 %v2766, %v2510
        %v2895 = vmul.f32 %v2767, %v2511
        %v2896 = vmul.f32 %v2768, %v2512
        %v2897 = vmul.f32 %v2769, %v2513
        %v2898 = vmul.f32 %v2770, %v2514
        %v2899 = vmul.f32 %v2771, %v2515
        %v2900 = vmul.f32 %v2772, %v2516
        %v2901 = vmul.f32 %v2773, %v2517
        %v2902 = vmul.f32 %v2774, %v2518
        %v2903 = vmul.f32 %v2775, %v2519
        %v2904 = vmul.f32 %v2776, %v2520
        %v2905 = vmul.f32 %v2777, %v2521
        %v2906 = vmul.f32 %v2778, %v2522
        %v2907 = vmul.f32 %v2779, %v2523
        %v2908 = vmul.f32 %v2780, %v2524
        %v2909 = vmul.f32 %v2781, %v2525
        %v2910 = vmul.f32 %v2782, %v2526
        %v2911 = vmul.f32 %v2783, %v2527
        %v2912 = vmul.f32 %v2784, %v2528
        %v2913 = vmul.f32 %v2785, %v2529
        %v2914 = vmul.f32 %v2786, %v2530
        %v2915 = vmul.f32 %v2787, %v2531
        %v2916 = vmul.f32 %v2788, %v2532
        %v2917 = vmul.f32 %v2789, %v2533
        %v2918 = vmul.f32 %v2790, %v2534
        %v2919 = vmul.f32 %v2791, %v2535
        %v2920 = vmul.f32 %v2792, %v2536
        %v2921 = vmul.f32 %v2793, %v2537
        %v2922 = vmul.f32 %v2794, %v2538
        %v2923 = vmul.f32 %v2795, %v2539
        %v2924 = vmul.f32 %v2796, %v2540
        %v2925 = vmul.f32 %v2797, %v2541
        %v2926 = vmul.f32 %v2798, %v2542
        %v2927 = vmul.f32 %v2799, %v2543
        %v2928 = vmul.f32 %v2800, %v2544
        %v2929 = vmul.f32 %v2801, %v2545
        %v2930 = vmul.f32 %v2802, %v2546
        %v2931 = vmul.f32 %v2803, %v2547
        %v2932 = vmul.f32 %v2804, %v2548
        %v2933 = vmul.f32 %v2805, %v2549
        %v2934 = vmul.f32 %v2806, %v2550
        %v2935 = vmul.f32 %v2807, %v2551
        %v2936 = vmul.f32 %v2808, %v2552
        %v2937 = vmul.f32 %v2809, %v2553
        %v2938 = vmul.f32 %v2810, %v2554
        %v2939 = vmul.f32 %v2811, %v2555
        %v2940 = vmul.f32 %v2812, %v2556
        %v2941 = vmul.f32 %v2813, %v2557
        %v2942 = vmul.f32 %v2814, %v2558
        %v2943 = vmul.f32 %v2815, %v2559
        %v2944 = vmul.f32 %v2816, %v2560
        %v2945 = vmul.f32 %v2817, %v2561
        %v2946 = vmul.f32 %v2818, %v2562
        %v2947 = vmul.f32 %v2819, %v2563
        %v2948 = vmul.f32 %v2820, %v2564
        %v2949 = vmul.f32 %v2821, %v2565
        %v2950 = vmul.f32 %v2822, %v2566
        %v2951 = vmul.f32 %v2823, %v2567
        %v2952 = vmul.f32 %v2824, %v2568
        %v2953 = vmul.f32 %v2825, %v2569
        %v2954 = vmul.f32 %v2826, %v2570
        %v2955 = vmul.f32 %v2827, %v2571
        %v2956 = vmul.f32 %v2828, %v2572
        %v2957 = vmul.f32 %v2829, %v2573
        %v2958 = vmul.f32 %v2830, %v2574
        %v2959 = vmul.f32 %v2831, %v2575
        %v2960 = vmul.f32 %v2832, %v2576
        %v2961 = vmul.f32 %v2833, %v2577
        %v2962 = vmul.f32 %v2834, %v2578
        %v2963 = vmul.f32 %v2835, %v2579
        %v2964 = vmul.f32 %v2836, %v2580
        %v2965 = vmul.f32 %v2837, %v2581
        %v2966 = vmul.f32 %v2838, %v2582
        %v2967 = vmul.f32 %v2839, %v2583
        %v2968 = vmul.f32 %v2840, %v2584
        %v2969 = vmul.f32 %v2841, %v2585
        %v2970 = vmul.f32 %v2842, %v2586
        %v2971 = vmul.f32 %v2843, %v2587
        %v2972 = vmul.f32 %v2844, %v2588
        %v2973 = vmul.f32 %v2845, %v2589
        %v2974 = vmul.f32 %v2846, %v2590
        %v2975 = vmul.f32 %v2847, %v2591
        %v2976 = vmul.f32 %v2848, %v2592
        %v2977 = vmul.f32 %v2849, %v2593
        %v2978 = vmul.f32 %v2850, %v2594
        %v2979 = vmul.f32 %v2851, %v2595
        %v2980 = vmul.f32 %v2852, %v2596
        %v2981 = vmul.f32 %v2853, %v2597
        %v2982 = vmul.f32 %v2854, %v2598
        %v2983 = vmul.f32 %v2855, %v2599
        %v2984 = vmul.f32 %v2856, %v2600
        %v2985 = vmul.f32 %v2857, %v2601
        %v2986 = vmul.f32 %v2858, %v2602
        %v2987 = vmul.f32 %v2859, %v2603
        %v2988 = vmul.f32 %v2860, %v2604
        %v2989 = vmul.f32 %v2861, %v2605
        %v2990 = vmul.f32 %v2862, %v2606
        %v2991 = vmul.f32 %v2863, %v2607
        %v2992 = vmul.f32 %v2864, %v2608
        %v2993 = vmul.f32 %v2865, %v2609
        %v2994 = vmul.f32 %v2866, %v2610
        %v2995 = vadd.f32 %v2867, 1.4214138
        %v2996 = vadd.f32 %v2868, 1.4214138
        %v2997 = vadd.f32 %v2869, 1.4214138
        %v2998 = vadd.f32 %v2870, 1.4214138
        %v2999 = vadd.f32 %v2871, 1.4214138
        %v3000 = vadd.f32 %v2872, 1.4214138
        %v3001 = vadd.f32 %v2873, 1.4214138
        %v3002 = vadd.f32 %v2874, 1.4214138
        %v3003 = vadd.f32 %v2875, 1.4214138
        %v3004 = vadd.f32 %v2876, 1.4214138
        %v3005 = vadd.f32 %v2877, 1.4214138
        %v3006 = vadd.f32 %v2878, 1.4214138
        %v3007 = vadd.f32 %v2879, 1.4214138
        %v3008 = vadd.f32 %v2880, 1.4214138
        %v3009 = vadd.f32 %v2881, 1.4214138
        %v3010 = vadd.f32 %v2882, 1.4214138
        %v3011 = vadd.f32 %v2883, 1.4214138
        %v3012 = vadd.f32 %v2884, 1.4214138
        %v3013 = vadd.f32 %v2885, 1.4214138
        %v3014 = vadd.f32 %v2886, 1.4214138
        %v3015 = vadd.f32 %v2887, 1.4214138
        %v3016 = vadd.f32 %v2888, 1.4214138
        %v3017 = vadd.f32 %v2889, 1.4214138
        %v3018 = vadd.f32 %v2890, 1.4214138
        %v3019 = vadd.f32 %v2891, 1.4214138
        %v3020 = vadd.f32 %v2892, 1.4214138
        %v3021 = vadd.f32 %v2893, 1.4214138
        %v3022 = vadd.f32 %v2894, 1.4214138
        %v3023 = vadd.f32 %v2895, 1.4214138
        %v3024 = vadd.f32 %v2896, 1.4214138
        %v3025 = vadd.f32 %v2897, 1.4214138
        %v3026 = vadd.f32 %v2898, 1.4214138
        %v3027 = vadd.f32 %v2899, 1.4214138
        %v3028 = vadd.f32 %v2900, 1.4214138
        %v3029 = vadd.f32 %v2901, 1.4214138
        %v3030 = vadd.f32 %v2902, 1.4214138
        %v3031 = vadd.f32 %v2903, 1.4214138
        %v3032 = vadd.f32 %v2904, 1.4214138
        %v3033 = vadd.f32 %v2905, 1.4214138
        %v3034 = vadd.f32 %v2906, 1.4214138
        %v3035 = vadd.f32 %v2907, 1.4214138
        %v3036 = vadd.f32 %v2908, 1.4214138
        %v3037 = vadd.f32 %v2909, 1.4214138
        %v3038 = vadd.f32 %v2910, 1.4214138
        %v3039 = vadd.f32 %v2911, 1.4214138
        %v3040 = vadd.f32 %v2912, 1.4214138
        %v3041 = vadd.f32 %v2913, 1.4214138
        %v3042 = vadd.f32 %v2914, 1.4214138
        %v3043 = vadd.f32 %v2915, 1.4214138
        %v3044 = vadd.f32 %v2916, 1.4214138
        %v3045 = vadd.f32 %v2917, 1.4214138
        %v3046 = vadd.f32 %v2918, 1.4214138
        %v3047 = vadd.f32 %v2919, 1.4214138
        %v3048 = vadd.f32 %v2920, 1.4214138
        %v3049 = vadd.f32 %v2921, 1.4214138
        %v3050 = vadd.f32 %v2922, 1.4214138
        %v3051 = vadd.f32 %v2923, 1.4214138
        %v3052 = vadd.f32 %v2924, 1.4214138
        %v3053 = vadd.f32 %v2925, 1.4214138
        %v3054 = vadd.f32 %v2926, 1.4214138
        %v3055 = vadd.f32 %v2927, 1.4214138
        %v3056 = vadd.f32 %v2928, 1.4214138
        %v3057 = vadd.f32 %v2929, 1.4214138
        %v3058 = vadd.f32 %v2930, 1.4214138
        %v3059 = vadd.f32 %v2931, 1.4214138
        %v3060 = vadd.f32 %v2932, 1.4214138
        %v3061 = vadd.f32 %v2933, 1.4214138
        %v3062 = vadd.f32 %v2934, 1.4214138
        %v3063 = vadd.f32 %v2935, 1.4214138
        %v3064 = vadd.f32 %v2936, 1.4214138
        %v3065 = vadd.f32 %v2937, 1.4214138
        %v3066 = vadd.f32 %v2938, 1.4214138
        %v3067 = vadd.f32 %v2939, 1.4214138
        %v3068 = vadd.f32 %v2940, 1.4214138
        %v3069 = vadd.f32 %v2941, 1.4214138
        %v3070 = vadd.f32 %v2942, 1.4214138
        %v3071 = vadd.f32 %v2943, 1.4214138
        %v3072 = vadd.f32 %v2944, 1.4214138
        %v3073 = vadd.f32 %v2945, 1.4214138
        %v3074 = vadd.f32 %v2946, 1.4214138
        %v3075 = vadd.f32 %v2947, 1.4214138
        %v3076 = vadd.f32 %v2948, 1.4214138
        %v3077 = vadd.f32 %v2949, 1.4214138
        %v3078 = vadd.f32 %v2950, 1.4214138
        %v3079 = vadd.f32 %v2951, 1.4214138
        %v3080 = vadd.f32 %v2952, 1.4214138
        %v3081 = vadd.f32 %v2953, 1.4214138
        %v3082 = vadd.f32 %v2954, 1.4214138
        %v3083 = vadd.f32 %v2955, 1.4214138
        %v3084 = vadd.f32 %v2956, 1.4214138
        %v3085 = vadd.f32 %v2957, 1.4214138
        %v3086 = vadd.f32 %v2958, 1.4214138
        %v3087 = vadd.f32 %v2959, 1.4214138
        %v3088 = vadd.f32 %v2960, 1.4214138
        %v3089 = vadd.f32 %v2961, 1.4214138
        %v3090 = vadd.f32 %v2962, 1.4214138
        %v3091 = vadd.f32 %v2963, 1.4214138
        %v3092 = vadd.f32 %v2964, 1.4214138
        %v3093 = vadd.f32 %v2965, 1.4214138
        %v3094 = vadd.f32 %v2966, 1.4214138
        %v3095 = vadd.f32 %v2967, 1.4214138
        %v3096 = vadd.f32 %v2968, 1.4214138
        %v3097 = vadd.f32 %v2969, 1.4214138
        %v3098 = vadd.f32 %v2970, 1.4214138
        %v3099 = vadd.f32 %v2971, 1.4214138
        %v3100 = vadd.f32 %v2972, 1.4214138
        %v3101 = vadd.f32 %v2973, 1.4214138
        %v3102 = vadd.f32 %v2974, 1.4214138
        %v3103 = vadd.f32 %v2975, 1.4214138
        %v3104 = vadd.f32 %v2976, 1.4214138
        %v3105 = vadd.f32 %v2977, 1.4214138
        %v3106 = vadd.f32 %v2978, 1.4214138
        %v3107 = vadd.f32 %v2979, 1.4214138
        %v3108 = vadd.f32 %v2980, 1.4214138
        %v3109 = vadd.f32 %v2981, 1.4214138
        %v3110 = vadd.f32 %v2982, 1.4214138
        %v3111 = vadd.f32 %v2983, 1.4214138
        %v3112 = vadd.f32 %v2984, 1.4214138
        %v3113 = vadd.f32 %v2985, 1.4214138
        %v3114 = vadd.f32 %v2986, 1.4214138
        %v3115 = vadd.f32 %v2987, 1.4214138
        %v3116 = vadd.f32 %v2988, 1.4214138
        %v3117 = vadd.f32 %v2989, 1.4214138
        %v3118 = vadd.f32 %v2990, 1.4214138
        %v3119 = vadd.f32 %v2991, 1.4214138
        %v3120 = vadd.f32 %v2992, 1.4214138
        %v3121 = vadd.f32 %v2993, 1.4214138
        %v3122 = vadd.f32 %v2994, 1.4214138
        %v3123 = vmul.f32 %v2995, %v2483
        %v3124 = vmul.f32 %v2996, %v2484
        %v3125 = vmul.f32 %v2997, %v2485
        %v3126 = vmul.f32 %v2998, %v2486
        %v3127 = vmul.f32 %v2999, %v2487
        %v3128 = vmul.f32 %v3000, %v2488
        %v3129 = vmul.f32 %v3001, %v2489
        %v3130 = vmul.f32 %v3002, %v2490
        %v3131 = vmul.f32 %v3003, %v2491
        %v3132 = vmul.f32 %v3004, %v2492
        %v3133 = vmul.f32 %v3005, %v2493
        %v3134 = vmul.f32 %v3006, %v2494
        %v3135 = vmul.f32 %v3007, %v2495
        %v3136 = vmul.f32 %v3008, %v2496
        %v3137 = vmul.f32 %v3009, %v2497
        %v3138 = vmul.f32 %v3010, %v2498
        %v3139 = vmul.f32 %v3011, %v2499
        %v3140 = vmul.f32 %v3012, %v2500
        %v3141 = vmul.f32 %v3013, %v2501
        %v3142 = vmul.f32 %v3014, %v2502
        %v3143 = vmul.f32 %v3015, %v2503
        %v3144 = vmul.f32 %v3016, %v2504
        %v3145 = vmul.f32 %v3017, %v2505
        %v3146 = vmul.f32 %v3018, %v2506
        %v3147 = vmul.f32 %v3019, %v2507
        %v3148 = vmul.f32 %v3020, %v2508
        %v3149 = vmul.f32 %v3021, %v2509
        %v3150 = vmul.f32 %v3022, %v2510
        %v3151 = vmul.f32 %v3023, %v2511
        %v3152 = vmul.f32 %v3024, %v2512
        %v3153 = vmul.f32 %v3025, %v2513
        %v3154 = vmul.f32 %v3026, %v2514
        %v3155 = vmul.f32 %v3027, %v2515
        %v3156 = vmul.f32 %v3028, %v2516
        %v3157 = vmul.f32 %v3029, %v2517
        %v3158 = vmul.f32 %v3030, %v2518
        %v3159 = vmul.f32 %v3031, %v2519
        %v3160 = vmul.f32 %v3032, %v2520
        %v3161 = vmul.f32 %v3033, %v2521
        %v3162 = vmul.f32 %v3034, %v2522
        %v3163 = vmul.f32 %v3035, %v2523
        %v3164 = vmul.f32 %v3036, %v2524
        %v3165 = vmul.f32 %v3037, %v2525
        %v3166 = vmul.f32 %v3038, %v2526
        %v3167 = vmul.f32 %v3039, %v2527
        %v3168 = vmul.f32 %v3040, %v2528
        %v3169 = vmul.f32 %v3041, %v2529
        %v3170 = vmul.f32 %v3042, %v2530
        %v3171 = vmul.f32 %v3043, %v2531
        %v3172 = vmul.f32 %v3044, %v2532
        %v3173 = vmul.f32 %v3045, %v2533
        %v3174 = vmul.f32 %v3046, %v2534
        %v3175 = vmul.f32 %v3047, %v2535
        %v3176 = vmul.f32 %v3048, %v2536
        %v3177 = vmul.f32 %v3049, %v2537
        %v3178 = vmul.f32 %v3050, %v2538
        %v3179 = vmul.f32 %v3051, %v2539
        %v3180 = vmul.f32 %v3052, %v2540
        %v3181 = vmul.f32 %v3053, %v2541
        %v3182 = vmul.f32 %v3054, %v2542
        %v3183 = vmul.f32 %v3055, %v2543
        %v3184 = vmul.f32 %v3056, %v2544
        %v3185 = vmul.f32 %v3057, %v2545
        %v3186 = vmul.f32 %v3058, %v2546
        %v3187 = vmul.f32 %v3059, %v2547
        %v3188 = vmul.f32 %v3060, %v2548
        %v3189 = vmul.f32 %v3061, %v2549
        %v3190 = vmul.f32 %v3062, %v2550
        %v3191 = vmul.f32 %v3063, %v2551
        %v3192 = vmul.f32 %v3064, %v2552
        %v3193 = vmul.f32 %v3065, %v2553
        %v3194 = vmul.f32 %v3066, %v2554
        %v3195 = vmul.f32 %v3067, %v2555
        %v3196 = vmul.f32 %v3068, %v2556
        %v3197 = vmul.f32 %v3069, %v2557
        %v3198 = vmul.f32 %v3070, %v2558
        %v3199 = vmul.f32 %v3071, %v2559
        %v3200 = vmul.f32 %v3072, %v2560
        %v3201 = vmul.f32 %v3073, %v2561
        %v3202 = vmul.f32 %v3074, %v2562
        %v3203 = vmul.f32 %v3075, %v2563
        %v3204 = vmul.f32 %v3076, %v2564
        %v3205 = vmul.f32 %v3077, %v2565
        %v3206 = vmul.f32 %v3078, %v2566
        %v3207 = vmul.f32 %v3079, %v2567
        %v3208 = vmul.f32 %v3080, %v2568
        %v3209 = vmul.f32 %v3081, %v2569
        %v3210 = vmul.f32 %v3082, %v2570
        %v3211 = vmul.f32 %v3083, %v2571
        %v3212 = vmul.f32 %v3084, %v2572
        %v3213 = vmul.f32 %v3085, %v2573
        %v3214 = vmul.f32 %v3086, %v2574
        %v3215 = vmul.f32 %v3087, %v2575
        %v3216 = vmul.f32 %v3088, %v2576
        %v3217 = vmul.f32 %v3089, %v2577
        %v3218 = vmul.f32 %v3090, %v2578
        %v3219 = vmul.f32 %v3091, %v2579
        %v3220 = vmul.f32 %v3092, %v2580
        %v3221 = vmul.f32 %v3093, %v2581
        %v3222 = vmul.f32 %v3094, %v2582
        %v3223 = vmul.f32 %v3095, %v2583
        %v3224 = vmul.f32 %v3096, %v2584
        %v3225 = vmul.f32 %v3097, %v2585
        %v3226 = vmul.f32 %v3098, %v2586
        %v3227 = vmul.f32 %v3099, %v2587
        %v3228 = vmul.f32 %v3100, %v2588
        %v3229 = vmul.f32 %v3101, %v2589
        %v3230 = vmul.f32 %v3102, %v2590
        %v3231 = vmul.f32 %v3103, %v2591
        %v3232 = vmul.f32 %v3104, %v2592
        %v3233 = vmul.f32 %v3105, %v2593
        %v3234 = vmul.f32 %v3106, %v2594
        %v3235 = vmul.f32 %v3107, %v2595
        %v3236 = vmul.f32 %v3108, %v2596
        %v3237 = vmul.f32 %v3109, %v2597
        %v3238 = vmul.f32 %v3110, %v2598
        %v3239 = vmul.f32 %v3111, %v2599
        %v3240 = vmul.f32 %v3112, %v2600
        %v3241 = vmul.f32 %v3113, %v2601
        %v3242 = vmul.f32 %v3114, %v2602
        %v3243 = vmul.f32 %v3115, %v2603
        %v3244 = vmul.f32 %v3116, %v2604
        %v3245 = vmul.f32 %v3117, %v2605
        %v3246 = vmul.f32 %v3118, %v2606
        %v3247 = vmul.f32 %v3119, %v2607
        %v3248 = vmul.f32 %v3120, %v2608
        %v3249 = vmul.f32 %v3121, %v2609
        %v3250 = vmul.f32 %v3122, %v2610
        %v3251 = vadd.f32 %v3123, -0.28449672
        %v3252 = vadd.f32 %v3124, -0.28449672
        %v3253 = vadd.f32 %v3125, -0.28449672
        %v3254 = vadd.f32 %v3126, -0.28449672
        %v3255 = vadd.f32 %v3127, -0.28449672
        %v3256 = vadd.f32 %v3128, -0.28449672
        %v3257 = vadd.f32 %v3129, -0.28449672
        %v3258 = vadd.f32 %v3130, -0.28449672
        %v3259 = vadd.f32 %v3131, -0.28449672
        %v3260 = vadd.f32 %v3132, -0.28449672
        %v3261 = vadd.f32 %v3133, -0.28449672
        %v3262 = vadd.f32 %v3134, -0.28449672
        %v3263 = vadd.f32 %v3135, -0.28449672
        %v3264 = vadd.f32 %v3136, -0.28449672
        %v3265 = vadd.f32 %v3137, -0.28449672
        %v3266 = vadd.f32 %v3138, -0.28449672
        %v3267 = vadd.f32 %v3139, -0.28449672
        %v3268 = vadd.f32 %v3140, -0.28449672
        %v3269 = vadd.f32 %v3141, -0.28449672
        %v3270 = vadd.f32 %v3142, -0.28449672
        %v3271 = vadd.f32 %v3143, -0.28449672
        %v3272 = vadd.f32 %v3144, -0.28449672
        %v3273 = vadd.f32 %v3145, -0.28449672
        %v3274 = vadd.f32 %v3146, -0.28449672
        %v3275 = vadd.f32 %v3147, -0.28449672
        %v3276 = vadd.f32 %v3148, -0.28449672
        %v3277 = vadd.f32 %v3149, -0.28449672
        %v3278 = vadd.f32 %v3150, -0.28449672
        %v3279 = vadd.f32 %v3151, -0.28449672
        %v3280 = vadd.f32 %v3152, -0.28449672
        %v3281 = vadd.f32 %v3153, -0.28449672
        %v3282 = vadd.f32 %v3154, -0.28449672
        %v3283 = vadd.f32 %v3155, -0.28449672
        %v3284 = vadd.f32 %v3156, -0.28449672
        %v3285 = vadd.f32 %v3157, -0.28449672
        %v3286 = vadd.f32 %v3158, -0.28449672
        %v3287 = vadd.f32 %v3159, -0.28449672
        %v3288 = vadd.f32 %v3160, -0.28449672
        %v3289 = vadd.f32 %v3161, -0.28449672
        %v3290 = vadd.f32 %v3162, -0.28449672
        %v3291 = vadd.f32 %v3163, -0.28449672
        %v3292 = vadd.f32 %v3164, -0.28449672
        %v3293 = vadd.f32 %v3165, -0.28449672
        %v3294 = vadd.f32 %v3166, -0.28449672
        %v3295 = vadd.f32 %v3167, -0.28449672
        %v3296 = vadd.f32 %v3168, -0.28449672
        %v3297 = vadd.f32 %v3169, -0.28449672
        %v3298 = vadd.f32 %v3170, -0.28449672
        %v3299 = vadd.f32 %v3171, -0.28449672
        %v3300 = vadd.f32 %v3172, -0.28449672
        %v3301 = vadd.f32 %v3173, -0.28449672
        %v3302 = vadd.f32 %v3174, -0.28449672
        %v3303 = vadd.f32 %v3175, -0.28449672
        %v3304 = vadd.f32 %v3176, -0.28449672
        %v3305 = vadd.f32 %v3177, -0.28449672
        %v3306 = vadd.f32 %v3178, -0.28449672
        %v3307 = vadd.f32 %v3179, -0.28449672
        %v3308 = vadd.f32 %v3180, -0.28449672
        %v3309 = vadd.f32 %v3181, -0.28449672
        %v3310 = vadd.f32 %v3182, -0.28449672
        %v3311 = vadd.f32 %v3183, -0.28449672
        %v3312 = vadd.f32 %v3184, -0.28449672
        %v3313 = vadd.f32 %v3185, -0.28449672
        %v3314 = vadd.f32 %v3186, -0.28449672
        %v3315 = vadd.f32 %v3187, -0.28449672
        %v3316 = vadd.f32 %v3188, -0.28449672
        %v3317 = vadd.f32 %v3189, -0.28449672
        %v3318 = vadd.f32 %v3190, -0.28449672
        %v3319 = vadd.f32 %v3191, -0.28449672
        %v3320 = vadd.f32 %v3192, -0.28449672
        %v3321 = vadd.f32 %v3193, -0.28449672
        %v3322 = vadd.f32 %v3194, -0.28449672
        %v3323 = vadd.f32 %v3195, -0.28449672
        %v3324 = vadd.f32 %v3196, -0.28449672
        %v3325 = vadd.f32 %v3197, -0.28449672
        %v3326 = vadd.f32 %v3198, -0.28449672
        %v3327 = vadd.f32 %v3199, -0.28449672
        %v3328 = vadd.f32 %v3200, -0.28449672
        %v3329 = vadd.f32 %v3201, -0.28449672
        %v3330 = vadd.f32 %v3202, -0.28449672
        %v3331 = vadd.f32 %v3203, -0.28449672
        %v3332 = vadd.f32 %v3204, -0.28449672
        %v3333 = vadd.f32 %v3205, -0.28449672
        %v3334 = vadd.f32 %v3206, -0.28449672
        %v3335 = vadd.f32 %v3207, -0.28449672
        %v3336 = vadd.f32 %v3208, -0.28449672
        %v3337 = vadd.f32 %v3209, -0.28449672
        %v3338 = vadd.f32 %v3210, -0.28449672
        %v3339 = vadd.f32 %v3211, -0.28449672
        %v3340 = vadd.f32 %v3212, -0.28449672
        %v3341 = vadd.f32 %v3213, -0.28449672
        %v3342 = vadd.f32 %v3214, -0.28449672
        %v3343 = vadd.f32 %v3215, -0.28449672
        %v3344 = vadd.f32 %v3216, -0.28449672
        %v3345 = vadd.f32 %v3217, -0.28449672
        %v3346 = vadd.f32 %v3218, -0.28449672
        %v3347 = vadd.f32 %v3219, -0.28449672
        %v3348 = vadd.f32 %v3220, -0.28449672
        %v3349 = vadd.f32 %v3221, -0.28449672
        %v3350 = vadd.f32 %v3222, -0.28449672
        %v3351 = vadd.f32 %v3223, -0.28449672
        %v3352 = vadd.f32 %v3224, -0.28449672
        %v3353 = vadd.f32 %v3225, -0.28449672
        %v3354 = vadd.f32 %v3226, -0.28449672
        %v3355 = vadd.f32 %v3227, -0.28449672
        %v3356 = vadd.f32 %v3228, -0.28449672
        %v3357 = vadd.f32 %v3229, -0.28449672
        %v3358 = vadd.f32 %v3230, -0.28449672
        %v3359 = vadd.f32 %v3231, -0.28449672
        %v3360 = vadd.f32 %v3232, -0.28449672
        %v3361 = vadd.f32 %v3233, -0.28449672
        %v3362 = vadd.f32 %v3234, -0.28449672
        %v3363 = vadd.f32 %v3235, -0.28449672
        %v3364 = vadd.f32 %v3236, -0.28449672
        %v3365 = vadd.f32 %v3237, -0.28449672
        %v3366 = vadd.f32 %v3238, -0.28449672
        %v3367 = vadd.f32 %v3239, -0.28449672
        %v3368 = vadd.f32 %v3240, -0.28449672
        %v3369 = vadd.f32 %v3241, -0.28449672
        %v3370 = vadd.f32 %v3242, -0.28449672
        %v3371 = vadd.f32 %v3243, -0.28449672
        %v3372 = vadd.f32 %v3244, -0.28449672
        %v3373 = vadd.f32 %v3245, -0.28449672
        %v3374 = vadd.f32 %v3246, -0.28449672
        %v3375 = vadd.f32 %v3247, -0.28449672
        %v3376 = vadd.f32 %v3248, -0.28449672
        %v3377 = vadd.f32 %v3249, -0.28449672
        %v3378 = vadd.f32 %v3250, -0.28449672
        %v3379 = vmul.f32 %v3251, %v2483
        %v3380 = vmul.f32 %v3252, %v2484
        %v3381 = vmul.f32 %v3253, %v2485
        %v3382 = vmul.f32 %v3254, %v2486
        %v3383 = vmul.f32 %v3255, %v2487
        %v3384 = vmul.f32 %v3256, %v2488
        %v3385 = vmul.f32 %v3257, %v2489
        %v3386 = vmul.f32 %v3258, %v2490
        %v3387 = vmul.f32 %v3259, %v2491
        %v3388 = vmul.f32 %v3260, %v2492
        %v3389 = vmul.f32 %v3261, %v2493
        %v3390 = vmul.f32 %v3262, %v2494
        %v3391 = vmul.f32 %v3263, %v2495
        %v3392 = vmul.f32 %v3264, %v2496
        %v3393 = vmul.f32 %v3265, %v2497
        %v3394 = vmul.f32 %v3266, %v2498
        %v3395 = vmul.f32 %v3267, %v2499
        %v3396 = vmul.f32 %v3268, %v2500
        %v3397 = vmul.f32 %v3269, %v2501
        %v3398 = vmul.f32 %v3270, %v2502
        %v3399 = vmul.f32 %v3271, %v2503
        %v3400 = vmul.f32 %v3272, %v2504
        %v3401 = vmul.f32 %v3273, %v2505
        %v3402 = vmul.f32 %v3274, %v2506
        %v3403 = vmul.f32 %v3275, %v2507
        %v3404 = vmul.f32 %v3276, %v2508
        %v3405 = vmul.f32 %v3277, %v2509
        %v3406 = vmul.f32 %v3278, %v2510
        %v3407 = vmul.f32 %v3279, %v2511
        %v3408 = vmul.f32 %v3280, %v2512
        %v3409 = vmul.f32 %v3281, %v2513
        %v3410 = vmul.f32 %v3282, %v2514
        %v3411 = vmul.f32 %v3283, %v2515
        %v3412 = vmul.f32 %v3284, %v2516
        %v3413 = vmul.f32 %v3285, %v2517
        %v3414 = vmul.f32 %v3286, %v2518
        %v3415 = vmul.f32 %v3287, %v2519
        %v3416 = vmul.f32 %v3288, %v2520
        %v3417 = vmul.f32 %v3289, %v2521
        %v3418 = vmul.f32 %v3290, %v2522
        %v3419 = vmul.f32 %v3291, %v2523
        %v3420 = vmul.f32 %v3292, %v2524
        %v3421 = vmul.f32 %v3293, %v2525
        %v3422 = vmul.f32 %v3294, %v2526
        %v3423 = vmul.f32 %v3295, %v2527
        %v3424 = vmul.f32 %v3296, %v2528
        %v3425 = vmul.f32 %v3297, %v2529
        %v3426 = vmul.f32 %v3298, %v2530
        %v3427 = vmul.f32 %v3299, %v2531
        %v3428 = vmul.f32 %v3300, %v2532
        %v3429 = vmul.f32 %v3301, %v2533
        %v3430 = vmul.f32 %v3302, %v2534
        %v3431 = vmul.f32 %v3303, %v2535
        %v3432 = vmul.f32 %v3304, %v2536
        %v3433 = vmul.f32 %v3305, %v2537
        %v3434 = vmul.f32 %v3306, %v2538
        %v3435 = vmul.f32 %v3307, %v2539
        %v3436 = vmul.f32 %v3308, %v2540
        %v3437 = vmul.f32 %v3309, %v2541
        %v3438 = vmul.f32 %v3310, %v2542
        %v3439 = vmul.f32 %v3311, %v2543
        %v3440 = vmul.f32 %v3312, %v2544
        %v3441 = vmul.f32 %v3313, %v2545
        %v3442 = vmul.f32 %v3314, %v2546
        %v3443 = vmul.f32 %v3315, %v2547
        %v3444 = vmul.f32 %v3316, %v2548
        %v3445 = vmul.f32 %v3317, %v2549
        %v3446 = vmul.f32 %v3318, %v2550
        %v3447 = vmul.f32 %v3319, %v2551
        %v3448 = vmul.f32 %v3320, %v2552
        %v3449 = vmul.f32 %v3321, %v2553
        %v3450 = vmul.f32 %v3322, %v2554
        %v3451 = vmul.f32 %v3323, %v2555
        %v3452 = vmul.f32 %v3324, %v2556
        %v3453 = vmul.f32 %v3325, %v2557
        %v3454 = vmul.f32 %v3326, %v2558
        %v3455 = vmul.f32 %v3327, %v2559
        %v3456 = vmul.f32 %v3328, %v2560
        %v3457 = vmul.f32 %v3329, %v2561
        %v3458 = vmul.f32 %v3330, %v2562
        %v3459 = vmul.f32 %v3331, %v2563
        %v3460 = vmul.f32 %v3332, %v2564
        %v3461 = vmul.f32 %v3333, %v2565
        %v3462 = vmul.f32 %v3334, %v2566
        %v3463 = vmul.f32 %v3335, %v2567
        %v3464 = vmul.f32 %v3336, %v2568
        %v3465 = vmul.f32 %v3337, %v2569
        %v3466 = vmul.f32 %v3338, %v2570
        %v3467 = vmul.f32 %v3339, %v2571
        %v3468 = vmul.f32 %v3340, %v2572
        %v3469 = vmul.f32 %v3341, %v2573
        %v3470 = vmul.f32 %v3342, %v2574
        %v3471 = vmul.f32 %v3343, %v2575
        %v3472 = vmul.f32 %v3344, %v2576
        %v3473 = vmul.f32 %v3345, %v2577
        %v3474 = vmul.f32 %v3346, %v2578
        %v3475 = vmul.f32 %v3347, %v2579
        %v3476 = vmul.f32 %v3348, %v2580
        %v3477 = vmul.f32 %v3349, %v2581
        %v3478 = vmul.f32 %v3350, %v2582
        %v3479 = vmul.f32 %v3351, %v2583
        %v3480 = vmul.f32 %v3352, %v2584
        %v3481 = vmul.f32 %v3353, %v2585
        %v3482 = vmul.f32 %v3354, %v2586
        %v3483 = vmul.f32 %v3355, %v2587
        %v3484 = vmul.f32 %v3356, %v2588
        %v3485 = vmul.f32 %v3357, %v2589
        %v3486 = vmul.f32 %v3358, %v2590
        %v3487 = vmul.f32 %v3359, %v2591
        %v3488 = vmul.f32 %v3360, %v2592
        %v3489 = vmul.f32 %v3361, %v2593
        %v3490 = vmul.f32 %v3362, %v2594
        %v3491 = vmul.f32 %v3363, %v2595
        %v3492 = vmul.f32 %v3364, %v2596
        %v3493 = vmul.f32 %v3365, %v2597
        %v3494 = vmul.f32 %v3366, %v2598
        %v3495 = vmul.f32 %v3367, %v2599
        %v3496 = vmul.f32 %v3368, %v2600
        %v3497 = vmul.f32 %v3369, %v2601
        %v3498 = vmul.f32 %v3370, %v2602
        %v3499 = vmul.f32 %v3371, %v2603
        %v3500 = vmul.f32 %v3372, %v2604
        %v3501 = vmul.f32 %v3373, %v2605
        %v3502 = vmul.f32 %v3374, %v2606
        %v3503 = vmul.f32 %v3375, %v2607
        %v3504 = vmul.f32 %v3376, %v2608
        %v3505 = vmul.f32 %v3377, %v2609
        %v3506 = vmul.f32 %v3378, %v2610
        %v3507 = vadd.f32 %v3379, 0.2548296
        %v3508 = vadd.f32 %v3380, 0.2548296
        %v3509 = vadd.f32 %v3381, 0.2548296
        %v3510 = vadd.f32 %v3382, 0.2548296
        %v3511 = vadd.f32 %v3383, 0.2548296
        %v3512 = vadd.f32 %v3384, 0.2548296
        %v3513 = vadd.f32 %v3385, 0.2548296
        %v3514 = vadd.f32 %v3386, 0.2548296
        %v3515 = vadd.f32 %v3387, 0.2548296
        %v3516 = vadd.f32 %v3388, 0.2548296
        %v3517 = vadd.f32 %v3389, 0.2548296
        %v3518 = vadd.f32 %v3390, 0.2548296
        %v3519 = vadd.f32 %v3391, 0.2548296
        %v3520 = vadd.f32 %v3392, 0.2548296
        %v3521 = vadd.f32 %v3393, 0.2548296
        %v3522 = vadd.f32 %v3394, 0.2548296
        %v3523 = vadd.f32 %v3395, 0.2548296
        %v3524 = vadd.f32 %v3396, 0.2548296
        %v3525 = vadd.f32 %v3397, 0.2548296
        %v3526 = vadd.f32 %v3398, 0.2548296
        %v3527 = vadd.f32 %v3399, 0.2548296
        %v3528 = vadd.f32 %v3400, 0.2548296
        %v3529 = vadd.f32 %v3401, 0.2548296
        %v3530 = vadd.f32 %v3402, 0.2548296
        %v3531 = vadd.f32 %v3403, 0.2548296
        %v3532 = vadd.f32 %v3404, 0.2548296
        %v3533 = vadd.f32 %v3405, 0.2548296
        %v3534 = vadd.f32 %v3406, 0.2548296
        %v3535 = vadd.f32 %v3407, 0.2548296
        %v3536 = vadd.f32 %v3408, 0.2548296
        %v3537 = vadd.f32 %v3409, 0.2548296
        %v3538 = vadd.f32 %v3410, 0.2548296
        %v3539 = vadd.f32 %v3411, 0.2548296
        %v3540 = vadd.f32 %v3412, 0.2548296
        %v3541 = vadd.f32 %v3413, 0.2548296
        %v3542 = vadd.f32 %v3414, 0.2548296
        %v3543 = vadd.f32 %v3415, 0.2548296
        %v3544 = vadd.f32 %v3416, 0.2548296
        %v3545 = vadd.f32 %v3417, 0.2548296
        %v3546 = vadd.f32 %v3418, 0.2548296
        %v3547 = vadd.f32 %v3419, 0.2548296
        %v3548 = vadd.f32 %v3420, 0.2548296
        %v3549 = vadd.f32 %v3421, 0.2548296
        %v3550 = vadd.f32 %v3422, 0.2548296
        %v3551 = vadd.f32 %v3423, 0.2548296
        %v3552 = vadd.f32 %v3424, 0.2548296
        %v3553 = vadd.f32 %v3425, 0.2548296
        %v3554 = vadd.f32 %v3426, 0.2548296
        %v3555 = vadd.f32 %v3427, 0.2548296
        %v3556 = vadd.f32 %v3428, 0.2548296
        %v3557 = vadd.f32 %v3429, 0.2548296
        %v3558 = vadd.f32 %v3430, 0.2548296
        %v3559 = vadd.f32 %v3431, 0.2548296
        %v3560 = vadd.f32 %v3432, 0.2548296
        %v3561 = vadd.f32 %v3433, 0.2548296
        %v3562 = vadd.f32 %v3434, 0.2548296
        %v3563 = vadd.f32 %v3435, 0.2548296
        %v3564 = vadd.f32 %v3436, 0.2548296
        %v3565 = vadd.f32 %v3437, 0.2548296
        %v3566 = vadd.f32 %v3438, 0.2548296
        %v3567 = vadd.f32 %v3439, 0.2548296
        %v3568 = vadd.f32 %v3440, 0.2548296
        %v3569 = vadd.f32 %v3441, 0.2548296
        %v3570 = vadd.f32 %v3442, 0.2548296
        %v3571 = vadd.f32 %v3443, 0.2548296
        %v3572 = vadd.f32 %v3444, 0.2548296
        %v3573 = vadd.f32 %v3445, 0.2548296
        %v3574 = vadd.f32 %v3446, 0.2548296
        %v3575 = vadd.f32 %v3447, 0.2548296
        %v3576 = vadd.f32 %v3448, 0.2548296
        %v3577 = vadd.f32 %v3449, 0.2548296
        %v3578 = vadd.f32 %v3450, 0.2548296
        %v3579 = vadd.f32 %v3451, 0.2548296
        %v3580 = vadd.f32 %v3452, 0.2548296
        %v3581 = vadd.f32 %v3453, 0.2548296
        %v3582 = vadd.f32 %v3454, 0.2548296
        %v3583 = vadd.f32 %v3455, 0.2548296
        %v3584 = vadd.f32 %v3456, 0.2548296
        %v3585 = vadd.f32 %v3457, 0.2548296
        %v3586 = vadd.f32 %v3458, 0.2548296
        %v3587 = vadd.f32 %v3459, 0.2548296
        %v3588 = vadd.f32 %v3460, 0.2548296
        %v3589 = vadd.f32 %v3461, 0.2548296
        %v3590 = vadd.f32 %v3462, 0.2548296
        %v3591 = vadd.f32 %v3463, 0.2548296
        %v3592 = vadd.f32 %v3464, 0.2548296
        %v3593 = vadd.f32 %v3465, 0.2548296
        %v3594 = vadd.f32 %v3466, 0.2548296
        %v3595 = vadd.f32 %v3467, 0.2548296
        %v3596 = vadd.f32 %v3468, 0.2548296
        %v3597 = vadd.f32 %v3469, 0.2548296
        %v3598 = vadd.f32 %v3470, 0.2548296
        %v3599 = vadd.f32 %v3471, 0.2548296
        %v3600 = vadd.f32 %v3472, 0.2548296
        %v3601 = vadd.f32 %v3473, 0.2548296
        %v3602 = vadd.f32 %v3474, 0.2548296
        %v3603 = vadd.f32 %v3475, 0.2548296
        %v3604 = vadd.f32 %v3476, 0.2548296
        %v3605 = vadd.f32 %v3477, 0.2548296
        %v3606 = vadd.f32 %v3478, 0.2548296
        %v3607 = vadd.f32 %v3479, 0.2548296
        %v3608 = vadd.f32 %v3480, 0.2548296
        %v3609 = vadd.f32 %v3481, 0.2548296
        %v3610 = vadd.f32 %v3482, 0.2548296
        %v3611 = vadd.f32 %v3483, 0.2548296
        %v3612 = vadd.f32 %v3484, 0.2548296
        %v3613 = vadd.f32 %v3485, 0.2548296
        %v3614 = vadd.f32 %v3486, 0.2548296
        %v3615 = vadd.f32 %v3487, 0.2548296
        %v3616 = vadd.f32 %v3488, 0.2548296
        %v3617 = vadd.f32 %v3489, 0.2548296
        %v3618 = vadd.f32 %v3490, 0.2548296
        %v3619 = vadd.f32 %v3491, 0.2548296
        %v3620 = vadd.f32 %v3492, 0.2548296
        %v3621 = vadd.f32 %v3493, 0.2548296
        %v3622 = vadd.f32 %v3494, 0.2548296
        %v3623 = vadd.f32 %v3495, 0.2548296
        %v3624 = vadd.f32 %v3496, 0.2548296
        %v3625 = vadd.f32 %v3497, 0.2548296
        %v3626 = vadd.f32 %v3498, 0.2548296
        %v3627 = vadd.f32 %v3499, 0.2548296
        %v3628 = vadd.f32 %v3500, 0.2548296
        %v3629 = vadd.f32 %v3501, 0.2548296
        %v3630 = vadd.f32 %v3502, 0.2548296
        %v3631 = vadd.f32 %v3503, 0.2548296
        %v3632 = vadd.f32 %v3504, 0.2548296
        %v3633 = vadd.f32 %v3505, 0.2548296
        %v3634 = vadd.f32 %v3506, 0.2548296
        %v3635 = vmul.f32 %v3507, %v2483
        %v3636 = vmul.f32 %v3508, %v2484
        %v3637 = vmul.f32 %v3509, %v2485
        %v3638 = vmul.f32 %v3510, %v2486
        %v3639 = vmul.f32 %v3511, %v2487
        %v3640 = vmul.f32 %v3512, %v2488
        %v3641 = vmul.f32 %v3513, %v2489
        %v3642 = vmul.f32 %v3514, %v2490
        %v3643 = vmul.f32 %v3515, %v2491
        %v3644 = vmul.f32 %v3516, %v2492
        %v3645 = vmul.f32 %v3517, %v2493
        %v3646 = vmul.f32 %v3518, %v2494
        %v3647 = vmul.f32 %v3519, %v2495
        %v3648 = vmul.f32 %v3520, %v2496
        %v3649 = vmul.f32 %v3521, %v2497
        %v3650 = vmul.f32 %v3522, %v2498
        %v3651 = vmul.f32 %v3523, %v2499
        %v3652 = vmul.f32 %v3524, %v2500
        %v3653 = vmul.f32 %v3525, %v2501
        %v3654 = vmul.f32 %v3526, %v2502
        %v3655 = vmul.f32 %v3527, %v2503
        %v3656 = vmul.f32 %v3528, %v2504
        %v3657 = vmul.f32 %v3529, %v2505
        %v3658 = vmul.f32 %v3530, %v2506
        %v3659 = vmul.f32 %v3531, %v2507
        %v3660 = vmul.f32 %v3532, %v2508
        %v3661 = vmul.f32 %v3533, %v2509
        %v3662 = vmul.f32 %v3534, %v2510
        %v3663 = vmul.f32 %v3535, %v2511
        %v3664 = vmul.f32 %v3536, %v2512
        %v3665 = vmul.f32 %v3537, %v2513
        %v3666 = vmul.f32 %v3538, %v2514
        %v3667 = vmul.f32 %v3539, %v2515
        %v3668 = vmul.f32 %v3540, %v2516
        %v3669 = vmul.f32 %v3541, %v2517
        %v3670 = vmul.f32 %v3542, %v2518
        %v3671 = vmul.f32 %v3543, %v2519
        %v3672 = vmul.f32 %v3544, %v2520
        %v3673 = vmul.f32 %v3545, %v2521
        %v3674 = vmul.f32 %v3546, %v2522
        %v3675 = vmul.f32 %v3547, %v2523
        %v3676 = vmul.f32 %v3548, %v2524
        %v3677 = vmul.f32 %v3549, %v2525
        %v3678 = vmul.f32 %v3550, %v2526
        %v3679 = vmul.f32 %v3551, %v2527
        %v3680 = vmul.f32 %v3552, %v2528
        %v3681 = vmul.f32 %v3553, %v2529
        %v3682 = vmul.f32 %v3554, %v2530
        %v3683 = vmul.f32 %v3555, %v2531
        %v3684 = vmul.f32 %v3556, %v2532
        %v3685 = vmul.f32 %v3557, %v2533
        %v3686 = vmul.f32 %v3558, %v2534
        %v3687 = vmul.f32 %v3559, %v2535
        %v3688 = vmul.f32 %v3560, %v2536
        %v3689 = vmul.f32 %v3561, %v2537
        %v3690 = vmul.f32 %v3562, %v2538
        %v3691 = vmul.f32 %v3563, %v2539
        %v3692 = vmul.f32 %v3564, %v2540
        %v3693 = vmul.f32 %v3565, %v2541
        %v3694 = vmul.f32 %v3566, %v2542
        %v3695 = vmul.f32 %v3567, %v2543
        %v3696 = vmul.f32 %v3568, %v2544
        %v3697 = vmul.f32 %v3569, %v2545
        %v3698 = vmul.f32 %v3570, %v2546
        %v3699 = vmul.f32 %v3571, %v2547
        %v3700 = vmul.f32 %v3572, %v2548
        %v3701 = vmul.f32 %v3573, %v2549
        %v3702 = vmul.f32 %v3574, %v2550
        %v3703 = vmul.f32 %v3575, %v2551
        %v3704 = vmul.f32 %v3576, %v2552
        %v3705 = vmul.f32 %v3577, %v2553
        %v3706 = vmul.f32 %v3578, %v2554
        %v3707 = vmul.f32 %v3579, %v2555
        %v3708 = vmul.f32 %v3580, %v2556
        %v3709 = vmul.f32 %v3581, %v2557
        %v3710 = vmul.f32 %v3582, %v2558
        %v3711 = vmul.f32 %v3583, %v2559
        %v3712 = vmul.f32 %v3584, %v2560
        %v3713 = vmul.f32 %v3585, %v2561
        %v3714 = vmul.f32 %v3586, %v2562
        %v3715 = vmul.f32 %v3587, %v2563
        %v3716 = vmul.f32 %v3588, %v2564
        %v3717 = vmul.f32 %v3589, %v2565
        %v3718 = vmul.f32 %v3590, %v2566
        %v3719 = vmul.f32 %v3591, %v2567
        %v3720 = vmul.f32 %v3592, %v2568
        %v3721 = vmul.f32 %v3593, %v2569
        %v3722 = vmul.f32 %v3594, %v2570
        %v3723 = vmul.f32 %v3595, %v2571
        %v3724 = vmul.f32 %v3596, %v2572
        %v3725 = vmul.f32 %v3597, %v2573
        %v3726 = vmul.f32 %v3598, %v2574
        %v3727 = vmul.f32 %v3599, %v2575
        %v3728 = vmul.f32 %v3600, %v2576
        %v3729 = vmul.f32 %v3601, %v2577
        %v3730 = vmul.f32 %v3602, %v2578
        %v3731 = vmul.f32 %v3603, %v2579
        %v3732 = vmul.f32 %v3604, %v2580
        %v3733 = vmul.f32 %v3605, %v2581
        %v3734 = vmul.f32 %v3606, %v2582
        %v3735 = vmul.f32 %v3607, %v2583
        %v3736 = vmul.f32 %v3608, %v2584
        %v3737 = vmul.f32 %v3609, %v2585
        %v3738 = vmul.f32 %v3610, %v2586
        %v3739 = vmul.f32 %v3611, %v2587
        %v3740 = vmul.f32 %v3612, %v2588
        %v3741 = vmul.f32 %v3613, %v2589
        %v3742 = vmul.f32 %v3614, %v2590
        %v3743 = vmul.f32 %v3615, %v2591
        %v3744 = vmul.f32 %v3616, %v2592
        %v3745 = vmul.f32 %v3617, %v2593
        %v3746 = vmul.f32 %v3618, %v2594
        %v3747 = vmul.f32 %v3619, %v2595
        %v3748 = vmul.f32 %v3620, %v2596
        %v3749 = vmul.f32 %v3621, %v2597
        %v3750 = vmul.f32 %v3622, %v2598
        %v3751 = vmul.f32 %v3623, %v2599
        %v3752 = vmul.f32 %v3624, %v2600
        %v3753 = vmul.f32 %v3625, %v2601
        %v3754 = vmul.f32 %v3626, %v2602
        %v3755 = vmul.f32 %v3627, %v2603
        %v3756 = vmul.f32 %v3628, %v2604
        %v3757 = vmul.f32 %v3629, %v2605
        %v3758 = vmul.f32 %v3630, %v2606
        %v3759 = vmul.f32 %v3631, %v2607
        %v3760 = vmul.f32 %v3632, %v2608
        %v3761 = vmul.f32 %v3633, %v2609
        %v3762 = vmul.f32 %v3634, %v2610
        %v3763 = vmul.f32 %v1715, %v1715
        %v3764 = vmul.f32 %v1716, %v1716
        %v3765 = vmul.f32 %v1717, %v1717
        %v3766 = vmul.f32 %v1718, %v1718
        %v3767 = vmul.f32 %v1719, %v1719
        %v3768 = vmul.f32 %v1720, %v1720
        %v3769 = vmul.f32 %v1721, %v1721
        %v3770 = vmul.f32 %v1722, %v1722
        %v3771 = vmul.f32 %v1723, %v1723
        %v3772 = vmul.f32 %v1724, %v1724
        %v3773 = vmul.f32 %v1725, %v1725
        %v3774 = vmul.f32 %v1726, %v1726
        %v3775 = vmul.f32 %v1727, %v1727
        %v3776 = vmul.f32 %v1728, %v1728
        %v3777 = vmul.f32 %v1729, %v1729
        %v3778 = vmul.f32 %v1730, %v1730
        %v3779 = vmul.f32 %v1731, %v1731
        %v3780 = vmul.f32 %v1732, %v1732
        %v3781 = vmul.f32 %v1733, %v1733
        %v3782 = vmul.f32 %v1734, %v1734
        %v3783 = vmul.f32 %v1735, %v1735
        %v3784 = vmul.f32 %v1736, %v1736
        %v3785 = vmul.f32 %v1737, %v1737
        %v3786 = vmul.f32 %v1738, %v1738
        %v3787 = vmul.f32 %v1739, %v1739
        %v3788 = vmul.f32 %v1740, %v1740
        %v3789 = vmul.f32 %v1741, %v1741
        %v3790 = vmul.f32 %v1742, %v1742
        %v3791 = vmul.f32 %v1743, %v1743
        %v3792 = vmul.f32 %v1744, %v1744
        %v3793 = vmul.f32 %v1745, %v1745
        %v3794 = vmul.f32 %v1746, %v1746
        %v3795 = vmul.f32 %v1747, %v1747
        %v3796 = vmul.f32 %v1748, %v1748
        %v3797 = vmul.f32 %v1749, %v1749
        %v3798 = vmul.f32 %v1750, %v1750
        %v3799 = vmul.f32 %v1751, %v1751
        %v3800 = vmul.f32 %v1752, %v1752
        %v3801 = vmul.f32 %v1753, %v1753
        %v3802 = vmul.f32 %v1754, %v1754
        %v3803 = vmul.f32 %v1755, %v1755
        %v3804 = vmul.f32 %v1756, %v1756
        %v3805 = vmul.f32 %v1757, %v1757
        %v3806 = vmul.f32 %v1758, %v1758
        %v3807 = vmul.f32 %v1759, %v1759
        %v3808 = vmul.f32 %v1760, %v1760
        %v3809 = vmul.f32 %v1761, %v1761
        %v3810 = vmul.f32 %v1762, %v1762
        %v3811 = vmul.f32 %v1763, %v1763
        %v3812 = vmul.f32 %v1764, %v1764
        %v3813 = vmul.f32 %v1765, %v1765
        %v3814 = vmul.f32 %v1766, %v1766
        %v3815 = vmul.f32 %v1767, %v1767
        %v3816 = vmul.f32 %v1768, %v1768
        %v3817 = vmul.f32 %v1769, %v1769
        %v3818 = vmul.f32 %v1770, %v1770
        %v3819 = vmul.f32 %v1771, %v1771
        %v3820 = vmul.f32 %v1772, %v1772
        %v3821 = vmul.f32 %v1773, %v1773
        %v3822 = vmul.f32 %v1774, %v1774
        %v3823 = vmul.f32 %v1775, %v1775
        %v3824 = vmul.f32 %v1776, %v1776
        %v3825 = vmul.f32 %v1777, %v1777
        %v3826 = vmul.f32 %v1778, %v1778
        %v3827 = vmul.f32 %v1779, %v1779
        %v3828 = vmul.f32 %v1780, %v1780
        %v3829 = vmul.f32 %v1781, %v1781
        %v3830 = vmul.f32 %v1782, %v1782
        %v3831 = vmul.f32 %v1783, %v1783
        %v3832 = vmul.f32 %v1784, %v1784
        %v3833 = vmul.f32 %v1785, %v1785
        %v3834 = vmul.f32 %v1786, %v1786
        %v3835 = vmul.f32 %v1787, %v1787
        %v3836 = vmul.f32 %v1788, %v1788
        %v3837 = vmul.f32 %v1789, %v1789
        %v3838 = vmul.f32 %v1790, %v1790
        %v3839 = vmul.f32 %v1791, %v1791
        %v3840 = vmul.f32 %v1792, %v1792
        %v3841 = vmul.f32 %v1793, %v1793
        %v3842 = vmul.f32 %v1794, %v1794
        %v3843 = vmul.f32 %v1795, %v1795
        %v3844 = vmul.f32 %v1796, %v1796
        %v3845 = vmul.f32 %v1797, %v1797
        %v3846 = vmul.f32 %v1798, %v1798
        %v3847 = vmul.f32 %v1799, %v1799
        %v3848 = vmul.f32 %v1800, %v1800
        %v3849 = vmul.f32 %v1801, %v1801
        %v3850 = vmul.f32 %v1802, %v1802
        %v3851 = vmul.f32 %v1803, %v1803
        %v3852 = vmul.f32 %v1804, %v1804
        %v3853 = vmul.f32 %v1805, %v1805
        %v3854 = vmul.f32 %v1806, %v1806
        %v3855 = vmul.f32 %v1807, %v1807
        %v3856 = vmul.f32 %v1808, %v1808
        %v3857 = vmul.f32 %v1809, %v1809
        %v3858 = vmul.f32 %v1810, %v1810
        %v3859 = vmul.f32 %v1811, %v1811
        %v3860 = vmul.f32 %v1812, %v1812
        %v3861 = vmul.f32 %v1813, %v1813
        %v3862 = vmul.f32 %v1814, %v1814
        %v3863 = vmul.f32 %v1815, %v1815
        %v3864 = vmul.f32 %v1816, %v1816
        %v3865 = vmul.f32 %v1817, %v1817
        %v3866 = vmul.f32 %v1818, %v1818
        %v3867 = vmul.f32 %v1819, %v1819
        %v3868 = vmul.f32 %v1820, %v1820
        %v3869 = vmul.f32 %v1821, %v1821
        %v3870 = vmul.f32 %v1822, %v1822
        %v3871 = vmul.f32 %v1823, %v1823
        %v3872 = vmul.f32 %v1824, %v1824
        %v3873 = vmul.f32 %v1825, %v1825
        %v3874 = vmul.f32 %v1826, %v1826
        %v3875 = vmul.f32 %v1827, %v1827
        %v3876 = vmul.f32 %v1828, %v1828
        %v3877 = vmul.f32 %v1829, %v1829
        %v3878 = vmul.f32 %v1830, %v1830
        %v3879 = vmul.f32 %v1831, %v1831
        %v3880 = vmul.f32 %v1832, %v1832
        %v3881 = vmul.f32 %v1833, %v1833
        %v3882 = vmul.f32 %v1834, %v1834
        %v3883 = vmul.f32 %v1835, %v1835
        %v3884 = vmul.f32 %v1836, %v1836
        %v3885 = vmul.f32 %v1837, %v1837
        %v3886 = vmul.f32 %v1838, %v1838
        %v3887 = vmul.f32 %v1839, %v1839
        %v3888 = vmul.f32 %v1840, %v1840
        %v3889 = vmul.f32 %v1841, %v1841
        %v3890 = vmul.f32 %v1842, %v1842
        %v3891 = vsub.f32 0.0, %v3763
        %v3892 = vsub.f32 0.0, %v3764
        %v3893 = vsub.f32 0.0, %v3765
        %v3894 = vsub.f32 0.0, %v3766
        %v3895 = vsub.f32 0.0, %v3767
        %v3896 = vsub.f32 0.0, %v3768
        %v3897 = vsub.f32 0.0, %v3769
        %v3898 = vsub.f32 0.0, %v3770
        %v3899 = vsub.f32 0.0, %v3771
        %v3900 = vsub.f32 0.0, %v3772
        %v3901 = vsub.f32 0.0, %v3773
        %v3902 = vsub.f32 0.0, %v3774
        %v3903 = vsub.f32 0.0, %v3775
        %v3904 = vsub.f32 0.0, %v3776
        %v3905 = vsub.f32 0.0, %v3777
        %v3906 = vsub.f32 0.0, %v3778
        %v3907 = vsub.f32 0.0, %v3779
        %v3908 = vsub.f32 0.0, %v3780
        %v3909 = vsub.f32 0.0, %v3781
        %v3910 = vsub.f32 0.0, %v3782
        %v3911 = vsub.f32 0.0, %v3783
        %v3912 = vsub.f32 0.0, %v3784
        %v3913 = vsub.f32 0.0, %v3785
        %v3914 = vsub.f32 0.0, %v3786
        %v3915 = vsub.f32 0.0, %v3787
        %v3916 = vsub.f32 0.0, %v3788
        %v3917 = vsub.f32 0.0, %v3789
        %v3918 = vsub.f32 0.0, %v3790
        %v3919 = vsub.f32 0.0, %v3791
        %v3920 = vsub.f32 0.0, %v3792
        %v3921 = vsub.f32 0.0, %v3793
        %v3922 = vsub.f32 0.0, %v3794
        %v3923 = vsub.f32 0.0, %v3795
        %v3924 = vsub.f32 0.0, %v3796
        %v3925 = vsub.f32 0.0, %v3797
        %v3926 = vsub.f32 0.0, %v3798
        %v3927 = vsub.f32 0.0, %v3799
        %v3928 = vsub.f32 0.0, %v3800
        %v3929 = vsub.f32 0.0, %v3801
        %v3930 = vsub.f32 0.0, %v3802
        %v3931 = vsub.f32 0.0, %v3803
        %v3932 = vsub.f32 0.0, %v3804
        %v3933 = vsub.f32 0.0, %v3805
        %v3934 = vsub.f32 0.0, %v3806
        %v3935 = vsub.f32 0.0, %v3807
        %v3936 = vsub.f32 0.0, %v3808
        %v3937 = vsub.f32 0.0, %v3809
        %v3938 = vsub.f32 0.0, %v3810
        %v3939 = vsub.f32 0.0, %v3811
        %v3940 = vsub.f32 0.0, %v3812
        %v3941 = vsub.f32 0.0, %v3813
        %v3942 = vsub.f32 0.0, %v3814
        %v3943 = vsub.f32 0.0, %v3815
        %v3944 = vsub.f32 0.0, %v3816
        %v3945 = vsub.f32 0.0, %v3817
        %v3946 = vsub.f32 0.0, %v3818
        %v3947 = vsub.f32 0.0, %v3819
        %v3948 = vsub.f32 0.0, %v3820
        %v3949 = vsub.f32 0.0, %v3821
        %v3950 = vsub.f32 0.0, %v3822
        %v3951 = vsub.f32 0.0, %v3823
        %v3952 = vsub.f32 0.0, %v3824
        %v3953 = vsub.f32 0.0, %v3825
        %v3954 = vsub.f32 0.0, %v3826
        %v3955 = vsub.f32 0.0, %v3827
        %v3956 = vsub.f32 0.0, %v3828
        %v3957 = vsub.f32 0.0, %v3829
        %v3958 = vsub.f32 0.0, %v3830
        %v3959 = vsub.f32 0.0, %v3831
        %v3960 = vsub.f32 0.0, %v3832
        %v3961 = vsub.f32 0.0, %v3833
        %v3962 = vsub.f32 0.0, %v3834
        %v3963 = vsub.f32 0.0, %v3835
        %v3964 = vsub.f32 0.0, %v3836
        %v3965 = vsub.f32 0.0, %v3837
        %v3966 = vsub.f32 0.0, %v3838
        %v3967 = vsub.f32 0.0, %v3839
        %v3968 = vsub.f32 0.0, %v3840
        %v3969 = vsub.f32 0.0, %v3841
        %v3970 = vsub.f32 0.0, %v3842
        %v3971 = vsub.f32 0.0, %v3843
        %v3972 = vsub.f32 0.0, %v3844
        %v3973 = vsub.f32 0.0, %v3845
        %v3974 = vsub.f32 0.0, %v3846
        %v3975 = vsub.f32 0.0, %v3847
        %v3976 = vsub.f32 0.0, %v3848
        %v3977 = vsub.f32 0.0, %v3849
        %v3978 = vsub.f32 0.0, %v3850
        %v3979 = vsub.f32 0.0, %v3851
        %v3980 = vsub.f32 0.0, %v3852
        %v3981 = vsub.f32 0.0, %v3853
        %v3982 = vsub.f32 0.0, %v3854
        %v3983 = vsub.f32 0.0, %v3855
        %v3984 = vsub.f32 0.0, %v3856
        %v3985 = vsub.f32 0.0, %v3857
        %v3986 = vsub.f32 0.0, %v3858
        %v3987 = vsub.f32 0.0, %v3859
        %v3988 = vsub.f32 0.0, %v3860
        %v3989 = vsub.f32 0.0, %v3861
        %v3990 = vsub.f32 0.0, %v3862
        %v3991 = vsub.f32 0.0, %v3863
        %v3992 = vsub.f32 0.0, %v3864
        %v3993 = vsub.f32 0.0, %v3865
        %v3994 = vsub.f32 0.0, %v3866
        %v3995 = vsub.f32 0.0, %v3867
        %v3996 = vsub.f32 0.0, %v3868
        %v3997 = vsub.f32 0.0, %v3869
        %v3998 = vsub.f32 0.0, %v3870
        %v3999 = vsub.f32 0.0, %v3871
        %v4000 = vsub.f32 0.0, %v3872
        %v4001 = vsub.f32 0.0, %v3873
        %v4002 = vsub.f32 0.0, %v3874
        %v4003 = vsub.f32 0.0, %v3875
        %v4004 = vsub.f32 0.0, %v3876
        %v4005 = vsub.f32 0.0, %v3877
        %v4006 = vsub.f32 0.0, %v3878
        %v4007 = vsub.f32 0.0, %v3879
        %v4008 = vsub.f32 0.0, %v3880
        %v4009 = vsub.f32 0.0, %v3881
        %v4010 = vsub.f32 0.0, %v3882
        %v4011 = vsub.f32 0.0, %v3883
        %v4012 = vsub.f32 0.0, %v3884
        %v4013 = vsub.f32 0.0, %v3885
        %v4014 = vsub.f32 0.0, %v3886
        %v4015 = vsub.f32 0.0, %v3887
        %v4016 = vsub.f32 0.0, %v3888
        %v4017 = vsub.f32 0.0, %v3889
        %v4018 = vsub.f32 0.0, %v3890
        %v4019 = vmul.f32 %v3891, 1.442695
        %v4020 = vpow.pop %v4019
        %v4021 = vmul.f32 %v3892, 1.442695
        %v4022 = vpow.pop %v4021
        %v4023 = vmul.f32 %v3893, 1.442695
        %v4024 = vpow.pop %v4023
        %v4025 = vmul.f32 %v3894, 1.442695
        %v4026 = vpow.pop %v4025
        %v4027 = vmul.f32 %v3895, 1.442695
        %v4028 = vpow.pop %v4027
        %v4029 = vmul.f32 %v3896, 1.442695
        %v4030 = vpow.pop %v4029
        %v4031 = vmul.f32 %v3897, 1.442695
        %v4032 = vpow.pop %v4031
        %v4033 = vmul.f32 %v3898, 1.442695
        %v4034 = vpow.pop %v4033
        %v4035 = vmul.f32 %v3899, 1.442695
        %v4036 = vpow.pop %v4035
        %v4037 = vmul.f32 %v3900, 1.442695
        %v4038 = vpow.pop %v4037
        %v4039 = vmul.f32 %v3901, 1.442695
        %v4040 = vpow.pop %v4039
        %v4041 = vmul.f32 %v3902, 1.442695
        %v4042 = vpow.pop %v4041
        %v4043 = vmul.f32 %v3903, 1.442695
        %v4044 = vpow.pop %v4043
        %v4045 = vmul.f32 %v3904, 1.442695
        %v4046 = vpow.pop %v4045
        %v4047 = vmul.f32 %v3905, 1.442695
        %v4048 = vpow.pop %v4047
        %v4049 = vmul.f32 %v3906, 1.442695
        %v4050 = vpow.pop %v4049
        %v4051 = vmul.f32 %v3907, 1.442695
        %v4052 = vpow.pop %v4051
        %v4053 = vmul.f32 %v3908, 1.442695
        %v4054 = vpow.pop %v4053
        %v4055 = vmul.f32 %v3909, 1.442695
        %v4056 = vpow.pop %v4055
        %v4057 = vmul.f32 %v3910, 1.442695
        %v4058 = vpow.pop %v4057
        %v4059 = vmul.f32 %v3911, 1.442695
        %v4060 = vpow.pop %v4059
        %v4061 = vmul.f32 %v3912, 1.442695
        %v4062 = vpow.pop %v4061
        %v4063 = vmul.f32 %v3913, 1.442695
        %v4064 = vpow.pop %v4063
        %v4065 = vmul.f32 %v3914, 1.442695
        %v4066 = vpow.pop %v4065
        %v4067 = vmul.f32 %v3915, 1.442695
        %v4068 = vpow.pop %v4067
        %v4069 = vmul.f32 %v3916, 1.442695
        %v4070 = vpow.pop %v4069
        %v4071 = vmul.f32 %v3917, 1.442695
        %v4072 = vpow.pop %v4071
        %v4073 = vmul.f32 %v3918, 1.442695
        %v4074 = vpow.pop %v4073
        %v4075 = vmul.f32 %v3919, 1.442695
        %v4076 = vpow.pop %v4075
        %v4077 = vmul.f32 %v3920, 1.442695
        %v4078 = vpow.pop %v4077
        %v4079 = vmul.f32 %v3921, 1.442695
        %v4080 = vpow.pop %v4079
        %v4081 = vmul.f32 %v3922, 1.442695
        %v4082 = vpow.pop %v4081
        %v4083 = vmul.f32 %v3923, 1.442695
        %v4084 = vpow.pop %v4083
        %v4085 = vmul.f32 %v3924, 1.442695
        %v4086 = vpow.pop %v4085
        %v4087 = vmul.f32 %v3925, 1.442695
        %v4088 = vpow.pop %v4087
        %v4089 = vmul.f32 %v3926, 1.442695
        %v4090 = vpow.pop %v4089
        %v4091 = vmul.f32 %v3927, 1.442695
        %v4092 = vpow.pop %v4091
        %v4093 = vmul.f32 %v3928, 1.442695
        %v4094 = vpow.pop %v4093
        %v4095 = vmul.f32 %v3929, 1.442695
        %v4096 = vpow.pop %v4095
        %v4097 = vmul.f32 %v3930, 1.442695
        %v4098 = vpow.pop %v4097
        %v4099 = vmul.f32 %v3931, 1.442695
        %v4100 = vpow.pop %v4099
        %v4101 = vmul.f32 %v3932, 1.442695
        %v4102 = vpow.pop %v4101
        %v4103 = vmul.f32 %v3933, 1.442695
        %v4104 = vpow.pop %v4103
        %v4105 = vmul.f32 %v3934, 1.442695
        %v4106 = vpow.pop %v4105
        %v4107 = vmul.f32 %v3935, 1.442695
        %v4108 = vpow.pop %v4107
        %v4109 = vmul.f32 %v3936, 1.442695
        %v4110 = vpow.pop %v4109
        %v4111 = vmul.f32 %v3937, 1.442695
        %v4112 = vpow.pop %v4111
        %v4113 = vmul.f32 %v3938, 1.442695
        %v4114 = vpow.pop %v4113
        %v4115 = vmul.f32 %v3939, 1.442695
        %v4116 = vpow.pop %v4115
        %v4117 = vmul.f32 %v3940, 1.442695
        %v4118 = vpow.pop %v4117
        %v4119 = vmul.f32 %v3941, 1.442695
        %v4120 = vpow.pop %v4119
        %v4121 = vmul.f32 %v3942, 1.442695
        %v4122 = vpow.pop %v4121
        %v4123 = vmul.f32 %v3943, 1.442695
        %v4124 = vpow.pop %v4123
        %v4125 = vmul.f32 %v3944, 1.442695
        %v4126 = vpow.pop %v4125
        %v4127 = vmul.f32 %v3945, 1.442695
        %v4128 = vpow.pop %v4127
        %v4129 = vmul.f32 %v3946, 1.442695
        %v4130 = vpow.pop %v4129
        %v4131 = vmul.f32 %v3947, 1.442695
        %v4132 = vpow.pop %v4131
        %v4133 = vmul.f32 %v3948, 1.442695
        %v4134 = vpow.pop %v4133
        %v4135 = vmul.f32 %v3949, 1.442695
        %v4136 = vpow.pop %v4135
        %v4137 = vmul.f32 %v3950, 1.442695
        %v4138 = vpow.pop %v4137
        %v4139 = vmul.f32 %v3951, 1.442695
        %v4140 = vpow.pop %v4139
        %v4141 = vmul.f32 %v3952, 1.442695
        %v4142 = vpow.pop %v4141
        %v4143 = vmul.f32 %v3953, 1.442695
        %v4144 = vpow.pop %v4143
        %v4145 = vmul.f32 %v3954, 1.442695
        %v4146 = vpow.pop %v4145
        %v4147 = vmul.f32 %v3955, 1.442695
        %v4148 = vpow.pop %v4147
        %v4149 = vmul.f32 %v3956, 1.442695
        %v4150 = vpow.pop %v4149
        %v4151 = vmul.f32 %v3957, 1.442695
        %v4152 = vpow.pop %v4151
        %v4153 = vmul.f32 %v3958, 1.442695
        %v4154 = vpow.pop %v4153
        %v4155 = vmul.f32 %v3959, 1.442695
        %v4156 = vpow.pop %v4155
        %v4157 = vmul.f32 %v3960, 1.442695
        %v4158 = vpow.pop %v4157
        %v4159 = vmul.f32 %v3961, 1.442695
        %v4160 = vpow.pop %v4159
        %v4161 = vmul.f32 %v3962, 1.442695
        %v4162 = vpow.pop %v4161
        %v4163 = vmul.f32 %v3963, 1.442695
        %v4164 = vpow.pop %v4163
        %v4165 = vmul.f32 %v3964, 1.442695
        %v4166 = vpow.pop %v4165
        %v4167 = vmul.f32 %v3965, 1.442695
        %v4168 = vpow.pop %v4167
        %v4169 = vmul.f32 %v3966, 1.442695
        %v4170 = vpow.pop %v4169
        %v4171 = vmul.f32 %v3967, 1.442695
        %v4172 = vpow.pop %v4171
        %v4173 = vmul.f32 %v3968, 1.442695
        %v4174 = vpow.pop %v4173
        %v4175 = vmul.f32 %v3969, 1.442695
        %v4176 = vpow.pop %v4175
        %v4177 = vmul.f32 %v3970, 1.442695
        %v4178 = vpow.pop %v4177
        %v4179 = vmul.f32 %v3971, 1.442695
        %v4180 = vpow.pop %v4179
        %v4181 = vmul.f32 %v3972, 1.442695
        %v4182 = vpow.pop %v4181
        %v4183 = vmul.f32 %v3973, 1.442695
        %v4184 = vpow.pop %v4183
        %v4185 = vmul.f32 %v3974, 1.442695
        %v4186 = vpow.pop %v4185
        %v4187 = vmul.f32 %v3975, 1.442695
        %v4188 = vpow.pop %v4187
        %v4189 = vmul.f32 %v3976, 1.442695
        %v4190 = vpow.pop %v4189
        %v4191 = vmul.f32 %v3977, 1.442695
        %v4192 = vpow.pop %v4191
        %v4193 = vmul.f32 %v3978, 1.442695
        %v4194 = vpow.pop %v4193
        %v4195 = vmul.f32 %v3979, 1.442695
        %v4196 = vpow.pop %v4195
        %v4197 = vmul.f32 %v3980, 1.442695
        %v4198 = vpow.pop %v4197
        %v4199 = vmul.f32 %v3981, 1.442695
        %v4200 = vpow.pop %v4199
        %v4201 = vmul.f32 %v3982, 1.442695
        %v4202 = vpow.pop %v4201
        %v4203 = vmul.f32 %v3983, 1.442695
        %v4204 = vpow.pop %v4203
        %v4205 = vmul.f32 %v3984, 1.442695
        %v4206 = vpow.pop %v4205
        %v4207 = vmul.f32 %v3985, 1.442695
        %v4208 = vpow.pop %v4207
        %v4209 = vmul.f32 %v3986, 1.442695
        %v4210 = vpow.pop %v4209
        %v4211 = vmul.f32 %v3987, 1.442695
        %v4212 = vpow.pop %v4211
        %v4213 = vmul.f32 %v3988, 1.442695
        %v4214 = vpow.pop %v4213
        %v4215 = vmul.f32 %v3989, 1.442695
        %v4216 = vpow.pop %v4215
        %v4217 = vmul.f32 %v3990, 1.442695
        %v4218 = vpow.pop %v4217
        %v4219 = vmul.f32 %v3991, 1.442695
        %v4220 = vpow.pop %v4219
        %v4221 = vmul.f32 %v3992, 1.442695
        %v4222 = vpow.pop %v4221
        %v4223 = vmul.f32 %v3993, 1.442695
        %v4224 = vpow.pop %v4223
        %v4225 = vmul.f32 %v3994, 1.442695
        %v4226 = vpow.pop %v4225
        %v4227 = vmul.f32 %v3995, 1.442695
        %v4228 = vpow.pop %v4227
        %v4229 = vmul.f32 %v3996, 1.442695
        %v4230 = vpow.pop %v4229
        %v4231 = vmul.f32 %v3997, 1.442695
        %v4232 = vpow.pop %v4231
        %v4233 = vmul.f32 %v3998, 1.442695
        %v4234 = vpow.pop %v4233
        %v4235 = vmul.f32 %v3999, 1.442695
        %v4236 = vpow.pop %v4235
        %v4237 = vmul.f32 %v4000, 1.442695
        %v4238 = vpow.pop %v4237
        %v4239 = vmul.f32 %v4001, 1.442695
        %v4240 = vpow.pop %v4239
        %v4241 = vmul.f32 %v4002, 1.442695
        %v4242 = vpow.pop %v4241
        %v4243 = vmul.f32 %v4003, 1.442695
        %v4244 = vpow.pop %v4243
        %v4245 = vmul.f32 %v4004, 1.442695
        %v4246 = vpow.pop %v4245
        %v4247 = vmul.f32 %v4005, 1.442695
        %v4248 = vpow.pop %v4247
        %v4249 = vmul.f32 %v4006, 1.442695
        %v4250 = vpow.pop %v4249
        %v4251 = vmul.f32 %v4007, 1.442695
        %v4252 = vpow.pop %v4251
        %v4253 = vmul.f32 %v4008, 1.442695
        %v4254 = vpow.pop %v4253
        %v4255 = vmul.f32 %v4009, 1.442695
        %v4256 = vpow.pop %v4255
        %v4257 = vmul.f32 %v4010, 1.442695
        %v4258 = vpow.pop %v4257
        %v4259 = vmul.f32 %v4011, 1.442695
        %v4260 = vpow.pop %v4259
        %v4261 = vmul.f32 %v4012, 1.442695
        %v4262 = vpow.pop %v4261
        %v4263 = vmul.f32 %v4013, 1.442695
        %v4264 = vpow.pop %v4263
        %v4265 = vmul.f32 %v4014, 1.442695
        %v4266 = vpow.pop %v4265
        %v4267 = vmul.f32 %v4015, 1.442695
        %v4268 = vpow.pop %v4267
        %v4269 = vmul.f32 %v4016, 1.442695
        %v4270 = vpow.pop %v4269
        %v4271 = vmul.f32 %v4017, 1.442695
        %v4272 = vpow.pop %v4271
        %v4273 = vmul.f32 %v4018, 1.442695
        %v4274 = vpow.pop %v4273
        %v4275 = vmul.f32 %v3635, %v4020
        %v4276 = vmul.f32 %v3636, %v4022
        %v4277 = vmul.f32 %v3637, %v4024
        %v4278 = vmul.f32 %v3638, %v4026
        %v4279 = vmul.f32 %v3639, %v4028
        %v4280 = vmul.f32 %v3640, %v4030
        %v4281 = vmul.f32 %v3641, %v4032
        %v4282 = vmul.f32 %v3642, %v4034
        %v4283 = vmul.f32 %v3643, %v4036
        %v4284 = vmul.f32 %v3644, %v4038
        %v4285 = vmul.f32 %v3645, %v4040
        %v4286 = vmul.f32 %v3646, %v4042
        %v4287 = vmul.f32 %v3647, %v4044
        %v4288 = vmul.f32 %v3648, %v4046
        %v4289 = vmul.f32 %v3649, %v4048
        %v4290 = vmul.f32 %v3650, %v4050
        %v4291 = vmul.f32 %v3651, %v4052
        %v4292 = vmul.f32 %v3652, %v4054
        %v4293 = vmul.f32 %v3653, %v4056
        %v4294 = vmul.f32 %v3654, %v4058
        %v4295 = vmul.f32 %v3655, %v4060
        %v4296 = vmul.f32 %v3656, %v4062
        %v4297 = vmul.f32 %v3657, %v4064
        %v4298 = vmul.f32 %v3658, %v4066
        %v4299 = vmul.f32 %v3659, %v4068
        %v4300 = vmul.f32 %v3660, %v4070
        %v4301 = vmul.f32 %v3661, %v4072
        %v4302 = vmul.f32 %v3662, %v4074
        %v4303 = vmul.f32 %v3663, %v4076
        %v4304 = vmul.f32 %v3664, %v4078
        %v4305 = vmul.f32 %v3665, %v4080
        %v4306 = vmul.f32 %v3666, %v4082
        %v4307 = vmul.f32 %v3667, %v4084
        %v4308 = vmul.f32 %v3668, %v4086
        %v4309 = vmul.f32 %v3669, %v4088
        %v4310 = vmul.f32 %v3670, %v4090
        %v4311 = vmul.f32 %v3671, %v4092
        %v4312 = vmul.f32 %v3672, %v4094
        %v4313 = vmul.f32 %v3673, %v4096
        %v4314 = vmul.f32 %v3674, %v4098
        %v4315 = vmul.f32 %v3675, %v4100
        %v4316 = vmul.f32 %v3676, %v4102
        %v4317 = vmul.f32 %v3677, %v4104
        %v4318 = vmul.f32 %v3678, %v4106
        %v4319 = vmul.f32 %v3679, %v4108
        %v4320 = vmul.f32 %v3680, %v4110
        %v4321 = vmul.f32 %v3681, %v4112
        %v4322 = vmul.f32 %v3682, %v4114
        %v4323 = vmul.f32 %v3683, %v4116
        %v4324 = vmul.f32 %v3684, %v4118
        %v4325 = vmul.f32 %v3685, %v4120
        %v4326 = vmul.f32 %v3686, %v4122
        %v4327 = vmul.f32 %v3687, %v4124
        %v4328 = vmul.f32 %v3688, %v4126
        %v4329 = vmul.f32 %v3689, %v4128
        %v4330 = vmul.f32 %v3690, %v4130
        %v4331 = vmul.f32 %v3691, %v4132
        %v4332 = vmul.f32 %v3692, %v4134
        %v4333 = vmul.f32 %v3693, %v4136
        %v4334 = vmul.f32 %v3694, %v4138
        %v4335 = vmul.f32 %v3695, %v4140
        %v4336 = vmul.f32 %v3696, %v4142
        %v4337 = vmul.f32 %v3697, %v4144
        %v4338 = vmul.f32 %v3698, %v4146
        %v4339 = vmul.f32 %v3699, %v4148
        %v4340 = vmul.f32 %v3700, %v4150
        %v4341 = vmul.f32 %v3701, %v4152
        %v4342 = vmul.f32 %v3702, %v4154
        %v4343 = vmul.f32 %v3703, %v4156
        %v4344 = vmul.f32 %v3704, %v4158
        %v4345 = vmul.f32 %v3705, %v4160
        %v4346 = vmul.f32 %v3706, %v4162
        %v4347 = vmul.f32 %v3707, %v4164
        %v4348 = vmul.f32 %v3708, %v4166
        %v4349 = vmul.f32 %v3709, %v4168
        %v4350 = vmul.f32 %v3710, %v4170
        %v4351 = vmul.f32 %v3711, %v4172
        %v4352 = vmul.f32 %v3712, %v4174
        %v4353 = vmul.f32 %v3713, %v4176
        %v4354 = vmul.f32 %v3714, %v4178
        %v4355 = vmul.f32 %v3715, %v4180
        %v4356 = vmul.f32 %v3716, %v4182
        %v4357 = vmul.f32 %v3717, %v4184
        %v4358 = vmul.f32 %v3718, %v4186
        %v4359 = vmul.f32 %v3719, %v4188
        %v4360 = vmul.f32 %v3720, %v4190
        %v4361 = vmul.f32 %v3721, %v4192
        %v4362 = vmul.f32 %v3722, %v4194
        %v4363 = vmul.f32 %v3723, %v4196
        %v4364 = vmul.f32 %v3724, %v4198
        %v4365 = vmul.f32 %v3725, %v4200
        %v4366 = vmul.f32 %v3726, %v4202
        %v4367 = vmul.f32 %v3727, %v4204
        %v4368 = vmul.f32 %v3728, %v4206
        %v4369 = vmul.f32 %v3729, %v4208
        %v4370 = vmul.f32 %v3730, %v4210
        %v4371 = vmul.f32 %v3731, %v4212
        %v4372 = vmul.f32 %v3732, %v4214
        %v4373 = vmul.f32 %v3733, %v4216
        %v4374 = vmul.f32 %v3734, %v4218
        %v4375 = vmul.f32 %v3735, %v4220
        %v4376 = vmul.f32 %v3736, %v4222
        %v4377 = vmul.f32 %v3737, %v4224
        %v4378 = vmul.f32 %v3738, %v4226
        %v4379 = vmul.f32 %v3739, %v4228
        %v4380 = vmul.f32 %v3740, %v4230
        %v4381 = vmul.f32 %v3741, %v4232
        %v4382 = vmul.f32 %v3742, %v4234
        %v4383 = vmul.f32 %v3743, %v4236
        %v4384 = vmul.f32 %v3744, %v4238
        %v4385 = vmul.f32 %v3745, %v4240
        %v4386 = vmul.f32 %v3746, %v4242
        %v4387 = vmul.f32 %v3747, %v4244
        %v4388 = vmul.f32 %v3748, %v4246
        %v4389 = vmul.f32 %v3749, %v4248
        %v4390 = vmul.f32 %v3750, %v4250
        %v4391 = vmul.f32 %v3751, %v4252
        %v4392 = vmul.f32 %v3752, %v4254
        %v4393 = vmul.f32 %v3753, %v4256
        %v4394 = vmul.f32 %v3754, %v4258
        %v4395 = vmul.f32 %v3755, %v4260
        %v4396 = vmul.f32 %v3756, %v4262
        %v4397 = vmul.f32 %v3757, %v4264
        %v4398 = vmul.f32 %v3758, %v4266
        %v4399 = vmul.f32 %v3759, %v4268
        %v4400 = vmul.f32 %v3760, %v4270
        %v4401 = vmul.f32 %v3761, %v4272
        %v4402 = vmul.f32 %v3762, %v4274
        %v4403 = vsub.f32 1.0, %v4275
        %v4404 = vsub.f32 1.0, %v4276
        %v4405 = vsub.f32 1.0, %v4277
        %v4406 = vsub.f32 1.0, %v4278
        %v4407 = vsub.f32 1.0, %v4279
        %v4408 = vsub.f32 1.0, %v4280
        %v4409 = vsub.f32 1.0, %v4281
        %v4410 = vsub.f32 1.0, %v4282
        %v4411 = vsub.f32 1.0, %v4283
        %v4412 = vsub.f32 1.0, %v4284
        %v4413 = vsub.f32 1.0, %v4285
        %v4414 = vsub.f32 1.0, %v4286
        %v4415 = vsub.f32 1.0, %v4287
        %v4416 = vsub.f32 1.0, %v4288
        %v4417 = vsub.f32 1.0, %v4289
        %v4418 = vsub.f32 1.0, %v4290
        %v4419 = vsub.f32 1.0, %v4291
        %v4420 = vsub.f32 1.0, %v4292
        %v4421 = vsub.f32 1.0, %v4293
        %v4422 = vsub.f32 1.0, %v4294
        %v4423 = vsub.f32 1.0, %v4295
        %v4424 = vsub.f32 1.0, %v4296
        %v4425 = vsub.f32 1.0, %v4297
        %v4426 = vsub.f32 1.0, %v4298
        %v4427 = vsub.f32 1.0, %v4299
        %v4428 = vsub.f32 1.0, %v4300
        %v4429 = vsub.f32 1.0, %v4301
        %v4430 = vsub.f32 1.0, %v4302
        %v4431 = vsub.f32 1.0, %v4303
        %v4432 = vsub.f32 1.0, %v4304
        %v4433 = vsub.f32 1.0, %v4305
        %v4434 = vsub.f32 1.0, %v4306
        %v4435 = vsub.f32 1.0, %v4307
        %v4436 = vsub.f32 1.0, %v4308
        %v4437 = vsub.f32 1.0, %v4309
        %v4438 = vsub.f32 1.0, %v4310
        %v4439 = vsub.f32 1.0, %v4311
        %v4440 = vsub.f32 1.0, %v4312
        %v4441 = vsub.f32 1.0, %v4313
        %v4442 = vsub.f32 1.0, %v4314
        %v4443 = vsub.f32 1.0, %v4315
        %v4444 = vsub.f32 1.0, %v4316
        %v4445 = vsub.f32 1.0, %v4317
        %v4446 = vsub.f32 1.0, %v4318
        %v4447 = vsub.f32 1.0, %v4319
        %v4448 = vsub.f32 1.0, %v4320
        %v4449 = vsub.f32 1.0, %v4321
        %v4450 = vsub.f32 1.0, %v4322
        %v4451 = vsub.f32 1.0, %v4323
        %v4452 = vsub.f32 1.0, %v4324
        %v4453 = vsub.f32 1.0, %v4325
        %v4454 = vsub.f32 1.0, %v4326
        %v4455 = vsub.f32 1.0, %v4327
        %v4456 = vsub.f32 1.0, %v4328
        %v4457 = vsub.f32 1.0, %v4329
        %v4458 = vsub.f32 1.0, %v4330
        %v4459 = vsub.f32 1.0, %v4331
        %v4460 = vsub.f32 1.0, %v4332
        %v4461 = vsub.f32 1.0, %v4333
        %v4462 = vsub.f32 1.0, %v4334
        %v4463 = vsub.f32 1.0, %v4335
        %v4464 = vsub.f32 1.0, %v4336
        %v4465 = vsub.f32 1.0, %v4337
        %v4466 = vsub.f32 1.0, %v4338
        %v4467 = vsub.f32 1.0, %v4339
        %v4468 = vsub.f32 1.0, %v4340
        %v4469 = vsub.f32 1.0, %v4341
        %v4470 = vsub.f32 1.0, %v4342
        %v4471 = vsub.f32 1.0, %v4343
        %v4472 = vsub.f32 1.0, %v4344
        %v4473 = vsub.f32 1.0, %v4345
        %v4474 = vsub.f32 1.0, %v4346
        %v4475 = vsub.f32 1.0, %v4347
        %v4476 = vsub.f32 1.0, %v4348
        %v4477 = vsub.f32 1.0, %v4349
        %v4478 = vsub.f32 1.0, %v4350
        %v4479 = vsub.f32 1.0, %v4351
        %v4480 = vsub.f32 1.0, %v4352
        %v4481 = vsub.f32 1.0, %v4353
        %v4482 = vsub.f32 1.0, %v4354
        %v4483 = vsub.f32 1.0, %v4355
        %v4484 = vsub.f32 1.0, %v4356
        %v4485 = vsub.f32 1.0, %v4357
        %v4486 = vsub.f32 1.0, %v4358
        %v4487 = vsub.f32 1.0, %v4359
        %v4488 = vsub.f32 1.0, %v4360
        %v4489 = vsub.f32 1.0, %v4361
        %v4490 = vsub.f32 1.0, %v4362
        %v4491 = vsub.f32 1.0, %v4363
        %v4492 = vsub.f32 1.0, %v4364
        %v4493 = vsub.f32 1.0, %v4365
        %v4494 = vsub.f32 1.0, %v4366
        %v4495 = vsub.f32 1.0, %v4367
        %v4496 = vsub.f32 1.0, %v4368
        %v4497 = vsub.f32 1.0, %v4369
        %v4498 = vsub.f32 1.0, %v4370
        %v4499 = vsub.f32 1.0, %v4371
        %v4500 = vsub.f32 1.0, %v4372
        %v4501 = vsub.f32 1.0, %v4373
        %v4502 = vsub.f32 1.0, %v4374
        %v4503 = vsub.f32 1.0, %v4375
        %v4504 = vsub.f32 1.0, %v4376
        %v4505 = vsub.f32 1.0, %v4377
        %v4506 = vsub.f32 1.0, %v4378
        %v4507 = vsub.f32 1.0, %v4379
        %v4508 = vsub.f32 1.0, %v4380
        %v4509 = vsub.f32 1.0, %v4381
        %v4510 = vsub.f32 1.0, %v4382
        %v4511 = vsub.f32 1.0, %v4383
        %v4512 = vsub.f32 1.0, %v4384
        %v4513 = vsub.f32 1.0, %v4385
        %v4514 = vsub.f32 1.0, %v4386
        %v4515 = vsub.f32 1.0, %v4387
        %v4516 = vsub.f32 1.0, %v4388
        %v4517 = vsub.f32 1.0, %v4389
        %v4518 = vsub.f32 1.0, %v4390
        %v4519 = vsub.f32 1.0, %v4391
        %v4520 = vsub.f32 1.0, %v4392
        %v4521 = vsub.f32 1.0, %v4393
        %v4522 = vsub.f32 1.0, %v4394
        %v4523 = vsub.f32 1.0, %v4395
        %v4524 = vsub.f32 1.0, %v4396
        %v4525 = vsub.f32 1.0, %v4397
        %v4526 = vsub.f32 1.0, %v4398
        %v4527 = vsub.f32 1.0, %v4399
        %v4528 = vsub.f32 1.0, %v4400
        %v4529 = vsub.f32 1.0, %v4401
        %v4530 = vsub.f32 1.0, %v4402
        %vm4531 = vcmp.lt.f32.partialorder %v1587, 0.0
        %vm4532 = vcmp.lt.f32.partialorder %v1588, 0.0
        %vm4533 = vcmp.lt.f32.partialorder %v1589, 0.0
        %vm4534 = vcmp.lt.f32.partialorder %v1590, 0.0
        %vm4535 = vcmp.lt.f32.partialorder %v1591, 0.0
        %vm4536 = vcmp.lt.f32.partialorder %v1592, 0.0
        %vm4537 = vcmp.lt.f32.partialorder %v1593, 0.0
        %vm4538 = vcmp.lt.f32.partialorder %v1594, 0.0
        %vm4539 = vcmp.lt.f32.partialorder %v1595, 0.0
        %vm4540 = vcmp.lt.f32.partialorder %v1596, 0.0
        %vm4541 = vcmp.lt.f32.partialorder %v1597, 0.0
        %vm4542 = vcmp.lt.f32.partialorder %v1598, 0.0
        %vm4543 = vcmp.lt.f32.partialorder %v1599, 0.0
        %vm4544 = vcmp.lt.f32.partialorder %v1600, 0.0
        %vm4545 = vcmp.lt.f32.partialorder %v1601, 0.0
        %vm4546 = vcmp.lt.f32.partialorder %v1602, 0.0
        %vm4547 = vcmp.lt.f32.partialorder %v1603, 0.0
        %vm4548 = vcmp.lt.f32.partialorder %v1604, 0.0
        %vm4549 = vcmp.lt.f32.partialorder %v1605, 0.0
        %vm4550 = vcmp.lt.f32.partialorder %v1606, 0.0
        %vm4551 = vcmp.lt.f32.partialorder %v1607, 0.0
        %vm4552 = vcmp.lt.f32.partialorder %v1608, 0.0
        %vm4553 = vcmp.lt.f32.partialorder %v1609, 0.0
        %vm4554 = vcmp.lt.f32.partialorder %v1610, 0.0
        %vm4555 = vcmp.lt.f32.partialorder %v1611, 0.0
        %vm4556 = vcmp.lt.f32.partialorder %v1612, 0.0
        %vm4557 = vcmp.lt.f32.partialorder %v1613, 0.0
        %vm4558 = vcmp.lt.f32.partialorder %v1614, 0.0
        %vm4559 = vcmp.lt.f32.partialorder %v1615, 0.0
        %vm4560 = vcmp.lt.f32.partialorder %v1616, 0.0
        %vm4561 = vcmp.lt.f32.partialorder %v1617, 0.0
        %vm4562 = vcmp.lt.f32.partialorder %v1618, 0.0
        %vm4563 = vcmp.lt.f32.partialorder %v1619, 0.0
        %vm4564 = vcmp.lt.f32.partialorder %v1620, 0.0
        %vm4565 = vcmp.lt.f32.partialorder %v1621, 0.0
        %vm4566 = vcmp.lt.f32.partialorder %v1622, 0.0
        %vm4567 = vcmp.lt.f32.partialorder %v1623, 0.0
        %vm4568 = vcmp.lt.f32.partialorder %v1624, 0.0
        %vm4569 = vcmp.lt.f32.partialorder %v1625, 0.0
        %vm4570 = vcmp.lt.f32.partialorder %v1626, 0.0
        %vm4571 = vcmp.lt.f32.partialorder %v1627, 0.0
        %vm4572 = vcmp.lt.f32.partialorder %v1628, 0.0
        %vm4573 = vcmp.lt.f32.partialorder %v1629, 0.0
        %vm4574 = vcmp.lt.f32.partialorder %v1630, 0.0
        %vm4575 = vcmp.lt.f32.partialorder %v1631, 0.0
        %vm4576 = vcmp.lt.f32.partialorder %v1632, 0.0
        %vm4577 = vcmp.lt.f32.partialorder %v1633, 0.0
        %vm4578 = vcmp.lt.f32.partialorder %v1634, 0.0
        %vm4579 = vcmp.lt.f32.partialorder %v1635, 0.0
        %vm4580 = vcmp.lt.f32.partialorder %v1636, 0.0
        %vm4581 = vcmp.lt.f32.partialorder %v1637, 0.0
        %vm4582 = vcmp.lt.f32.partialorder %v1638, 0.0
        %vm4583 = vcmp.lt.f32.partialorder %v1639, 0.0
        %vm4584 = vcmp.lt.f32.partialorder %v1640, 0.0
        %vm4585 = vcmp.lt.f32.partialorder %v1641, 0.0
        %vm4586 = vcmp.lt.f32.partialorder %v1642, 0.0
        %vm4587 = vcmp.lt.f32.partialorder %v1643, 0.0
        %vm4588 = vcmp.lt.f32.partialorder %v1644, 0.0
        %vm4589 = vcmp.lt.f32.partialorder %v1645, 0.0
        %vm4590 = vcmp.lt.f32.partialorder %v1646, 0.0
        %vm4591 = vcmp.lt.f32.partialorder %v1647, 0.0
        %vm4592 = vcmp.lt.f32.partialorder %v1648, 0.0
        %vm4593 = vcmp.lt.f32.partialorder %v1649, 0.0
        %vm4594 = vcmp.lt.f32.partialorder %v1650, 0.0
        %vm4595 = vcmp.lt.f32.partialorder %v1651, 0.0
        %vm4596 = vcmp.lt.f32.partialorder %v1652, 0.0
        %vm4597 = vcmp.lt.f32.partialorder %v1653, 0.0
        %vm4598 = vcmp.lt.f32.partialorder %v1654, 0.0
        %vm4599 = vcmp.lt.f32.partialorder %v1655, 0.0
        %vm4600 = vcmp.lt.f32.partialorder %v1656, 0.0
        %vm4601 = vcmp.lt.f32.partialorder %v1657, 0.0
        %vm4602 = vcmp.lt.f32.partialorder %v1658, 0.0
        %vm4603 = vcmp.lt.f32.partialorder %v1659, 0.0
        %vm4604 = vcmp.lt.f32.partialorder %v1660, 0.0
        %vm4605 = vcmp.lt.f32.partialorder %v1661, 0.0
        %vm4606 = vcmp.lt.f32.partialorder %v1662, 0.0
        %vm4607 = vcmp.lt.f32.partialorder %v1663, 0.0
        %vm4608 = vcmp.lt.f32.partialorder %v1664, 0.0
        %vm4609 = vcmp.lt.f32.partialorder %v1665, 0.0
        %vm4610 = vcmp.lt.f32.partialorder %v1666, 0.0
        %vm4611 = vcmp.lt.f32.partialorder %v1667, 0.0
        %vm4612 = vcmp.lt.f32.partialorder %v1668, 0.0
        %vm4613 = vcmp.lt.f32.partialorder %v1669, 0.0
        %vm4614 = vcmp.lt.f32.partialorder %v1670, 0.0
        %vm4615 = vcmp.lt.f32.partialorder %v1671, 0.0
        %vm4616 = vcmp.lt.f32.partialorder %v1672, 0.0
        %vm4617 = vcmp.lt.f32.partialorder %v1673, 0.0
        %vm4618 = vcmp.lt.f32.partialorder %v1674, 0.0
        %vm4619 = vcmp.lt.f32.partialorder %v1675, 0.0
        %vm4620 = vcmp.lt.f32.partialorder %v1676, 0.0
        %vm4621 = vcmp.lt.f32.partialorder %v1677, 0.0
        %vm4622 = vcmp.lt.f32.partialorder %v1678, 0.0
        %vm4623 = vcmp.lt.f32.partialorder %v1679, 0.0
        %vm4624 = vcmp.lt.f32.partialorder %v1680, 0.0
        %vm4625 = vcmp.lt.f32.partialorder %v1681, 0.0
        %vm4626 = vcmp.lt.f32.partialorder %v1682, 0.0
        %vm4627 = vcmp.lt.f32.partialorder %v1683, 0.0
        %vm4628 = vcmp.lt.f32.partialorder %v1684, 0.0
        %vm4629 = vcmp.lt.f32.partialorder %v1685, 0.0
        %vm4630 = vcmp.lt.f32.partialorder %v1686, 0.0
        %vm4631 = vcmp.lt.f32.partialorder %v1687, 0.0
        %vm4632 = vcmp.lt.f32.partialorder %v1688, 0.0
        %vm4633 = vcmp.lt.f32.partialorder %v1689, 0.0
        %vm4634 = vcmp.lt.f32.partialorder %v1690, 0.0
        %vm4635 = vcmp.lt.f32.partialorder %v1691, 0.0
        %vm4636 = vcmp.lt.f32.partialorder %v1692, 0.0
        %vm4637 = vcmp.lt.f32.partialorder %v1693, 0.0
        %vm4638 = vcmp.lt.f32.partialorder %v1694, 0.0
        %vm4639 = vcmp.lt.f32.partialorder %v1695, 0.0
        %vm4640 = vcmp.lt.f32.partialorder %v1696, 0.0
        %vm4641 = vcmp.lt.f32.partialorder %v1697, 0.0
        %vm4642 = vcmp.lt.f32.partialorder %v1698, 0.0
        %vm4643 = vcmp.lt.f32.partialorder %v1699, 0.0
        %vm4644 = vcmp.lt.f32.partialorder %v1700, 0.0
        %vm4645 = vcmp.lt.f32.partialorder %v1701, 0.0
        %vm4646 = vcmp.lt.f32.partialorder %v1702, 0.0
        %vm4647 = vcmp.lt.f32.partialorder %v1703, 0.0
        %vm4648 = vcmp.lt.f32.partialorder %v1704, 0.0
        %vm4649 = vcmp.lt.f32.partialorder %v1705, 0.0
        %vm4650 = vcmp.lt.f32.partialorder %v1706, 0.0
        %vm4651 = vcmp.lt.f32.partialorder %v1707, 0.0
        %vm4652 = vcmp.lt.f32.partialorder %v1708, 0.0
        %vm4653 = vcmp.lt.f32.partialorder %v1709, 0.0
        %vm4654 = vcmp.lt.f32.partialorder %v1710, 0.0
        %vm4655 = vcmp.lt.f32.partialorder %v1711, 0.0
        %vm4656 = vcmp.lt.f32.partialorder %v1712, 0.0
        %vm4657 = vcmp.lt.f32.partialorder %v1713, 0.0
        %vm4658 = vcmp.lt.f32.partialorder %v1714, 0.0
        %v4659 = vsub.f32 0.0, %v4403
        %v4660 = vsub.f32 0.0, %v4404
        %v4661 = vsub.f32 0.0, %v4405
        %v4662 = vsub.f32 0.0, %v4406
        %v4663 = vsub.f32 0.0, %v4407
        %v4664 = vsub.f32 0.0, %v4408
        %v4665 = vsub.f32 0.0, %v4409
        %v4666 = vsub.f32 0.0, %v4410
        %v4667 = vsub.f32 0.0, %v4411
        %v4668 = vsub.f32 0.0, %v4412
        %v4669 = vsub.f32 0.0, %v4413
        %v4670 = vsub.f32 0.0, %v4414
        %v4671 = vsub.f32 0.0, %v4415
        %v4672 = vsub.f32 0.0, %v4416
        %v4673 = vsub.f32 0.0, %v4417
        %v4674 = vsub.f32 0.0, %v4418
        %v4675 = vsub.f32 0.0, %v4419
        %v4676 = vsub.f32 0.0, %v4420
        %v4677 = vsub.f32 0.0, %v4421
        %v4678 = vsub.f32 0.0, %v4422
        %v4679 = vsub.f32 0.0, %v4423
        %v4680 = vsub.f32 0.0, %v4424
        %v4681 = vsub.f32 0.0, %v4425
        %v4682 = vsub.f32 0.0, %v4426
        %v4683 = vsub.f32 0.0, %v4427
        %v4684 = vsub.f32 0.0, %v4428
        %v4685 = vsub.f32 0.0, %v4429
        %v4686 = vsub.f32 0.0, %v4430
        %v4687 = vsub.f32 0.0, %v4431
        %v4688 = vsub.f32 0.0, %v4432
        %v4689 = vsub.f32 0.0, %v4433
        %v4690 = vsub.f32 0.0, %v4434
        %v4691 = vsub.f32 0.0, %v4435
        %v4692 = vsub.f32 0.0, %v4436
        %v4693 = vsub.f32 0.0, %v4437
        %v4694 = vsub.f32 0.0, %v4438
        %v4695 = vsub.f32 0.0, %v4439
        %v4696 = vsub.f32 0.0, %v4440
        %v4697 = vsub.f32 0.0, %v4441
        %v4698 = vsub.f32 0.0, %v4442
        %v4699 = vsub.f32 0.0, %v4443
        %v4700 = vsub.f32 0.0, %v4444
        %v4701 = vsub.f32 0.0, %v4445
        %v4702 = vsub.f32 0.0, %v4446
        %v4703 = vsub.f32 0.0, %v4447
        %v4704 = vsub.f32 0.0, %v4448
        %v4705 = vsub.f32 0.0, %v4449
        %v4706 = vsub.f32 0.0, %v4450
        %v4707 = vsub.f32 0.0, %v4451
        %v4708 = vsub.f32 0.0, %v4452
        %v4709 = vsub.f32 0.0, %v4453
        %v4710 = vsub.f32 0.0, %v4454
        %v4711 = vsub.f32 0.0, %v4455
        %v4712 = vsub.f32 0.0, %v4456
        %v4713 = vsub.f32 0.0, %v4457
        %v4714 = vsub.f32 0.0, %v4458
        %v4715 = vsub.f32 0.0, %v4459
        %v4716 = vsub.f32 0.0, %v4460
        %v4717 = vsub.f32 0.0, %v4461
        %v4718 = vsub.f32 0.0, %v4462
        %v4719 = vsub.f32 0.0, %v4463
        %v4720 = vsub.f32 0.0, %v4464
        %v4721 = vsub.f32 0.0, %v4465
        %v4722 = vsub.f32 0.0, %v4466
        %v4723 = vsub.f32 0.0, %v4467
        %v4724 = vsub.f32 0.0, %v4468
        %v4725 = vsub.f32 0.0, %v4469
        %v4726 = vsub.f32 0.0, %v4470
        %v4727 = vsub.f32 0.0, %v4471
        %v4728 = vsub.f32 0.0, %v4472
        %v4729 = vsub.f32 0.0, %v4473
        %v4730 = vsub.f32 0.0, %v4474
        %v4731 = vsub.f32 0.0, %v4475
        %v4732 = vsub.f32 0.0, %v4476
        %v4733 = vsub.f32 0.0, %v4477
        %v4734 = vsub.f32 0.0, %v4478
        %v4735 = vsub.f32 0.0, %v4479
        %v4736 = vsub.f32 0.0, %v4480
        %v4737 = vsub.f32 0.0, %v4481
        %v4738 = vsub.f32 0.0, %v4482
        %v4739 = vsub.f32 0.0, %v4483
        %v4740 = vsub.f32 0.0, %v4484
        %v4741 = vsub.f32 0.0, %v4485
        %v4742 = vsub.f32 0.0, %v4486
        %v4743 = vsub.f32 0.0, %v4487
        %v4744 = vsub.f32 0.0, %v4488
        %v4745 = vsub.f32 0.0, %v4489
        %v4746 = vsub.f32 0.0, %v4490
        %v4747 = vsub.f32 0.0, %v4491
        %v4748 = vsub.f32 0.0, %v4492
        %v4749 = vsub.f32 0.0, %v4493
        %v4750 = vsub.f32 0.0, %v4494
        %v4751 = vsub.f32 0.0, %v4495
        %v4752 = vsub.f32 0.0, %v4496
        %v4753 = vsub.f32 0.0, %v4497
        %v4754 = vsub.f32 0.0, %v4498
        %v4755 = vsub.f32 0.0, %v4499
        %v4756 = vsub.f32 0.0, %v4500
        %v4757 = vsub.f32 0.0, %v4501
        %v4758 = vsub.f32 0.0, %v4502
        %v4759 = vsub.f32 0.0, %v4503
        %v4760 = vsub.f32 0.0, %v4504
        %v4761 = vsub.f32 0.0, %v4505
        %v4762 = vsub.f32 0.0, %v4506
        %v4763 = vsub.f32 0.0, %v4507
        %v4764 = vsub.f32 0.0, %v4508
        %v4765 = vsub.f32 0.0, %v4509
        %v4766 = vsub.f32 0.0, %v4510
        %v4767 = vsub.f32 0.0, %v4511
        %v4768 = vsub.f32 0.0, %v4512
        %v4769 = vsub.f32 0.0, %v4513
        %v4770 = vsub.f32 0.0, %v4514
        %v4771 = vsub.f32 0.0, %v4515
        %v4772 = vsub.f32 0.0, %v4516
        %v4773 = vsub.f32 0.0, %v4517
        %v4774 = vsub.f32 0.0, %v4518
        %v4775 = vsub.f32 0.0, %v4519
        %v4776 = vsub.f32 0.0, %v4520
        %v4777 = vsub.f32 0.0, %v4521
        %v4778 = vsub.f32 0.0, %v4522
        %v4779 = vsub.f32 0.0, %v4523
        %v4780 = vsub.f32 0.0, %v4524
        %v4781 = vsub.f32 0.0, %v4525
        %v4782 = vsub.f32 0.0, %v4526
        %v4783 = vsub.f32 0.0, %v4527
        %v4784 = vsub.f32 0.0, %v4528
        %v4785 = vsub.f32 0.0, %v4529
        %v4786 = vsub.f32 0.0, %v4530
        %v4787 = vsel %vm4531, %v4659, %v4403
        %v4788 = vsel %vm4532, %v4660, %v4404
        %v4789 = vsel %vm4533, %v4661, %v4405
        %v4790 = vsel %vm4534, %v4662, %v4406
        %v4791 = vsel %vm4535, %v4663, %v4407
        %v4792 = vsel %vm4536, %v4664, %v4408
        %v4793 = vsel %vm4537, %v4665, %v4409
        %v4794 = vsel %vm4538, %v4666, %v4410
        %v4795 = vsel %vm4539, %v4667, %v4411
        %v4796 = vsel %vm4540, %v4668, %v4412
        %v4797 = vsel %vm4541, %v4669, %v4413
        %v4798 = vsel %vm4542, %v4670, %v4414
        %v4799 = vsel %vm4543, %v4671, %v4415
        %v4800 = vsel %vm4544, %v4672, %v4416
        %v4801 = vsel %vm4545, %v4673, %v4417
        %v4802 = vsel %vm4546, %v4674, %v4418
        %v4803 = vsel %vm4547, %v4675, %v4419
        %v4804 = vsel %vm4548, %v4676, %v4420
        %v4805 = vsel %vm4549, %v4677, %v4421
        %v4806 = vsel %vm4550, %v4678, %v4422
        %v4807 = vsel %vm4551, %v4679, %v4423
        %v4808 = vsel %vm4552, %v4680, %v4424
        %v4809 = vsel %vm4553, %v4681, %v4425
        %v4810 = vsel %vm4554, %v4682, %v4426
        %v4811 = vsel %vm4555, %v4683, %v4427
        %v4812 = vsel %vm4556, %v4684, %v4428
        %v4813 = vsel %vm4557, %v4685, %v4429
        %v4814 = vsel %vm4558, %v4686, %v4430
        %v4815 = vsel %vm4559, %v4687, %v4431
        %v4816 = vsel %vm4560, %v4688, %v4432
        %v4817 = vsel %vm4561, %v4689, %v4433
        %v4818 = vsel %vm4562, %v4690, %v4434
        %v4819 = vsel %vm4563, %v4691, %v4435
        %v4820 = vsel %vm4564, %v4692, %v4436
        %v4821 = vsel %vm4565, %v4693, %v4437
        %v4822 = vsel %vm4566, %v4694, %v4438
        %v4823 = vsel %vm4567, %v4695, %v4439
        %v4824 = vsel %vm4568, %v4696, %v4440
        %v4825 = vsel %vm4569, %v4697, %v4441
        %v4826 = vsel %vm4570, %v4698, %v4442
        %v4827 = vsel %vm4571, %v4699, %v4443
        %v4828 = vsel %vm4572, %v4700, %v4444
        %v4829 = vsel %vm4573, %v4701, %v4445
        %v4830 = vsel %vm4574, %v4702, %v4446
        %v4831 = vsel %vm4575, %v4703, %v4447
        %v4832 = vsel %vm4576, %v4704, %v4448
        %v4833 = vsel %vm4577, %v4705, %v4449
        %v4834 = vsel %vm4578, %v4706, %v4450
        %v4835 = vsel %vm4579, %v4707, %v4451
        %v4836 = vsel %vm4580, %v4708, %v4452
        %v4837 = vsel %vm4581, %v4709, %v4453
        %v4838 = vsel %vm4582, %v4710, %v4454
        %v4839 = vsel %vm4583, %v4711, %v4455
        %v4840 = vsel %vm4584, %v4712, %v4456
        %v4841 = vsel %vm4585, %v4713, %v4457
        %v4842 = vsel %vm4586, %v4714, %v4458
        %v4843 = vsel %vm4587, %v4715, %v4459
        %v4844 = vsel %vm4588, %v4716, %v4460
        %v4845 = vsel %vm4589, %v4717, %v4461
        %v4846 = vsel %vm4590, %v4718, %v4462
        %v4847 = vsel %vm4591, %v4719, %v4463
        %v4848 = vsel %vm4592, %v4720, %v4464
        %v4849 = vsel %vm4593, %v4721, %v4465
        %v4850 = vsel %vm4594, %v4722, %v4466
        %v4851 = vsel %vm4595, %v4723, %v4467
        %v4852 = vsel %vm4596, %v4724, %v4468
        %v4853 = vsel %vm4597, %v4725, %v4469
        %v4854 = vsel %vm4598, %v4726, %v4470
        %v4855 = vsel %vm4599, %v4727, %v4471
        %v4856 = vsel %vm4600, %v4728, %v4472
        %v4857 = vsel %vm4601, %v4729, %v4473
        %v4858 = vsel %vm4602, %v4730, %v4474
        %v4859 = vsel %vm4603, %v4731, %v4475
        %v4860 = vsel %vm4604, %v4732, %v4476
        %v4861 = vsel %vm4605, %v4733, %v4477
        %v4862 = vsel %vm4606, %v4734, %v4478
        %v4863 = vsel %vm4607, %v4735, %v4479
        %v4864 = vsel %vm4608, %v4736, %v4480
        %v4865 = vsel %vm4609, %v4737, %v4481
        %v4866 = vsel %vm4610, %v4738, %v4482
        %v4867 = vsel %vm4611, %v4739, %v4483
        %v4868 = vsel %vm4612, %v4740, %v4484
        %v4869 = vsel %vm4613, %v4741, %v4485
        %v4870 = vsel %vm4614, %v4742, %v4486
        %v4871 = vsel %vm4615, %v4743, %v4487
        %v4872 = vsel %vm4616, %v4744, %v4488
        %v4873 = vsel %vm4617, %v4745, %v4489
        %v4874 = vsel %vm4618, %v4746, %v4490
        %v4875 = vsel %vm4619, %v4747, %v4491
        %v4876 = vsel %vm4620, %v4748, %v4492
        %v4877 = vsel %vm4621, %v4749, %v4493
        %v4878 = vsel %vm4622, %v4750, %v4494
        %v4879 = vsel %vm4623, %v4751, %v4495
        %v4880 = vsel %vm4624, %v4752, %v4496
        %v4881 = vsel %vm4625, %v4753, %v4497
        %v4882 = vsel %vm4626, %v4754, %v4498
        %v4883 = vsel %vm4627, %v4755, %v4499
        %v4884 = vsel %vm4628, %v4756, %v4500
        %v4885 = vsel %vm4629, %v4757, %v4501
        %v4886 = vsel %vm4630, %v4758, %v4502
        %v4887 = vsel %vm4631, %v4759, %v4503
        %v4888 = vsel %vm4632, %v4760, %v4504
        %v4889 = vsel %vm4633, %v4761, %v4505
        %v4890 = vsel %vm4634, %v4762, %v4506
        %v4891 = vsel %vm4635, %v4763, %v4507
        %v4892 = vsel %vm4636, %v4764, %v4508
        %v4893 = vsel %vm4637, %v4765, %v4509
        %v4894 = vsel %vm4638, %v4766, %v4510
        %v4895 = vsel %vm4639, %v4767, %v4511
        %v4896 = vsel %vm4640, %v4768, %v4512
        %v4897 = vsel %vm4641, %v4769, %v4513
        %v4898 = vsel %vm4642, %v4770, %v4514
        %v4899 = vsel %vm4643, %v4771, %v4515
        %v4900 = vsel %vm4644, %v4772, %v4516
        %v4901 = vsel %vm4645, %v4773, %v4517
        %v4902 = vsel %vm4646, %v4774, %v4518
        %v4903 = vsel %vm4647, %v4775, %v4519
        %v4904 = vsel %vm4648, %v4776, %v4520
        %v4905 = vsel %vm4649, %v4777, %v4521
        %v4906 = vsel %vm4650, %v4778, %v4522
        %v4907 = vsel %vm4651, %v4779, %v4523
        %v4908 = vsel %vm4652, %v4780, %v4524
        %v4909 = vsel %vm4653, %v4781, %v4525
        %v4910 = vsel %vm4654, %v4782, %v4526
        %v4911 = vsel %vm4655, %v4783, %v4527
        %v4912 = vsel %vm4656, %v4784, %v4528
        %v4913 = vsel %vm4657, %v4785, %v4529
        %v4914 = vsel %vm4658, %v4786, %v4530
        %v4915 = vmul.f32 %v1170, 0.5
        %v4916 = vmul.f32 %v1172, 0.5
        %v4917 = vmul.f32 %v1283, 0.5
        %v4918 = vmul.f32 %v1285, 0.5
        %v4919 = vmul.f32 %v1396, 0.5
        %v4920 = vmul.f32 %v1398, 0.5
        %v4921 = vmul.f32 %v1509, 0.5
        %v4922 = vmul.f32 %v1511, 0.5
        %v4923 = vmul.f32 %v1174, 0.5
        %v4924 = vmul.f32 %v1176, 0.5
        %v4925 = vmul.f32 %v1287, 0.5
        %v4926 = vmul.f32 %v1289, 0.5
        %v4927 = vmul.f32 %v1400, 0.5
        %v4928 = vmul.f32 %v1402, 0.5
        %v4929 = vmul.f32 %v1513, 0.5
        %v4930 = vmul.f32 %v1515, 0.5
        %v4931 = vmul.f32 %v1180, 0.5
        %v4932 = vmul.f32 %v1182, 0.5
        %v4933 = vmul.f32 %v1293, 0.5
        %v4934 = vmul.f32 %v1295, 0.5
        %v4935 = vmul.f32 %v1406, 0.5
        %v4936 = vmul.f32 %v1408, 0.5
        %v4937 = vmul.f32 %v1519, 0.5
        %v4938 = vmul.f32 %v1521, 0.5
        %v4939 = vmul.f32 %v1184, 0.5
        %v4940 = vmul.f32 %v1186, 0.5
        %v4941 = vmul.f32 %v1297, 0.5
        %v4942 = vmul.f32 %v1299, 0.5
        %v4943 = vmul.f32 %v1410, 0.5
        %v4944 = vmul.f32 %v1412, 0.5
        %v4945 = vmul.f32 %v1523, 0.5
        %v4946 = vmul.f32 %v1525, 0.5
        %v4947 = vmul.f32 %v1190, 0.5
        %v4948 = vmul.f32 %v1192, 0.5
        %v4949 = vmul.f32 %v1303, 0.5
        %v4950 = vmul.f32 %v1305, 0.5
        %v4951 = vmul.f32 %v1416, 0.5
        %v4952 = vmul.f32 %v1418, 0.5
        %v4953 = vmul.f32 %v1529, 0.5
        %v4954 = vmul.f32 %v1531, 0.5
        %v4955 = vmul.f32 %v1194, 0.5
        %v4956 = vmul.f32 %v1196, 0.5
        %v4957 = vmul.f32 %v1307, 0.5
        %v4958 = vmul.f32 %v1309, 0.5
        %v4959 = vmul.f32 %v1420, 0.5
        %v4960 = vmul.f32 %v1422, 0.5
        %v4961 = vmul.f32 %v1533, 0.5
        %v4962 = vmul.f32 %v1535, 0.5
        %v4963 = vmul.f32 %v1200, 0.5
        %v4964 = vmul.f32 %v1202, 0.5
        %v4965 = vmul.f32 %v1313, 0.5
        %v4966 = vmul.f32 %v1315, 0.5
        %v4967 = vmul.f32 %v1426, 0.5
        %v4968 = vmul.f32 %v1428, 0.5
        %v4969 = vmul.f32 %v1539, 0.5
        %v4970 = vmul.f32 %v1541, 0.5
        %v4971 = vmul.f32 %v1204, 0.5
        %v4972 = vmul.f32 %v1206, 0.5
        %v4973 = vmul.f32 %v1317, 0.5
        %v4974 = vmul.f32 %v1319, 0.5
        %v4975 = vmul.f32 %v1430, 0.5
        %v4976 = vmul.f32 %v1432, 0.5
        %v4977 = vmul.f32 %v1543, 0.5
        %v4978 = vmul.f32 %v1545, 0.5
        %v4979 = vmul.f32 %v1210, 0.5
        %v4980 = vmul.f32 %v1212, 0.5
        %v4981 = vmul.f32 %v1323, 0.5
        %v4982 = vmul.f32 %v1325, 0.5
        %v4983 = vmul.f32 %v1436, 0.5
        %v4984 = vmul.f32 %v1438, 0.5
        %v4985 = vmul.f32 %v1549, 0.5
        %v4986 = vmul.f32 %v1551, 0.5
        %v4987 = vmul.f32 %v1214, 0.5
        %v4988 = vmul.f32 %v1216, 0.5
        %v4989 = vmul.f32 %v1327, 0.5
        %v4990 = vmul.f32 %v1329, 0.5
        %v4991 = vmul.f32 %v1440, 0.5
        %v4992 = vmul.f32 %v1442, 0.5
        %v4993 = vmul.f32 %v1553, 0.5
        %v4994 = vmul.f32 %v1555, 0.5
        %v4995 = vmul.f32 %v1220, 0.5
        %v4996 = vmul.f32 %v1222, 0.5
        %v4997 = vmul.f32 %v1333, 0.5
        %v4998 = vmul.f32 %v1335, 0.5
        %v4999 = vmul.f32 %v1446, 0.5
        %v5000 = vmul.f32 %v1448, 0.5
        %v5001 = vmul.f32 %v1559, 0.5
        %v5002 = vmul.f32 %v1561, 0.5
        %v5003 = vmul.f32 %v1224, 0.5
        %v5004 = vmul.f32 %v1226, 0.5
        %v5005 = vmul.f32 %v1337, 0.5
        %v5006 = vmul.f32 %v1339, 0.5
        %v5007 = vmul.f32 %v1450, 0.5
        %v5008 = vmul.f32 %v1452, 0.5
        %v5009 = vmul.f32 %v1563, 0.5
        %v5010 = vmul.f32 %v1565, 0.5
        %v5011 = vmul.f32 %v1230, 0.5
        %v5012 = vmul.f32 %v1232, 0.5
        %v5013 = vmul.f32 %v1343, 0.5
        %v5014 = vmul.f32 %v1345, 0.5
        %v5015 = vmul.f32 %v1456, 0.5
        %v5016 = vmul.f32 %v1458, 0.5
        %v5017 = vmul.f32 %v1569, 0.5
        %v5018 = vmul.f32 %v1571, 0.5
        %v5019 = vmul.f32 %v1234, 0.5
        %v5020 = vmul.f32 %v1236, 0.5
        %v5021 = vmul.f32 %v1347, 0.5
        %v5022 = vmul.f32 %v1349, 0.5
        %v5023 = vmul.f32 %v1460, 0.5
        %v5024 = vmul.f32 %v1462, 0.5
        %v5025 = vmul.f32 %v1573, 0.5
        %v5026 = vmul.f32 %v1575, 0.5
        %v5027 = vmul.f32 %v1240, 0.5
        %v5028 = vmul.f32 %v1242, 0.5
        %v5029 = vmul.f32 %v1353, 0.5
        %v5030 = vmul.f32 %v1355, 0.5
        %v5031 = vmul.f32 %v1466, 0.5
        %v5032 = vmul.f32 %v1468, 0.5
        %v5033 = vmul.f32 %v1579, 0.5
        %v5034 = vmul.f32 %v1581, 0.5
        %v5035 = vmul.f32 %v1244, 0.5
        %v5036 = vmul.f32 %v1246, 0.5
        %v5037 = vmul.f32 %v1357, 0.5
        %v5038 = vmul.f32 %v1359, 0.5
        %v5039 = vmul.f32 %v1470, 0.5
        %v5040 = vmul.f32 %v1472, 0.5
        %v5041 = vmul.f32 %v1583, 0.5
        %v5042 = vmul.f32 %v1585, 0.5
        %v5043 = vadd.f32 %v4787, 1.0
        %v5044 = vadd.f32 %v4788, 1.0
        %v5045 = vadd.f32 %v4789, 1.0
        %v5046 = vadd.f32 %v4790, 1.0
        %v5047 = vadd.f32 %v4791, 1.0
        %v5048 = vadd.f32 %v4792, 1.0
        %v5049 = vadd.f32 %v4793, 1.0
        %v5050 = vadd.f32 %v4794, 1.0
        %v5051 = vadd.f32 %v4795, 1.0
        %v5052 = vadd.f32 %v4796, 1.0
        %v5053 = vadd.f32 %v4797, 1.0
        %v5054 = vadd.f32 %v4798, 1.0
        %v5055 = vadd.f32 %v4799, 1.0
        %v5056 = vadd.f32 %v4800, 1.0
        %v5057 = vadd.f32 %v4801, 1.0
        %v5058 = vadd.f32 %v4802, 1.0
        %v5059 = vadd.f32 %v4803, 1.0
        %v5060 = vadd.f32 %v4804, 1.0
        %v5061 = vadd.f32 %v4805, 1.0
        %v5062 = vadd.f32 %v4806, 1.0
        %v5063 = vadd.f32 %v4807, 1.0
        %v5064 = vadd.f32 %v4808, 1.0
        %v5065 = vadd.f32 %v4809, 1.0
        %v5066 = vadd.f32 %v4810, 1.0
        %v5067 = vadd.f32 %v4811, 1.0
        %v5068 = vadd.f32 %v4812, 1.0
        %v5069 = vadd.f32 %v4813, 1.0
        %v5070 = vadd.f32 %v4814, 1.0
        %v5071 = vadd.f32 %v4815, 1.0
        %v5072 = vadd.f32 %v4816, 1.0
        %v5073 = vadd.f32 %v4817, 1.0
        %v5074 = vadd.f32 %v4818, 1.0
        %v5075 = vadd.f32 %v4819, 1.0
        %v5076 = vadd.f32 %v4820, 1.0
        %v5077 = vadd.f32 %v4821, 1.0
        %v5078 = vadd.f32 %v4822, 1.0
        %v5079 = vadd.f32 %v4823, 1.0
        %v5080 = vadd.f32 %v4824, 1.0
        %v5081 = vadd.f32 %v4825, 1.0
        %v5082 = vadd.f32 %v4826, 1.0
        %v5083 = vadd.f32 %v4827, 1.0
        %v5084 = vadd.f32 %v4828, 1.0
        %v5085 = vadd.f32 %v4829, 1.0
        %v5086 = vadd.f32 %v4830, 1.0
        %v5087 = vadd.f32 %v4831, 1.0
        %v5088 = vadd.f32 %v4832, 1.0
        %v5089 = vadd.f32 %v4833, 1.0
        %v5090 = vadd.f32 %v4834, 1.0
        %v5091 = vadd.f32 %v4835, 1.0
        %v5092 = vadd.f32 %v4836, 1.0
        %v5093 = vadd.f32 %v4837, 1.0
        %v5094 = vadd.f32 %v4838, 1.0
        %v5095 = vadd.f32 %v4839, 1.0
        %v5096 = vadd.f32 %v4840, 1.0
        %v5097 = vadd.f32 %v4841, 1.0
        %v5098 = vadd.f32 %v4842, 1.0
        %v5099 = vadd.f32 %v4843, 1.0
        %v5100 = vadd.f32 %v4844, 1.0
        %v5101 = vadd.f32 %v4845, 1.0
        %v5102 = vadd.f32 %v4846, 1.0
        %v5103 = vadd.f32 %v4847, 1.0
        %v5104 = vadd.f32 %v4848, 1.0
        %v5105 = vadd.f32 %v4849, 1.0
        %v5106 = vadd.f32 %v4850, 1.0
        %v5107 = vadd.f32 %v4851, 1.0
        %v5108 = vadd.f32 %v4852, 1.0
        %v5109 = vadd.f32 %v4853, 1.0
        %v5110 = vadd.f32 %v4854, 1.0
        %v5111 = vadd.f32 %v4855, 1.0
        %v5112 = vadd.f32 %v4856, 1.0
        %v5113 = vadd.f32 %v4857, 1.0
        %v5114 = vadd.f32 %v4858, 1.0
        %v5115 = vadd.f32 %v4859, 1.0
        %v5116 = vadd.f32 %v4860, 1.0
        %v5117 = vadd.f32 %v4861, 1.0
        %v5118 = vadd.f32 %v4862, 1.0
        %v5119 = vadd.f32 %v4863, 1.0
        %v5120 = vadd.f32 %v4864, 1.0
        %v5121 = vadd.f32 %v4865, 1.0
        %v5122 = vadd.f32 %v4866, 1.0
        %v5123 = vadd.f32 %v4867, 1.0
        %v5124 = vadd.f32 %v4868, 1.0
        %v5125 = vadd.f32 %v4869, 1.0
        %v5126 = vadd.f32 %v4870, 1.0
        %v5127 = vadd.f32 %v4871, 1.0
        %v5128 = vadd.f32 %v4872, 1.0
        %v5129 = vadd.f32 %v4873, 1.0
        %v5130 = vadd.f32 %v4874, 1.0
        %v5131 = vadd.f32 %v4875, 1.0
        %v5132 = vadd.f32 %v4876, 1.0
        %v5133 = vadd.f32 %v4877, 1.0
        %v5134 = vadd.f32 %v4878, 1.0
        %v5135 = vadd.f32 %v4879, 1.0
        %v5136 = vadd.f32 %v4880, 1.0
        %v5137 = vadd.f32 %v4881, 1.0
        %v5138 = vadd.f32 %v4882, 1.0
        %v5139 = vadd.f32 %v4883, 1.0
        %v5140 = vadd.f32 %v4884, 1.0
        %v5141 = vadd.f32 %v4885, 1.0
        %v5142 = vadd.f32 %v4886, 1.0
        %v5143 = vadd.f32 %v4887, 1.0
        %v5144 = vadd.f32 %v4888, 1.0
        %v5145 = vadd.f32 %v4889, 1.0
        %v5146 = vadd.f32 %v4890, 1.0
        %v5147 = vadd.f32 %v4891, 1.0
        %v5148 = vadd.f32 %v4892, 1.0
        %v5149 = vadd.f32 %v4893, 1.0
        %v5150 = vadd.f32 %v4894, 1.0
        %v5151 = vadd.f32 %v4895, 1.0
        %v5152 = vadd.f32 %v4896, 1.0
        %v5153 = vadd.f32 %v4897, 1.0
        %v5154 = vadd.f32 %v4898, 1.0
        %v5155 = vadd.f32 %v4899, 1.0
        %v5156 = vadd.f32 %v4900, 1.0
        %v5157 = vadd.f32 %v4901, 1.0
        %v5158 = vadd.f32 %v4902, 1.0
        %v5159 = vadd.f32 %v4903, 1.0
        %v5160 = vadd.f32 %v4904, 1.0
        %v5161 = vadd.f32 %v4905, 1.0
        %v5162 = vadd.f32 %v4906, 1.0
        %v5163 = vadd.f32 %v4907, 1.0
        %v5164 = vadd.f32 %v4908, 1.0
        %v5165 = vadd.f32 %v4909, 1.0
        %v5166 = vadd.f32 %v4910, 1.0
        %v5167 = vadd.f32 %v4911, 1.0
        %v5168 = vadd.f32 %v4912, 1.0
        %v5169 = vadd.f32 %v4913, 1.0
        %v5170 = vadd.f32 %v4914, 1.0
        %v5171 = vmul.f32 %v4915, %v5043
        %v5172 = vmul.f32 %v4916, %v5044
        %v5173 = vmul.f32 %v4917, %v5045
        %v5174 = vmul.f32 %v4918, %v5046
        %v5175 = vmul.f32 %v4919, %v5047
        %v5176 = vmul.f32 %v4920, %v5048
        %v5177 = vmul.f32 %v4921, %v5049
        %v5178 = vmul.f32 %v4922, %v5050
        %v5179 = vmul.f32 %v4923, %v5051
        %v5180 = vmul.f32 %v4924, %v5052
        %v5181 = vmul.f32 %v4925, %v5053
        %v5182 = vmul.f32 %v4926, %v5054
        %v5183 = vmul.f32 %v4927, %v5055
        %v5184 = vmul.f32 %v4928, %v5056
        %v5185 = vmul.f32 %v4929, %v5057
        %v5186 = vmul.f32 %v4930, %v5058
        %v5187 = vmul.f32 %v4931, %v5059
        %v5188 = vmul.f32 %v4932, %v5060
        %v5189 = vmul.f32 %v4933, %v5061
        %v5190 = vmul.f32 %v4934, %v5062
        %v5191 = vmul.f32 %v4935, %v5063
        %v5192 = vmul.f32 %v4936, %v5064
        %v5193 = vmul.f32 %v4937, %v5065
        %v5194 = vmul.f32 %v4938, %v5066
        %v5195 = vmul.f32 %v4939, %v5067
        %v5196 = vmul.f32 %v4940, %v5068
        %v5197 = vmul.f32 %v4941, %v5069
        %v5198 = vmul.f32 %v4942, %v5070
        %v5199 = vmul.f32 %v4943, %v5071
        %v5200 = vmul.f32 %v4944, %v5072
        %v5201 = vmul.f32 %v4945, %v5073
        %v5202 = vmul.f32 %v4946, %v5074
        %v5203 = vmul.f32 %v4947, %v5075
        %v5204 = vmul.f32 %v4948, %v5076
        %v5205 = vmul.f32 %v4949, %v5077
        %v5206 = vmul.f32 %v4950, %v5078
        %v5207 = vmul.f32 %v4951, %v5079
        %v5208 = vmul.f32 %v4952, %v5080
        %v5209 = vmul.f32 %v4953, %v5081
        %v5210 = vmul.f32 %v4954, %v5082
        %v5211 = vmul.f32 %v4955, %v5083
        %v5212 = vmul.f32 %v4956, %v5084
        %v5213 = vmul.f32 %v4957, %v5085
        %v5214 = vmul.f32 %v4958, %v5086
        %v5215 = vmul.f32 %v4959, %v5087
        %v5216 = vmul.f32 %v4960, %v5088
        %v5217 = vmul.f32 %v4961, %v5089
        %v5218 = vmul.f32 %v4962, %v5090
        %v5219 = vmul.f32 %v4963, %v5091
        %v5220 = vmul.f32 %v4964, %v5092
        %v5221 = vmul.f32 %v4965, %v5093
        %v5222 = vmul.f32 %v4966, %v5094
        %v5223 = vmul.f32 %v4967, %v5095
        %v5224 = vmul.f32 %v4968, %v5096
        %v5225 = vmul.f32 %v4969, %v5097
        %v5226 = vmul.f32 %v4970, %v5098
        %v5227 = vmul.f32 %v4971, %v5099
        %v5228 = vmul.f32 %v4972, %v5100
        %v5229 = vmul.f32 %v4973, %v5101
        %v5230 = vmul.f32 %v4974, %v5102
        %v5231 = vmul.f32 %v4975, %v5103
        %v5232 = vmul.f32 %v4976, %v5104
        %v5233 = vmul.f32 %v4977, %v5105
        %v5234 = vmul.f32 %v4978, %v5106
        %v5235 = vmul.f32 %v4979, %v5107
        %v5236 = vmul.f32 %v4980, %v5108
        %v5237 = vmul.f32 %v4981, %v5109
        %v5238 = vmul.f32 %v4982, %v5110
        %v5239 = vmul.f32 %v4983, %v5111
        %v5240 = vmul.f32 %v4984, %v5112
        %v5241 = vmul.f32 %v4985, %v5113
        %v5242 = vmul.f32 %v4986, %v5114
        %v5243 = vmul.f32 %v4987, %v5115
        %v5244 = vmul.f32 %v4988, %v5116
        %v5245 = vmul.f32 %v4989, %v5117
        %v5246 = vmul.f32 %v4990, %v5118
        %v5247 = vmul.f32 %v4991, %v5119
        %v5248 = vmul.f32 %v4992, %v5120
        %v5249 = vmul.f32 %v4993, %v5121
        %v5250 = vmul.f32 %v4994, %v5122
        %v5251 = vmul.f32 %v4995, %v5123
        %v5252 = vmul.f32 %v4996, %v5124
        %v5253 = vmul.f32 %v4997, %v5125
        %v5254 = vmul.f32 %v4998, %v5126
        %v5255 = vmul.f32 %v4999, %v5127
        %v5256 = vmul.f32 %v5000, %v5128
        %v5257 = vmul.f32 %v5001, %v5129
        %v5258 = vmul.f32 %v5002, %v5130
        %v5259 = vmul.f32 %v5003, %v5131
        %v5260 = vmul.f32 %v5004, %v5132
        %v5261 = vmul.f32 %v5005, %v5133
        %v5262 = vmul.f32 %v5006, %v5134
        %v5263 = vmul.f32 %v5007, %v5135
        %v5264 = vmul.f32 %v5008, %v5136
        %v5265 = vmul.f32 %v5009, %v5137
        %v5266 = vmul.f32 %v5010, %v5138
        %v5267 = vmul.f32 %v5011, %v5139
        %v5268 = vmul.f32 %v5012, %v5140
        %v5269 = vmul.f32 %v5013, %v5141
        %v5270 = vmul.f32 %v5014, %v5142
        %v5271 = vmul.f32 %v5015, %v5143
        %v5272 = vmul.f32 %v5016, %v5144
        %v5273 = vmul.f32 %v5017, %v5145
        %v5274 = vmul.f32 %v5018, %v5146
        %v5275 = vmul.f32 %v5019, %v5147
        %v5276 = vmul.f32 %v5020, %v5148
        %v5277 = vmul.f32 %v5021, %v5149
        %v5278 = vmul.f32 %v5022, %v5150
        %v5279 = vmul.f32 %v5023, %v5151
        %v5280 = vmul.f32 %v5024, %v5152
        %v5281 = vmul.f32 %v5025, %v5153
        %v5282 = vmul.f32 %v5026, %v5154
        %v5283 = vmul.f32 %v5027, %v5155
        %v5284 = vmul.f32 %v5028, %v5156
        %v5285 = vmul.f32 %v5029, %v5157
        %v5286 = vmul.f32 %v5030, %v5158
        %v5287 = vmul.f32 %v5031, %v5159
        %v5288 = vmul.f32 %v5032, %v5160
        %v5289 = vmul.f32 %v5033, %v5161
        %v5290 = vmul.f32 %v5034, %v5162
        %v5291 = vmul.f32 %v5035, %v5163
        %v5292 = vmul.f32 %v5036, %v5164
        %v5293 = vmul.f32 %v5037, %v5165
        %v5294 = vmul.f32 %v5038, %v5166
        %v5295 = vmul.f32 %v5039, %v5167
        %v5296 = vmul.f32 %v5040, %v5168
        %v5297 = vmul.f32 %v5041, %v5169
        %v5298 = vmul.f32 %v5042, %v5170
        %v5299 = vpack.c.bf16 %v5179, %v5171
        %v5300 = vpack.c.bf16 %v5180, %v5172
        %v5301 = vpack.c.bf16 %v5181, %v5173
        %v5302 = vpack.c.bf16 %v5182, %v5174
        %v5303 = vpack.c.bf16 %v5183, %v5175
        %v5304 = vpack.c.bf16 %v5184, %v5176
        %v5305 = vpack.c.bf16 %v5185, %v5177
        %v5306 = vpack.c.bf16 %v5186, %v5178
        %v5307 = vpack.c.bf16 %v5195, %v5187
        %v5308 = vpack.c.bf16 %v5196, %v5188
        %v5309 = vpack.c.bf16 %v5197, %v5189
        %v5310 = vpack.c.bf16 %v5198, %v5190
        %v5311 = vpack.c.bf16 %v5199, %v5191
        %v5312 = vpack.c.bf16 %v5200, %v5192
        %v5313 = vpack.c.bf16 %v5201, %v5193
        %v5314 = vpack.c.bf16 %v5202, %v5194
        %v5315 = vpack.c.bf16 %v5211, %v5203
        %v5316 = vpack.c.bf16 %v5212, %v5204
        %v5317 = vpack.c.bf16 %v5213, %v5205
        %v5318 = vpack.c.bf16 %v5214, %v5206
        %v5319 = vpack.c.bf16 %v5215, %v5207
        %v5320 = vpack.c.bf16 %v5216, %v5208
        %v5321 = vpack.c.bf16 %v5217, %v5209
        %v5322 = vpack.c.bf16 %v5218, %v5210
        %v5323 = vpack.c.bf16 %v5227, %v5219
        %v5324 = vpack.c.bf16 %v5228, %v5220
        %v5325 = vpack.c.bf16 %v5229, %v5221
        %v5326 = vpack.c.bf16 %v5230, %v5222
        %v5327 = vpack.c.bf16 %v5231, %v5223
        %v5328 = vpack.c.bf16 %v5232, %v5224
        %v5329 = vpack.c.bf16 %v5233, %v5225
        %v5330 = vpack.c.bf16 %v5234, %v5226
        %v5331 = vpack.c.bf16 %v5243, %v5235
        %v5332 = vpack.c.bf16 %v5244, %v5236
        %v5333 = vpack.c.bf16 %v5245, %v5237
        %v5334 = vpack.c.bf16 %v5246, %v5238
        %v5335 = vpack.c.bf16 %v5247, %v5239
        %v5336 = vpack.c.bf16 %v5248, %v5240
        %v5337 = vpack.c.bf16 %v5249, %v5241
        %v5338 = vpack.c.bf16 %v5250, %v5242
        %v5339 = vpack.c.bf16 %v5259, %v5251
        %v5340 = vpack.c.bf16 %v5260, %v5252
        %v5341 = vpack.c.bf16 %v5261, %v5253
        %v5342 = vpack.c.bf16 %v5262, %v5254
        %v5343 = vpack.c.bf16 %v5263, %v5255
        %v5344 = vpack.c.bf16 %v5264, %v5256
        %v5345 = vpack.c.bf16 %v5265, %v5257
        %v5346 = vpack.c.bf16 %v5266, %v5258
        %v5347 = vpack.c.bf16 %v5275, %v5267
        %v5348 = vpack.c.bf16 %v5276, %v5268
        %v5349 = vpack.c.bf16 %v5277, %v5269
        %v5350 = vpack.c.bf16 %v5278, %v5270
        %v5351 = vpack.c.bf16 %v5279, %v5271
        %v5352 = vpack.c.bf16 %v5280, %v5272
        %v5353 = vpack.c.bf16 %v5281, %v5273
        %v5354 = vpack.c.bf16 %v5282, %v5274
        %v5355 = vpack.c.bf16 %v5291, %v5283
        %v5356 = vpack.c.bf16 %v5292, %v5284
        %v5357 = vpack.c.bf16 %v5293, %v5285
        %v5358 = vpack.c.bf16 %v5294, %v5286
        %v5359 = vpack.c.bf16 %v5295, %v5287
        %v5360 = vpack.c.bf16 %v5296, %v5288
        %v5361 = vpack.c.bf16 %v5297, %v5289
        %v5362 = vpack.c.bf16 %v5298, %v5290
        %v5363 = vld [vmem:[%s3] sm:$0xff]
        %v5364 = vld [vmem:[%s3 + $0x8] sm:$0xff]
        %v5365 = vld [vmem:[%s3 + $0x10] sm:$0xff]
        %v5366 = vld [vmem:[%s3 + $0x18] sm:$0xff]
        %v5367 = vld [vmem:[%s3 + $0x20] sm:$0xff]
        %v5368 = vld [vmem:[%s3 + $0x28] sm:$0xff]
        %v5369 = vld [vmem:[%s3 + $0x30] sm:$0xff]
        %v5370 = vld [vmem:[%s3 + $0x38] sm:$0xff]
        %v5371 = vld [vmem:[%s3 + $0x40] sm:$0xff]
        %v5372 = vld [vmem:[%s3 + $0x48] sm:$0xff]
        %v5373 = vld [vmem:[%s3 + $0x50] sm:$0xff]
        %v5374 = vld [vmem:[%s3 + $0x58] sm:$0xff]
        %v5375 = vld [vmem:[%s3 + $0x60] sm:$0xff]
        %v5376 = vld [vmem:[%s3 + $0x68] sm:$0xff]
        %v5377 = vld [vmem:[%s3 + $0x70] sm:$0xff]
        %v5378 = vld [vmem:[%s3 + $0x78] sm:$0xff]
        %v5379 = vld [vmem:[%s3 + $0x80] sm:$0xff]
        %v5380 = vld [vmem:[%s3 + $0x88] sm:$0xff]
        %v5381 = vld [vmem:[%s3 + $0x90] sm:$0xff]
        %v5382 = vld [vmem:[%s3 + $0x98] sm:$0xff]
        %v5383 = vld [vmem:[%s3 + $0xa0] sm:$0xff]
        %v5384 = vld [vmem:[%s3 + $0xa8] sm:$0xff]
        %v5385 = vld [vmem:[%s3 + $0xb0] sm:$0xff]
        %v5386 = vld [vmem:[%s3 + $0xb8] sm:$0xff]
        %v5387 = vld [vmem:[%s3 + $0xc0] sm:$0xff]
        %v5388 = vld [vmem:[%s3 + $0xc8] sm:$0xff]
        %v5389 = vld [vmem:[%s3 + $0xd0] sm:$0xff]
        %v5390 = vld [vmem:[%s3 + $0xd8] sm:$0xff]
        %v5391 = vld [vmem:[%s3 + $0xe0] sm:$0xff]
        %v5392 = vld [vmem:[%s3 + $0xe8] sm:$0xff]
        %v5393 = vld [vmem:[%s3 + $0xf0] sm:$0xff]
        %v5394 = vld [vmem:[%s3 + $0xf8] sm:$0xff]
        %v5395 = vld [vmem:[%s3 + $0x100] sm:$0xff]
        %v5396 = vld [vmem:[%s3 + $0x108] sm:$0xff]
        %v5397 = vld [vmem:[%s3 + $0x110] sm:$0xff]
        %v5398 = vld [vmem:[%s3 + $0x118] sm:$0xff]
        %v5399 = vld [vmem:[%s3 + $0x120] sm:$0xff]
        %v5400 = vld [vmem:[%s3 + $0x128] sm:$0xff]
        %v5401 = vld [vmem:[%s3 + $0x130] sm:$0xff]
        %v5402 = vld [vmem:[%s3 + $0x138] sm:$0xff]
        %v5403 = vld [vmem:[%s3 + $0x140] sm:$0xff]
        %v5404 = vld [vmem:[%s3 + $0x148] sm:$0xff]
        %v5405 = vld [vmem:[%s3 + $0x150] sm:$0xff]
        %v5406 = vld [vmem:[%s3 + $0x158] sm:$0xff]
        %v5407 = vld [vmem:[%s3 + $0x160] sm:$0xff]
        %v5408 = vld [vmem:[%s3 + $0x168] sm:$0xff]
        %v5409 = vld [vmem:[%s3 + $0x170] sm:$0xff]
        %v5410 = vld [vmem:[%s3 + $0x178] sm:$0xff]
        %v5411 = vld [vmem:[%s3 + $0x180] sm:$0xff]
        %v5412 = vld [vmem:[%s3 + $0x188] sm:$0xff]
        %v5413 = vld [vmem:[%s3 + $0x190] sm:$0xff]
        %v5414 = vld [vmem:[%s3 + $0x198] sm:$0xff]
        %v5415 = vld [vmem:[%s3 + $0x1a0] sm:$0xff]
        %v5416 = vld [vmem:[%s3 + $0x1a8] sm:$0xff]
        %v5417 = vld [vmem:[%s3 + $0x1b0] sm:$0xff]
        %v5418 = vld [vmem:[%s3 + $0x1b8] sm:$0xff]
        %v5419 = vld [vmem:[%s3 + $0x1c0] sm:$0xff]
        %v5420 = vld [vmem:[%s3 + $0x1c8] sm:$0xff]
        %v5421 = vld [vmem:[%s3 + $0x1d0] sm:$0xff]
        %v5422 = vld [vmem:[%s3 + $0x1d8] sm:$0xff]
        %v5423 = vld [vmem:[%s3 + $0x1e0] sm:$0xff]
        %v5424 = vld [vmem:[%s3 + $0x1e8] sm:$0xff]
        %v5425 = vld [vmem:[%s3 + $0x1f0] sm:$0xff]
        %v5426 = vld [vmem:[%s3 + $0x1f8] sm:$0xff]
        %v5427 = vld [vmem:[%s3 + $0x200] sm:$0xff]
        %v5428 = vld [vmem:[%s3 + $0x208] sm:$0xff]
        %v5429 = vld [vmem:[%s3 + $0x210] sm:$0xff]
        %v5430 = vld [vmem:[%s3 + $0x218] sm:$0xff]
        %v5431 = vld [vmem:[%s3 + $0x220] sm:$0xff]
        %v5432 = vld [vmem:[%s3 + $0x228] sm:$0xff]
        %v5433 = vld [vmem:[%s3 + $0x230] sm:$0xff]
        %v5434 = vld [vmem:[%s3 + $0x238] sm:$0xff]
        %v5435 = vld [vmem:[%s3 + $0x240] sm:$0xff]
        %v5436 = vld [vmem:[%s3 + $0x248] sm:$0xff]
        %v5437 = vld [vmem:[%s3 + $0x250] sm:$0xff]
        %v5438 = vld [vmem:[%s3 + $0x258] sm:$0xff]
        %v5439 = vld [vmem:[%s3 + $0x260] sm:$0xff]
        %v5440 = vld [vmem:[%s3 + $0x268] sm:$0xff]
        %v5441 = vld [vmem:[%s3 + $0x270] sm:$0xff]
        %v5442 = vld [vmem:[%s3 + $0x278] sm:$0xff]
        %v5443 = vld [vmem:[%s3 + $0x280] sm:$0xff]
        %v5444 = vld [vmem:[%s3 + $0x288] sm:$0xff]
        %v5445 = vld [vmem:[%s3 + $0x290] sm:$0xff]
        %v5446 = vld [vmem:[%s3 + $0x298] sm:$0xff]
        %v5447 = vld [vmem:[%s3 + $0x2a0] sm:$0xff]
        %v5448 = vld [vmem:[%s3 + $0x2a8] sm:$0xff]
        %v5449 = vld [vmem:[%s3 + $0x2b0] sm:$0xff]
        %v5450 = vld [vmem:[%s3 + $0x2b8] sm:$0xff]
        %v5451 = vld [vmem:[%s3 + $0x2c0] sm:$0xff]
        %v5452 = vld [vmem:[%s3 + $0x2c8] sm:$0xff]
        %v5453 = vld [vmem:[%s3 + $0x2d0] sm:$0xff]
        %v5454 = vld [vmem:[%s3 + $0x2d8] sm:$0xff]
        %v5455 = vld [vmem:[%s3 + $0x2e0] sm:$0xff]
        %v5456 = vld [vmem:[%s3 + $0x2e8] sm:$0xff]
        %v5457 = vld [vmem:[%s3 + $0x2f0] sm:$0xff]
        %v5458 = vld [vmem:[%s3 + $0x2f8] sm:$0xff]
        %v5459 = vld [vmem:[%s3 + $0x300] sm:$0xff]
        %v5460 = vld [vmem:[%s3 + $0x308] sm:$0xff]
        %v5461 = vld [vmem:[%s3 + $0x310] sm:$0xff]
        %v5462 = vld [vmem:[%s3 + $0x318] sm:$0xff]
        %v5463 = vld [vmem:[%s3 + $0x320] sm:$0xff]
        %v5464 = vld [vmem:[%s3 + $0x328] sm:$0xff]
        %v5465 = vld [vmem:[%s3 + $0x330] sm:$0xff]
        %v5466 = vld [vmem:[%s3 + $0x338] sm:$0xff]
        %v5467 = vld [vmem:[%s3 + $0x340] sm:$0xff]
        %v5468 = vld [vmem:[%s3 + $0x348] sm:$0xff]
        %v5469 = vld [vmem:[%s3 + $0x350] sm:$0xff]
        %v5470 = vld [vmem:[%s3 + $0x358] sm:$0xff]
        %v5471 = vld [vmem:[%s3 + $0x360] sm:$0xff]
        %v5472 = vld [vmem:[%s3 + $0x368] sm:$0xff]
        %v5473 = vld [vmem:[%s3 + $0x370] sm:$0xff]
        %v5474 = vld [vmem:[%s3 + $0x378] sm:$0xff]
        %v5475 = vld [vmem:[%s3 + $0x380] sm:$0xff]
        %v5476 = vld [vmem:[%s3 + $0x388] sm:$0xff]
        %v5477 = vld [vmem:[%s3 + $0x390] sm:$0xff]
        %v5478 = vld [vmem:[%s3 + $0x398] sm:$0xff]
        %v5479 = vld [vmem:[%s3 + $0x3a0] sm:$0xff]
        %v5480 = vld [vmem:[%s3 + $0x3a8] sm:$0xff]
        %v5481 = vld [vmem:[%s3 + $0x3b0] sm:$0xff]
        %v5482 = vld [vmem:[%s3 + $0x3b8] sm:$0xff]
        %v5483 = vld [vmem:[%s3 + $0x3c0] sm:$0xff]
        %v5484 = vld [vmem:[%s3 + $0x3c8] sm:$0xff]
        %v5485 = vld [vmem:[%s3 + $0x3d0] sm:$0xff]
        %v5486 = vld [vmem:[%s3 + $0x3d8] sm:$0xff]
        %v5487 = vld [vmem:[%s3 + $0x3e0] sm:$0xff]
        %v5488 = vld [vmem:[%s3 + $0x3e8] sm:$0xff]
        %v5489 = vld [vmem:[%s3 + $0x3f0] sm:$0xff]
        %v5490 = vld [vmem:[%s3 + $0x3f8] sm:$0xff]
        %v5491 = vld [vmem:[%s4] sm:$0x3]
        %v5493 = vlaneseq
        %v5494 = vshrl.u32 %v5493, 7
        %v5495 = vsub.s32 0, %v5494
        %v5496 = vrot.slane %v5491, %v5495
        %v5497 = vlaneseq
        %v5498 = vshrl.u32 %v5497, 7
        %v5499 = vsub.s32 1, %v5498
        %v5500 = vrot.slane %v5491, %v5499
        %v5631 = vunpack.c.l.b16 %v5363
        %v5632 = vunpack.c.h.b16 %v5363
        %v5633 = vunpack.c.l.b16 %v5364
        %v5634 = vunpack.c.h.b16 %v5364
        %v5635 = vunpack.c.l.b16 %v5365
        %v5636 = vunpack.c.h.b16 %v5365
        %v5637 = vunpack.c.l.b16 %v5366
        %v5638 = vunpack.c.h.b16 %v5366
        %v5639 = vunpack.c.l.b16 %v5367
        %v5640 = vunpack.c.h.b16 %v5367
        %v5641 = vunpack.c.l.b16 %v5368
        %v5642 = vunpack.c.h.b16 %v5368
        %v5643 = vunpack.c.l.b16 %v5369
        %v5644 = vunpack.c.h.b16 %v5369
        %v5645 = vunpack.c.l.b16 %v5370
        %v5646 = vunpack.c.h.b16 %v5370
        %v5647 = vunpack.c.l.b16 %v5371
        %v5648 = vunpack.c.h.b16 %v5371
        %v5649 = vunpack.c.l.b16 %v5372
        %v5650 = vunpack.c.h.b16 %v5372
        %v5651 = vunpack.c.l.b16 %v5373
        %v5652 = vunpack.c.h.b16 %v5373
        %v5653 = vunpack.c.l.b16 %v5374
        %v5654 = vunpack.c.h.b16 %v5374
        %v5655 = vunpack.c.l.b16 %v5375
        %v5656 = vunpack.c.h.b16 %v5375
        %v5657 = vunpack.c.l.b16 %v5376
        %v5658 = vunpack.c.h.b16 %v5376
        %v5659 = vunpack.c.l.b16 %v5377
        %v5660 = vunpack.c.h.b16 %v5377
        %v5661 = vunpack.c.l.b16 %v5378
        %v5662 = vunpack.c.h.b16 %v5378
        %v5663 = vunpack.c.l.b16 %v5379
        %v5664 = vunpack.c.h.b16 %v5379
        %v5665 = vunpack.c.l.b16 %v5380
        %v5666 = vunpack.c.h.b16 %v5380
        %v5667 = vunpack.c.l.b16 %v5381
        %v5668 = vunpack.c.h.b16 %v5381
        %v5669 = vunpack.c.l.b16 %v5382
        %v5670 = vunpack.c.h.b16 %v5382
        %v5671 = vunpack.c.l.b16 %v5383
        %v5672 = vunpack.c.h.b16 %v5383
        %v5673 = vunpack.c.l.b16 %v5384
        %v5674 = vunpack.c.h.b16 %v5384
        %v5675 = vunpack.c.l.b16 %v5385
        %v5676 = vunpack.c.h.b16 %v5385
        %v5677 = vunpack.c.l.b16 %v5386
        %v5678 = vunpack.c.h.b16 %v5386
        %v5679 = vunpack.c.l.b16 %v5387
        %v5680 = vunpack.c.h.b16 %v5387
        %v5681 = vunpack.c.l.b16 %v5388
        %v5682 = vunpack.c.h.b16 %v5388
        %v5683 = vunpack.c.l.b16 %v5389
        %v5684 = vunpack.c.h.b16 %v5389
        %v5685 = vunpack.c.l.b16 %v5390
        %v5686 = vunpack.c.h.b16 %v5390
        %v5687 = vunpack.c.l.b16 %v5391
        %v5688 = vunpack.c.h.b16 %v5391
        %v5689 = vunpack.c.l.b16 %v5392
        %v5690 = vunpack.c.h.b16 %v5392
        %v5691 = vunpack.c.l.b16 %v5393
        %v5692 = vunpack.c.h.b16 %v5393
        %v5693 = vunpack.c.l.b16 %v5394
        %v5694 = vunpack.c.h.b16 %v5394
        %v5695 = vunpack.c.l.b16 %v5395
        %v5696 = vunpack.c.h.b16 %v5395
        %v5697 = vunpack.c.l.b16 %v5396
        %v5698 = vunpack.c.h.b16 %v5396
        %v5699 = vunpack.c.l.b16 %v5397
        %v5700 = vunpack.c.h.b16 %v5397
        %v5701 = vunpack.c.l.b16 %v5398
        %v5702 = vunpack.c.h.b16 %v5398
        %v5703 = vunpack.c.l.b16 %v5399
        %v5704 = vunpack.c.h.b16 %v5399
        %v5705 = vunpack.c.l.b16 %v5400
        %v5706 = vunpack.c.h.b16 %v5400
        %v5707 = vunpack.c.l.b16 %v5401
        %v5708 = vunpack.c.h.b16 %v5401
        %v5709 = vunpack.c.l.b16 %v5402
        %v5710 = vunpack.c.h.b16 %v5402
        %v5711 = vunpack.c.l.b16 %v5403
        %v5712 = vunpack.c.h.b16 %v5403
        %v5713 = vunpack.c.l.b16 %v5404
        %v5714 = vunpack.c.h.b16 %v5404
        %v5715 = vunpack.c.l.b16 %v5405
        %v5716 = vunpack.c.h.b16 %v5405
        %v5717 = vunpack.c.l.b16 %v5406
        %v5718 = vunpack.c.h.b16 %v5406
        %v5719 = vunpack.c.l.b16 %v5407
        %v5720 = vunpack.c.h.b16 %v5407
        %v5721 = vunpack.c.l.b16 %v5408
        %v5722 = vunpack.c.h.b16 %v5408
        %v5723 = vunpack.c.l.b16 %v5409
        %v5724 = vunpack.c.h.b16 %v5409
        %v5725 = vunpack.c.l.b16 %v5410
        %v5726 = vunpack.c.h.b16 %v5410
        %v5727 = vunpack.c.l.b16 %v5411
        %v5728 = vunpack.c.h.b16 %v5411
        %v5729 = vunpack.c.l.b16 %v5412
        %v5730 = vunpack.c.h.b16 %v5412
        %v5731 = vunpack.c.l.b16 %v5413
        %v5732 = vunpack.c.h.b16 %v5413
        %v5733 = vunpack.c.l.b16 %v5414
        %v5734 = vunpack.c.h.b16 %v5414
        %v5735 = vunpack.c.l.b16 %v5415
        %v5736 = vunpack.c.h.b16 %v5415
        %v5737 = vunpack.c.l.b16 %v5416
        %v5738 = vunpack.c.h.b16 %v5416
        %v5739 = vunpack.c.l.b16 %v5417
        %v5740 = vunpack.c.h.b16 %v5417
        %v5741 = vunpack.c.l.b16 %v5418
        %v5742 = vunpack.c.h.b16 %v5418
        %v5743 = vunpack.c.l.b16 %v5419
        %v5744 = vunpack.c.h.b16 %v5419
        %v5745 = vunpack.c.l.b16 %v5420
        %v5746 = vunpack.c.h.b16 %v5420
        %v5747 = vunpack.c.l.b16 %v5421
        %v5748 = vunpack.c.h.b16 %v5421
        %v5749 = vunpack.c.l.b16 %v5422
        %v5750 = vunpack.c.h.b16 %v5422
        %v5751 = vunpack.c.l.b16 %v5423
        %v5752 = vunpack.c.h.b16 %v5423
        %v5753 = vunpack.c.l.b16 %v5424
        %v5754 = vunpack.c.h.b16 %v5424
        %v5755 = vunpack.c.l.b16 %v5425
        %v5756 = vunpack.c.h.b16 %v5425
        %v5757 = vunpack.c.l.b16 %v5426
        %v5758 = vunpack.c.h.b16 %v5426
        %v5759 = vunpack.c.l.b16 %v5427
        %v5760 = vunpack.c.h.b16 %v5427
        %v5761 = vunpack.c.l.b16 %v5428
        %v5762 = vunpack.c.h.b16 %v5428
        %v5763 = vunpack.c.l.b16 %v5429
        %v5764 = vunpack.c.h.b16 %v5429
        %v5765 = vunpack.c.l.b16 %v5430
        %v5766 = vunpack.c.h.b16 %v5430
        %v5767 = vunpack.c.l.b16 %v5431
        %v5768 = vunpack.c.h.b16 %v5431
        %v5769 = vunpack.c.l.b16 %v5432
        %v5770 = vunpack.c.h.b16 %v5432
        %v5771 = vunpack.c.l.b16 %v5433
        %v5772 = vunpack.c.h.b16 %v5433
        %v5773 = vunpack.c.l.b16 %v5434
        %v5774 = vunpack.c.h.b16 %v5434
        %v5775 = vunpack.c.l.b16 %v5435
        %v5776 = vunpack.c.h.b16 %v5435
        %v5777 = vunpack.c.l.b16 %v5436
        %v5778 = vunpack.c.h.b16 %v5436
        %v5779 = vunpack.c.l.b16 %v5437
        %v5780 = vunpack.c.h.b16 %v5437
        %v5781 = vunpack.c.l.b16 %v5438
        %v5782 = vunpack.c.h.b16 %v5438
        %v5783 = vunpack.c.l.b16 %v5439
        %v5784 = vunpack.c.h.b16 %v5439
        %v5785 = vunpack.c.l.b16 %v5440
        %v5786 = vunpack.c.h.b16 %v5440
        %v5787 = vunpack.c.l.b16 %v5441
        %v5788 = vunpack.c.h.b16 %v5441
        %v5789 = vunpack.c.l.b16 %v5442
        %v5790 = vunpack.c.h.b16 %v5442
        %v5791 = vunpack.c.l.b16 %v5443
        %v5792 = vunpack.c.h.b16 %v5443
        %v5793 = vunpack.c.l.b16 %v5444
        %v5794 = vunpack.c.h.b16 %v5444
        %v5795 = vunpack.c.l.b16 %v5445
        %v5796 = vunpack.c.h.b16 %v5445
        %v5797 = vunpack.c.l.b16 %v5446
        %v5798 = vunpack.c.h.b16 %v5446
        %v5799 = vunpack.c.l.b16 %v5447
        %v5800 = vunpack.c.h.b16 %v5447
        %v5801 = vunpack.c.l.b16 %v5448
        %v5802 = vunpack.c.h.b16 %v5448
        %v5803 = vunpack.c.l.b16 %v5449
        %v5804 = vunpack.c.h.b16 %v5449
        %v5805 = vunpack.c.l.b16 %v5450
        %v5806 = vunpack.c.h.b16 %v5450
        %v5807 = vunpack.c.l.b16 %v5451
        %v5808 = vunpack.c.h.b16 %v5451
        %v5809 = vunpack.c.l.b16 %v5452
        %v5810 = vunpack.c.h.b16 %v5452
        %v5811 = vunpack.c.l.b16 %v5453
        %v5812 = vunpack.c.h.b16 %v5453
        %v5813 = vunpack.c.l.b16 %v5454
        %v5814 = vunpack.c.h.b16 %v5454
        %v5815 = vunpack.c.l.b16 %v5455
        %v5816 = vunpack.c.h.b16 %v5455
        %v5817 = vunpack.c.l.b16 %v5456
        %v5818 = vunpack.c.h.b16 %v5456
        %v5819 = vunpack.c.l.b16 %v5457
        %v5820 = vunpack.c.h.b16 %v5457
        %v5821 = vunpack.c.l.b16 %v5458
        %v5822 = vunpack.c.h.b16 %v5458
        %v5823 = vunpack.c.l.b16 %v5459
        %v5824 = vunpack.c.h.b16 %v5459
        %v5825 = vunpack.c.l.b16 %v5460
        %v5826 = vunpack.c.h.b16 %v5460
        %v5827 = vunpack.c.l.b16 %v5461
        %v5828 = vunpack.c.h.b16 %v5461
        %v5829 = vunpack.c.l.b16 %v5462
        %v5830 = vunpack.c.h.b16 %v5462
        %v5831 = vunpack.c.l.b16 %v5463
        %v5832 = vunpack.c.h.b16 %v5463
        %v5833 = vunpack.c.l.b16 %v5464
        %v5834 = vunpack.c.h.b16 %v5464
        %v5835 = vunpack.c.l.b16 %v5465
        %v5836 = vunpack.c.h.b16 %v5465
        %v5837 = vunpack.c.l.b16 %v5466
        %v5838 = vunpack.c.h.b16 %v5466
        %v5839 = vunpack.c.l.b16 %v5467
        %v5840 = vunpack.c.h.b16 %v5467
        %v5841 = vunpack.c.l.b16 %v5468
        %v5842 = vunpack.c.h.b16 %v5468
        %v5843 = vunpack.c.l.b16 %v5469
        %v5844 = vunpack.c.h.b16 %v5469
        %v5845 = vunpack.c.l.b16 %v5470
        %v5846 = vunpack.c.h.b16 %v5470
        %v5847 = vunpack.c.l.b16 %v5471
        %v5848 = vunpack.c.h.b16 %v5471
        %v5849 = vunpack.c.l.b16 %v5472
        %v5850 = vunpack.c.h.b16 %v5472
        %v5851 = vunpack.c.l.b16 %v5473
        %v5852 = vunpack.c.h.b16 %v5473
        %v5853 = vunpack.c.l.b16 %v5474
        %v5854 = vunpack.c.h.b16 %v5474
        %v5855 = vunpack.c.l.b16 %v5475
        %v5856 = vunpack.c.h.b16 %v5475
        %v5857 = vunpack.c.l.b16 %v5476
        %v5858 = vunpack.c.h.b16 %v5476
        %v5859 = vunpack.c.l.b16 %v5477
        %v5860 = vunpack.c.h.b16 %v5477
        %v5861 = vunpack.c.l.b16 %v5478
        %v5862 = vunpack.c.h.b16 %v5478
        %v5863 = vunpack.c.l.b16 %v5479
        %v5864 = vunpack.c.h.b16 %v5479
        %v5865 = vunpack.c.l.b16 %v5480
        %v5866 = vunpack.c.h.b16 %v5480
        %v5867 = vunpack.c.l.b16 %v5481
        %v5868 = vunpack.c.h.b16 %v5481
        %v5869 = vunpack.c.l.b16 %v5482
        %v5870 = vunpack.c.h.b16 %v5482
        %v5871 = vunpack.c.l.b16 %v5483
        %v5872 = vunpack.c.h.b16 %v5483
        %v5873 = vunpack.c.l.b16 %v5484
        %v5874 = vunpack.c.h.b16 %v5484
        %v5875 = vunpack.c.l.b16 %v5485
        %v5876 = vunpack.c.h.b16 %v5485
        %v5877 = vunpack.c.l.b16 %v5486
        %v5878 = vunpack.c.h.b16 %v5486
        %v5879 = vunpack.c.l.b16 %v5487
        %v5880 = vunpack.c.h.b16 %v5487
        %v5881 = vunpack.c.l.b16 %v5488
        %v5882 = vunpack.c.h.b16 %v5488
        %v5883 = vunpack.c.l.b16 %v5489
        %v5884 = vunpack.c.h.b16 %v5489
        %v5885 = vunpack.c.l.b16 %v5490
        %v5886 = vunpack.c.h.b16 %v5490
        %v5887 = vpack.c.b16 %v5633, %v5631
        %v5888 = vpack.c.b16 %v5634, %v5632
        %v5889 = vpack.c.b16 %v5637, %v5635
        %v5890 = vpack.c.b16 %v5638, %v5636
        %v5891 = vpack.c.b16 %v5641, %v5639
        %v5892 = vpack.c.b16 %v5642, %v5640
        %v5893 = vpack.c.b16 %v5645, %v5643
        %v5894 = vpack.c.b16 %v5646, %v5644
        %v5895 = vpack.c.b16 %v5649, %v5647
        %v5896 = vpack.c.b16 %v5650, %v5648
        %v5897 = vpack.c.b16 %v5653, %v5651
        %v5898 = vpack.c.b16 %v5654, %v5652
        %v5899 = vpack.c.b16 %v5657, %v5655
        %v5900 = vpack.c.b16 %v5658, %v5656
        %v5901 = vpack.c.b16 %v5661, %v5659
        %v5902 = vpack.c.b16 %v5662, %v5660
        %v5903 = vpack.c.b16 %v5665, %v5663
        %v5904 = vpack.c.b16 %v5666, %v5664
        %v5905 = vpack.c.b16 %v5669, %v5667
        %v5906 = vpack.c.b16 %v5670, %v5668
        %v5907 = vpack.c.b16 %v5673, %v5671
        %v5908 = vpack.c.b16 %v5674, %v5672
        %v5909 = vpack.c.b16 %v5677, %v5675
        %v5910 = vpack.c.b16 %v5678, %v5676
        %v5911 = vpack.c.b16 %v5681, %v5679
        %v5912 = vpack.c.b16 %v5682, %v5680
        %v5913 = vpack.c.b16 %v5685, %v5683
        %v5914 = vpack.c.b16 %v5686, %v5684
        %v5915 = vpack.c.b16 %v5689, %v5687
        %v5916 = vpack.c.b16 %v5690, %v5688
        %v5917 = vpack.c.b16 %v5693, %v5691
        %v5918 = vpack.c.b16 %v5694, %v5692
        %v5919 = vpack.c.b16 %v5697, %v5695
        %v5920 = vpack.c.b16 %v5698, %v5696
        %v5921 = vpack.c.b16 %v5701, %v5699
        %v5922 = vpack.c.b16 %v5702, %v5700
        %v5923 = vpack.c.b16 %v5705, %v5703
        %v5924 = vpack.c.b16 %v5706, %v5704
        %v5925 = vpack.c.b16 %v5709, %v5707
        %v5926 = vpack.c.b16 %v5710, %v5708
        %v5927 = vpack.c.b16 %v5713, %v5711
        %v5928 = vpack.c.b16 %v5714, %v5712
        %v5929 = vpack.c.b16 %v5717, %v5715
        %v5930 = vpack.c.b16 %v5718, %v5716
        %v5931 = vpack.c.b16 %v5721, %v5719
        %v5932 = vpack.c.b16 %v5722, %v5720
        %v5933 = vpack.c.b16 %v5725, %v5723
        %v5934 = vpack.c.b16 %v5726, %v5724
        %v5935 = vpack.c.b16 %v5729, %v5727
        %v5936 = vpack.c.b16 %v5730, %v5728
        %v5937 = vpack.c.b16 %v5733, %v5731
        %v5938 = vpack.c.b16 %v5734, %v5732
        %v5939 = vpack.c.b16 %v5737, %v5735
        %v5940 = vpack.c.b16 %v5738, %v5736
        %v5941 = vpack.c.b16 %v5741, %v5739
        %v5942 = vpack.c.b16 %v5742, %v5740
        %v5943 = vpack.c.b16 %v5745, %v5743
        %v5944 = vpack.c.b16 %v5746, %v5744
        %v5945 = vpack.c.b16 %v5749, %v5747
        %v5946 = vpack.c.b16 %v5750, %v5748
        %v5947 = vpack.c.b16 %v5753, %v5751
        %v5948 = vpack.c.b16 %v5754, %v5752
        %v5949 = vpack.c.b16 %v5757, %v5755
        %v5950 = vpack.c.b16 %v5758, %v5756
        %v5951 = vpack.c.b16 %v5761, %v5759
        %v5952 = vpack.c.b16 %v5762, %v5760
        %v5953 = vpack.c.b16 %v5765, %v5763
        %v5954 = vpack.c.b16 %v5766, %v5764
        %v5955 = vpack.c.b16 %v5769, %v5767
        %v5956 = vpack.c.b16 %v5770, %v5768
        %v5957 = vpack.c.b16 %v5773, %v5771
        %v5958 = vpack.c.b16 %v5774, %v5772
        %v5959 = vpack.c.b16 %v5777, %v5775
        %v5960 = vpack.c.b16 %v5778, %v5776
        %v5961 = vpack.c.b16 %v5781, %v5779
        %v5962 = vpack.c.b16 %v5782, %v5780
        %v5963 = vpack.c.b16 %v5785, %v5783
        %v5964 = vpack.c.b16 %v5786, %v5784
        %v5965 = vpack.c.b16 %v5789, %v5787
        %v5966 = vpack.c.b16 %v5790, %v5788
        %v5967 = vpack.c.b16 %v5793, %v5791
        %v5968 = vpack.c.b16 %v5794, %v5792
        %v5969 = vpack.c.b16 %v5797, %v5795
        %v5970 = vpack.c.b16 %v5798, %v5796
        %v5971 = vpack.c.b16 %v5801, %v5799
        %v5972 = vpack.c.b16 %v5802, %v5800
        %v5973 = vpack.c.b16 %v5805, %v5803
        %v5974 = vpack.c.b16 %v5806, %v5804
        %v5975 = vpack.c.b16 %v5809, %v5807
        %v5976 = vpack.c.b16 %v5810, %v5808
        %v5977 = vpack.c.b16 %v5813, %v5811
        %v5978 = vpack.c.b16 %v5814, %v5812
        %v5979 = vpack.c.b16 %v5817, %v5815
        %v5980 = vpack.c.b16 %v5818, %v5816
        %v5981 = vpack.c.b16 %v5821, %v5819
        %v5982 = vpack.c.b16 %v5822, %v5820
        %v5983 = vpack.c.b16 %v5825, %v5823
        %v5984 = vpack.c.b16 %v5826, %v5824
        %v5985 = vpack.c.b16 %v5829, %v5827
        %v5986 = vpack.c.b16 %v5830, %v5828
        %v5987 = vpack.c.b16 %v5833, %v5831
        %v5988 = vpack.c.b16 %v5834, %v5832
        %v5989 = vpack.c.b16 %v5837, %v5835
        %v5990 = vpack.c.b16 %v5838, %v5836
        %v5991 = vpack.c.b16 %v5841, %v5839
        %v5992 = vpack.c.b16 %v5842, %v5840
        %v5993 = vpack.c.b16 %v5845, %v5843
        %v5994 = vpack.c.b16 %v5846, %v5844
        %v5995 = vpack.c.b16 %v5849, %v5847
        %v5996 = vpack.c.b16 %v5850, %v5848
        %v5997 = vpack.c.b16 %v5853, %v5851
        %v5998 = vpack.c.b16 %v5854, %v5852
        %v5999 = vpack.c.b16 %v5857, %v5855
        %v6000 = vpack.c.b16 %v5858, %v5856
        %v6001 = vpack.c.b16 %v5861, %v5859
        %v6002 = vpack.c.b16 %v5862, %v5860
        %v6003 = vpack.c.b16 %v5865, %v5863
        %v6004 = vpack.c.b16 %v5866, %v5864
        %v6005 = vpack.c.b16 %v5869, %v5867
        %v6006 = vpack.c.b16 %v5870, %v5868
        %v6007 = vpack.c.b16 %v5873, %v5871
        %v6008 = vpack.c.b16 %v5874, %v5872
        %v6009 = vpack.c.b16 %v5877, %v5875
        %v6010 = vpack.c.b16 %v5878, %v5876
        %v6011 = vpack.c.b16 %v5881, %v5879
        %v6012 = vpack.c.b16 %v5882, %v5880
        %v6013 = vpack.c.b16 %v5885, %v5883
        %v6014 = vpack.c.b16 %v5886, %v5884
        %6143 = vmatprep.subr.bf16.mxu0 %v5902
        %6144 = vmatpush1.bf16.msra.mxu0 %v5901
        %6145 = vmatprep.subr.bf16.mxu0 %v5900
        %6146 = vmatpush1.bf16.msra.mxu0 %v5899
        %6147 = vmatprep.subr.bf16.mxu0 %v5898
        %6148 = vmatpush1.bf16.msra.mxu0 %v5897
        %6149 = vmatprep.subr.bf16.mxu0 %v5896
        %6150 = vmatpush1.bf16.msra.mxu0 %v5895
        %6151 = vmatprep.subr.bf16.mxu0 %v5894
        %6152 = vmatpush1.bf16.msra.mxu0 %v5893
        %6153 = vmatprep.subr.bf16.mxu0 %v5892
        %6154 = vmatpush1.bf16.msra.mxu0 %v5891
        %6155 = vmatprep.subr.bf16.mxu0 %v5890
        %6156 = vmatpush1.bf16.msra.mxu0 %v5889
        %6157 = vmatprep.subr.bf16.mxu0 %v5888
        %6158 = vmatpush1.bf16.msra.mxu0 %v5887
        %6159 = vmatprep.subr.bf16.mxu0 %v5918
        %6160 = vmatpush2.bf16.msra.mxu0 %v5917
        %6161 = vmatprep.subr.bf16.mxu0 %v5916
        %6162 = vmatpush2.bf16.msra.mxu0 %v5915
        %6163 = vmatprep.subr.bf16.mxu0 %v5914
        %6164 = vmatpush2.bf16.msra.mxu0 %v5913
        %6165 = vmatprep.subr.bf16.mxu0 %v5912
        %6166 = vmatpush2.bf16.msra.mxu0 %v5911
        %6167 = vmatprep.subr.bf16.mxu0 %v5910
        %6168 = vmatpush2.bf16.msra.mxu0 %v5909
        %6169 = vmatprep.subr.bf16.mxu0 %v5908
        %6170 = vmatpush2.bf16.msra.mxu0 %v5907
        %6171 = vmatprep.subr.bf16.mxu0 %v5906
        %6172 = vmatpush2.bf16.msra.mxu0 %v5905
        %6173 = vmatprep.subr.bf16.mxu0 %v5904
        %6174 = vmatpush2.bf16.msra.mxu0 %v5903
        %6175 = vmatprep.mubr.bf16.mxu0 %v5300
        %6176 = vmatmul.mubr.bf16.gmra.mxu0 %v5299
        %v6177 = vpop.f32.mrf.mxu0
        %v6178 = vadd.f32 %v5496, %v6177
        %v6179 = vpop.f32.mrf.mxu0
        %v6180 = vadd.f32 %v5500, %v6179
        %v6181 = vpop.f32.mrf.mxu0
        %v6182 = vadd.f32 %v5496, %v6181
        %v6183 = vpop.f32.mrf.mxu0
        %v6184 = vadd.f32 %v5500, %v6183
        %6185 = vmatprep.mubr.bf16.mxu0 %v5308
        %6186 = vmatmul.mubr.bf16.gmra.mxu0 %v5307
        %v6187 = vpop.f32.mrf.mxu0
        %v6188 = vadd.f32 %v5496, %v6187
        %v6189 = vpop.f32.mrf.mxu0
        %v6190 = vadd.f32 %v5500, %v6189
        %v6191 = vpop.f32.mrf.mxu0
        %v6192 = vadd.f32 %v5496, %v6191
        %v6193 = vpop.f32.mrf.mxu0
        %v6194 = vadd.f32 %v5500, %v6193
        %6195 = vmatprep.mubr.bf16.mxu0 %v5316
        %6196 = vmatmul.mubr.bf16.gmra.mxu0 %v5315
        %v6197 = vpop.f32.mrf.mxu0
        %v6198 = vadd.f32 %v5496, %v6197
        %v6199 = vpop.f32.mrf.mxu0
        %v6200 = vadd.f32 %v5500, %v6199
        %v6201 = vpop.f32.mrf.mxu0
        %v6202 = vadd.f32 %v5496, %v6201
        %v6203 = vpop.f32.mrf.mxu0
        %v6204 = vadd.f32 %v5500, %v6203
        %6205 = vmatprep.mubr.bf16.mxu0 %v5324
        %6206 = vmatmul.mubr.bf16.gmra.mxu0 %v5323
        %v6207 = vpop.f32.mrf.mxu0
        %v6208 = vadd.f32 %v5496, %v6207
        %v6209 = vpop.f32.mrf.mxu0
        %v6210 = vadd.f32 %v5500, %v6209
        %v6211 = vpop.f32.mrf.mxu0
        %v6212 = vadd.f32 %v5496, %v6211
        %v6213 = vpop.f32.mrf.mxu0
        %v6214 = vadd.f32 %v5500, %v6213
        %6215 = vmatprep.mubr.bf16.mxu0 %v5332
        %6216 = vmatmul.mubr.bf16.gmra.mxu0 %v5331
        %v6217 = vpop.f32.mrf.mxu0
        %v6218 = vadd.f32 %v5496, %v6217
        %v6219 = vpop.f32.mrf.mxu0
        %v6220 = vadd.f32 %v5500, %v6219
        %v6221 = vpop.f32.mrf.mxu0
        %v6222 = vadd.f32 %v5496, %v6221
        %v6223 = vpop.f32.mrf.mxu0
        %v6224 = vadd.f32 %v5500, %v6223
        %6225 = vmatprep.mubr.bf16.mxu0 %v5340
        %6226 = vmatmul.mubr.bf16.gmra.mxu0 %v5339
        %v6227 = vpop.f32.mrf.mxu0
        %v6228 = vadd.f32 %v5496, %v6227
        %v6229 = vpop.f32.mrf.mxu0
        %v6230 = vadd.f32 %v5500, %v6229
        %v6231 = vpop.f32.mrf.mxu0
        %v6232 = vadd.f32 %v5496, %v6231
        %v6233 = vpop.f32.mrf.mxu0
        %v6234 = vadd.f32 %v5500, %v6233
        %6235 = vmatprep.mubr.bf16.mxu0 %v5348
        %6236 = vmatmul.mubr.bf16.gmra.mxu0 %v5347
        %v6237 = vpop.f32.mrf.mxu0
        %v6238 = vadd.f32 %v5496, %v6237
        %v6239 = vpop.f32.mrf.mxu0
        %v6240 = vadd.f32 %v5500, %v6239
        %v6241 = vpop.f32.mrf.mxu0
        %v6242 = vadd.f32 %v5496, %v6241
        %v6243 = vpop.f32.mrf.mxu0
        %v6244 = vadd.f32 %v5500, %v6243
        %6245 = vmatprep.mubr.bf16.mxu0 %v5356
        %6246 = vmatmul.mubr.bf16.gmra.mxu0 %v5355
        %v6247 = vpop.f32.mrf.mxu0
        %v6248 = vadd.f32 %v5496, %v6247
        %v6249 = vpop.f32.mrf.mxu0
        %v6250 = vadd.f32 %v5500, %v6249
        %v6251 = vpop.f32.mrf.mxu0
        %v6252 = vadd.f32 %v5496, %v6251
        %v6253 = vpop.f32.mrf.mxu0
        %v6254 = vadd.f32 %v5500, %v6253
        %6255 = vdwg.mxu0
        %6256 = vmatprep.subr.bf16.mxu0 %v5934
        %6257 = vmatpush1.bf16.msra.mxu0 %v5933
        %6258 = vmatprep.subr.bf16.mxu0 %v5932
        %6259 = vmatpush1.bf16.msra.mxu0 %v5931
        %6260 = vmatprep.subr.bf16.mxu0 %v5930
        %6261 = vmatpush1.bf16.msra.mxu0 %v5929
        %6262 = vmatprep.subr.bf16.mxu0 %v5928
        %6263 = vmatpush1.bf16.msra.mxu0 %v5927
        %6264 = vmatprep.subr.bf16.mxu0 %v5926
        %6265 = vmatpush1.bf16.msra.mxu0 %v5925
        %6266 = vmatprep.subr.bf16.mxu0 %v5924
        %6267 = vmatpush1.bf16.msra.mxu0 %v5923
        %6268 = vmatprep.subr.bf16.mxu0 %v5922
        %6269 = vmatpush1.bf16.msra.mxu0 %v5921
        %6270 = vmatprep.subr.bf16.mxu0 %v5920
        %6271 = vmatpush1.bf16.msra.mxu0 %v5919
        %6272 = vmatprep.subr.bf16.mxu0 %v5950
        %6273 = vmatpush2.bf16.msra.mxu0 %v5949
        %6274 = vmatprep.subr.bf16.mxu0 %v5948
        %6275 = vmatpush2.bf16.msra.mxu0 %v5947
        %6276 = vmatprep.subr.bf16.mxu0 %v5946
        %6277 = vmatpush2.bf16.msra.mxu0 %v5945
        %6278 = vmatprep.subr.bf16.mxu0 %v5944
        %6279 = vmatpush2.bf16.msra.mxu0 %v5943
        %6280 = vmatprep.subr.bf16.mxu0 %v5942
        %6281 = vmatpush2.bf16.msra.mxu0 %v5941
        %6282 = vmatprep.subr.bf16.mxu0 %v5940
        %6283 = vmatpush2.bf16.msra.mxu0 %v5939
        %6284 = vmatprep.subr.bf16.mxu0 %v5938
        %6285 = vmatpush2.bf16.msra.mxu0 %v5937
        %6286 = vmatprep.subr.bf16.mxu0 %v5936
        %6287 = vmatpush2.bf16.msra.mxu0 %v5935
        %6288 = vmatprep.mubr.bf16.mxu0 %v5302
        %6289 = vmatmul.mubr.bf16.gmra.mxu0 %v5301
        %v6290 = vpop.f32.mrf.mxu0
        %v6291 = vadd.f32 %v6178, %v6290
        %v6292 = vpop.f32.mrf.mxu0
        %v6293 = vadd.f32 %v6180, %v6292
        %v6294 = vpop.f32.mrf.mxu0
        %v6295 = vadd.f32 %v6182, %v6294
        %v6296 = vpop.f32.mrf.mxu0
        %v6297 = vadd.f32 %v6184, %v6296
        %6298 = vmatprep.mubr.bf16.mxu0 %v5310
        %6299 = vmatmul.mubr.bf16.gmra.mxu0 %v5309
        %v6300 = vpop.f32.mrf.mxu0
        %v6301 = vadd.f32 %v6188, %v6300
        %v6302 = vpop.f32.mrf.mxu0
        %v6303 = vadd.f32 %v6190, %v6302
        %v6304 = vpop.f32.mrf.mxu0
        %v6305 = vadd.f32 %v6192, %v6304
        %v6306 = vpop.f32.mrf.mxu0
        %v6307 = vadd.f32 %v6194, %v6306
        %6308 = vmatprep.mubr.bf16.mxu0 %v5318
        %6309 = vmatmul.mubr.bf16.gmra.mxu0 %v5317
        %v6310 = vpop.f32.mrf.mxu0
        %v6311 = vadd.f32 %v6198, %v6310
        %v6312 = vpop.f32.mrf.mxu0
        %v6313 = vadd.f32 %v6200, %v6312
        %v6314 = vpop.f32.mrf.mxu0
        %v6315 = vadd.f32 %v6202, %v6314
        %v6316 = vpop.f32.mrf.mxu0
        %v6317 = vadd.f32 %v6204, %v6316
        %6318 = vmatprep.mubr.bf16.mxu0 %v5326
        %6319 = vmatmul.mubr.bf16.gmra.mxu0 %v5325
        %v6320 = vpop.f32.mrf.mxu0
        %v6321 = vadd.f32 %v6208, %v6320
        %v6322 = vpop.f32.mrf.mxu0
        %v6323 = vadd.f32 %v6210, %v6322
        %v6324 = vpop.f32.mrf.mxu0
        %v6325 = vadd.f32 %v6212, %v6324
        %v6326 = vpop.f32.mrf.mxu0
        %v6327 = vadd.f32 %v6214, %v6326
        %6328 = vmatprep.mubr.bf16.mxu0 %v5334
        %6329 = vmatmul.mubr.bf16.gmra.mxu0 %v5333
        %v6330 = vpop.f32.mrf.mxu0
        %v6331 = vadd.f32 %v6218, %v6330
        %v6332 = vpop.f32.mrf.mxu0
        %v6333 = vadd.f32 %v6220, %v6332
        %v6334 = vpop.f32.mrf.mxu0
        %v6335 = vadd.f32 %v6222, %v6334
        %v6336 = vpop.f32.mrf.mxu0
        %v6337 = vadd.f32 %v6224, %v6336
        %6338 = vmatprep.mubr.bf16.mxu0 %v5342
        %6339 = vmatmul.mubr.bf16.gmra.mxu0 %v5341
        %v6340 = vpop.f32.mrf.mxu0
        %v6341 = vadd.f32 %v6228, %v6340
        %v6342 = vpop.f32.mrf.mxu0
        %v6343 = vadd.f32 %v6230, %v6342
        %v6344 = vpop.f32.mrf.mxu0
        %v6345 = vadd.f32 %v6232, %v6344
        %v6346 = vpop.f32.mrf.mxu0
        %v6347 = vadd.f32 %v6234, %v6346
        %6348 = vmatprep.mubr.bf16.mxu0 %v5350
        %6349 = vmatmul.mubr.bf16.gmra.mxu0 %v5349
        %v6350 = vpop.f32.mrf.mxu0
        %v6351 = vadd.f32 %v6238, %v6350
        %v6352 = vpop.f32.mrf.mxu0
        %v6353 = vadd.f32 %v6240, %v6352
        %v6354 = vpop.f32.mrf.mxu0
        %v6355 = vadd.f32 %v6242, %v6354
        %v6356 = vpop.f32.mrf.mxu0
        %v6357 = vadd.f32 %v6244, %v6356
        %6358 = vmatprep.mubr.bf16.mxu0 %v5358
        %6359 = vmatmul.mubr.bf16.gmra.mxu0 %v5357
        %v6360 = vpop.f32.mrf.mxu0
        %v6361 = vadd.f32 %v6248, %v6360
        %v6362 = vpop.f32.mrf.mxu0
        %v6363 = vadd.f32 %v6250, %v6362
        %v6364 = vpop.f32.mrf.mxu0
        %v6365 = vadd.f32 %v6252, %v6364
        %v6366 = vpop.f32.mrf.mxu0
        %v6367 = vadd.f32 %v6254, %v6366
        %6368 = vdwg.mxu0
        %6369 = vmatprep.subr.bf16.mxu0 %v5966
        %6370 = vmatpush1.bf16.msra.mxu0 %v5965
        %6371 = vmatprep.subr.bf16.mxu0 %v5964
        %6372 = vmatpush1.bf16.msra.mxu0 %v5963
        %6373 = vmatprep.subr.bf16.mxu0 %v5962
        %6374 = vmatpush1.bf16.msra.mxu0 %v5961
        %6375 = vmatprep.subr.bf16.mxu0 %v5960
        %6376 = vmatpush1.bf16.msra.mxu0 %v5959
        %6377 = vmatprep.subr.bf16.mxu0 %v5958
        %6378 = vmatpush1.bf16.msra.mxu0 %v5957
        %6379 = vmatprep.subr.bf16.mxu0 %v5956
        %6380 = vmatpush1.bf16.msra.mxu0 %v5955
        %6381 = vmatprep.subr.bf16.mxu0 %v5954
        %6382 = vmatpush1.bf16.msra.mxu0 %v5953
        %6383 = vmatprep.subr.bf16.mxu0 %v5952
        %6384 = vmatpush1.bf16.msra.mxu0 %v5951
        %6385 = vmatprep.subr.bf16.mxu0 %v5982
        %6386 = vmatpush2.bf16.msra.mxu0 %v5981
        %6387 = vmatprep.subr.bf16.mxu0 %v5980
        %6388 = vmatpush2.bf16.msra.mxu0 %v5979
        %6389 = vmatprep.subr.bf16.mxu0 %v5978
        %6390 = vmatpush2.bf16.msra.mxu0 %v5977
        %6391 = vmatprep.subr.bf16.mxu0 %v5976
        %6392 = vmatpush2.bf16.msra.mxu0 %v5975
        %6393 = vmatprep.subr.bf16.mxu0 %v5974
        %6394 = vmatpush2.bf16.msra.mxu0 %v5973
        %6395 = vmatprep.subr.bf16.mxu0 %v5972
        %6396 = vmatpush2.bf16.msra.mxu0 %v5971
        %6397 = vmatprep.subr.bf16.mxu0 %v5970
        %6398 = vmatpush2.bf16.msra.mxu0 %v5969
        %6399 = vmatprep.subr.bf16.mxu0 %v5968
        %6400 = vmatpush2.bf16.msra.mxu0 %v5967
        %6401 = vmatprep.mubr.bf16.mxu0 %v5304
        %6402 = vmatmul.mubr.bf16.gmra.mxu0 %v5303
        %v6403 = vpop.f32.mrf.mxu0
        %v6404 = vadd.f32 %v6291, %v6403
        %v6405 = vpop.f32.mrf.mxu0
        %v6406 = vadd.f32 %v6293, %v6405
        %v6407 = vpop.f32.mrf.mxu0
        %v6408 = vadd.f32 %v6295, %v6407
        %v6409 = vpop.f32.mrf.mxu0
        %v6410 = vadd.f32 %v6297, %v6409
        %6411 = vmatprep.mubr.bf16.mxu0 %v5312
        %6412 = vmatmul.mubr.bf16.gmra.mxu0 %v5311
        %v6413 = vpop.f32.mrf.mxu0
        %v6414 = vadd.f32 %v6301, %v6413
        %v6415 = vpop.f32.mrf.mxu0
        %v6416 = vadd.f32 %v6303, %v6415
        %v6417 = vpop.f32.mrf.mxu0
        %v6418 = vadd.f32 %v6305, %v6417
        %v6419 = vpop.f32.mrf.mxu0
        %v6420 = vadd.f32 %v6307, %v6419
        %6421 = vmatprep.mubr.bf16.mxu0 %v5320
        %6422 = vmatmul.mubr.bf16.gmra.mxu0 %v5319
        %v6423 = vpop.f32.mrf.mxu0
        %v6424 = vadd.f32 %v6311, %v6423
        %v6425 = vpop.f32.mrf.mxu0
        %v6426 = vadd.f32 %v6313, %v6425
        %v6427 = vpop.f32.mrf.mxu0
        %v6428 = vadd.f32 %v6315, %v6427
        %v6429 = vpop.f32.mrf.mxu0
        %v6430 = vadd.f32 %v6317, %v6429
        %6431 = vmatprep.mubr.bf16.mxu0 %v5328
        %6432 = vmatmul.mubr.bf16.gmra.mxu0 %v5327
        %v6433 = vpop.f32.mrf.mxu0
        %v6434 = vadd.f32 %v6321, %v6433
        %v6435 = vpop.f32.mrf.mxu0
        %v6436 = vadd.f32 %v6323, %v6435
        %v6437 = vpop.f32.mrf.mxu0
        %v6438 = vadd.f32 %v6325, %v6437
        %v6439 = vpop.f32.mrf.mxu0
        %v6440 = vadd.f32 %v6327, %v6439
        %6441 = vmatprep.mubr.bf16.mxu0 %v5336
        %6442 = vmatmul.mubr.bf16.gmra.mxu0 %v5335
        %v6443 = vpop.f32.mrf.mxu0
        %v6444 = vadd.f32 %v6331, %v6443
        %v6445 = vpop.f32.mrf.mxu0
        %v6446 = vadd.f32 %v6333, %v6445
        %v6447 = vpop.f32.mrf.mxu0
        %v6448 = vadd.f32 %v6335, %v6447
        %v6449 = vpop.f32.mrf.mxu0
        %v6450 = vadd.f32 %v6337, %v6449
        %6451 = vmatprep.mubr.bf16.mxu0 %v5344
        %6452 = vmatmul.mubr.bf16.gmra.mxu0 %v5343
        %v6453 = vpop.f32.mrf.mxu0
        %v6454 = vadd.f32 %v6341, %v6453
        %v6455 = vpop.f32.mrf.mxu0
        %v6456 = vadd.f32 %v6343, %v6455
        %v6457 = vpop.f32.mrf.mxu0
        %v6458 = vadd.f32 %v6345, %v6457
        %v6459 = vpop.f32.mrf.mxu0
        %v6460 = vadd.f32 %v6347, %v6459
        %6461 = vmatprep.mubr.bf16.mxu0 %v5352
        %6462 = vmatmul.mubr.bf16.gmra.mxu0 %v5351
        %v6463 = vpop.f32.mrf.mxu0
        %v6464 = vadd.f32 %v6351, %v6463
        %v6465 = vpop.f32.mrf.mxu0
        %v6466 = vadd.f32 %v6353, %v6465
        %v6467 = vpop.f32.mrf.mxu0
        %v6468 = vadd.f32 %v6355, %v6467
        %v6469 = vpop.f32.mrf.mxu0
        %v6470 = vadd.f32 %v6357, %v6469
        %6471 = vmatprep.mubr.bf16.mxu0 %v5360
        %6472 = vmatmul.mubr.bf16.gmra.mxu0 %v5359
        %v6473 = vpop.f32.mrf.mxu0
        %v6474 = vadd.f32 %v6361, %v6473
        %v6475 = vpop.f32.mrf.mxu0
        %v6476 = vadd.f32 %v6363, %v6475
        %v6477 = vpop.f32.mrf.mxu0
        %v6478 = vadd.f32 %v6365, %v6477
        %v6479 = vpop.f32.mrf.mxu0
        %v6480 = vadd.f32 %v6367, %v6479
        %6481 = vdwg.mxu0
        %6482 = vmatprep.subr.bf16.mxu0 %v5998
        %6483 = vmatpush1.bf16.msra.mxu0 %v5997
        %6484 = vmatprep.subr.bf16.mxu0 %v5996
        %6485 = vmatpush1.bf16.msra.mxu0 %v5995
        %6486 = vmatprep.subr.bf16.mxu0 %v5994
        %6487 = vmatpush1.bf16.msra.mxu0 %v5993
        %6488 = vmatprep.subr.bf16.mxu0 %v5992
        %6489 = vmatpush1.bf16.msra.mxu0 %v5991
        %6490 = vmatprep.subr.bf16.mxu0 %v5990
        %6491 = vmatpush1.bf16.msra.mxu0 %v5989
        %6492 = vmatprep.subr.bf16.mxu0 %v5988
        %6493 = vmatpush1.bf16.msra.mxu0 %v5987
        %6494 = vmatprep.subr.bf16.mxu0 %v5986
        %6495 = vmatpush1.bf16.msra.mxu0 %v5985
        %6496 = vmatprep.subr.bf16.mxu0 %v5984
        %6497 = vmatpush1.bf16.msra.mxu0 %v5983
        %6498 = vmatprep.subr.bf16.mxu0 %v6014
        %6499 = vmatpush2.bf16.msra.mxu0 %v6013
        %6500 = vmatprep.subr.bf16.mxu0 %v6012
        %6501 = vmatpush2.bf16.msra.mxu0 %v6011
        %6502 = vmatprep.subr.bf16.mxu0 %v6010
        %6503 = vmatpush2.bf16.msra.mxu0 %v6009
        %6504 = vmatprep.subr.bf16.mxu0 %v6008
        %6505 = vmatpush2.bf16.msra.mxu0 %v6007
        %6506 = vmatprep.subr.bf16.mxu0 %v6006
        %6507 = vmatpush2.bf16.msra.mxu0 %v6005
        %6508 = vmatprep.subr.bf16.mxu0 %v6004
        %6509 = vmatpush2.bf16.msra.mxu0 %v6003
        %6510 = vmatprep.subr.bf16.mxu0 %v6002
        %6511 = vmatpush2.bf16.msra.mxu0 %v6001
        %6512 = vmatprep.subr.bf16.mxu0 %v6000
        %6513 = vmatpush2.bf16.msra.mxu0 %v5999
        %6514 = vmatprep.mubr.bf16.mxu0 %v5306
        %6515 = vmatmul.mubr.bf16.gmra.mxu0 %v5305
        %v6516 = vpop.f32.mrf.mxu0
        %v6517 = vadd.f32 %v6404, %v6516
        %v6518 = vpop.f32.mrf.mxu0
        %v6519 = vadd.f32 %v6406, %v6518
        %v6520 = vpop.f32.mrf.mxu0
        %v6521 = vadd.f32 %v6408, %v6520
        %v6522 = vpop.f32.mrf.mxu0
        %v6523 = vadd.f32 %v6410, %v6522
        %6524 = vmatprep.mubr.bf16.mxu0 %v5314
        %6525 = vmatmul.mubr.bf16.gmra.mxu0 %v5313
        %v6526 = vpop.f32.mrf.mxu0
        %v6527 = vadd.f32 %v6414, %v6526
        %v6528 = vpop.f32.mrf.mxu0
        %v6529 = vadd.f32 %v6416, %v6528
        %v6530 = vpop.f32.mrf.mxu0
        %v6531 = vadd.f32 %v6418, %v6530
        %v6532 = vpop.f32.mrf.mxu0
        %v6533 = vadd.f32 %v6420, %v6532
        %6534 = vmatprep.mubr.bf16.mxu0 %v5322
        %6535 = vmatmul.mubr.bf16.gmra.mxu0 %v5321
        %v6536 = vpop.f32.mrf.mxu0
        %v6537 = vadd.f32 %v6424, %v6536
        %v6538 = vpop.f32.mrf.mxu0
        %v6539 = vadd.f32 %v6426, %v6538
        %v6540 = vpop.f32.mrf.mxu0
        %v6541 = vadd.f32 %v6428, %v6540
        %v6542 = vpop.f32.mrf.mxu0
        %v6543 = vadd.f32 %v6430, %v6542
        %6544 = vmatprep.mubr.bf16.mxu0 %v5330
        %6545 = vmatmul.mubr.bf16.gmra.mxu0 %v5329
        %v6546 = vpop.f32.mrf.mxu0
        %v6547 = vadd.f32 %v6434, %v6546
        %v6548 = vpop.f32.mrf.mxu0
        %v6549 = vadd.f32 %v6436, %v6548
        %v6550 = vpop.f32.mrf.mxu0
        %v6551 = vadd.f32 %v6438, %v6550
        %v6552 = vpop.f32.mrf.mxu0
        %v6553 = vadd.f32 %v6440, %v6552
        %6554 = vmatprep.mubr.bf16.mxu0 %v5338
        %6555 = vmatmul.mubr.bf16.gmra.mxu0 %v5337
        %v6556 = vpop.f32.mrf.mxu0
        %v6557 = vadd.f32 %v6444, %v6556
        %v6558 = vpop.f32.mrf.mxu0
        %v6559 = vadd.f32 %v6446, %v6558
        %v6560 = vpop.f32.mrf.mxu0
        %v6561 = vadd.f32 %v6448, %v6560
        %v6562 = vpop.f32.mrf.mxu0
        %v6563 = vadd.f32 %v6450, %v6562
        %6564 = vmatprep.mubr.bf16.mxu0 %v5346
        %6565 = vmatmul.mubr.bf16.gmra.mxu0 %v5345
        %v6566 = vpop.f32.mrf.mxu0
        %v6567 = vadd.f32 %v6454, %v6566
        %v6568 = vpop.f32.mrf.mxu0
        %v6569 = vadd.f32 %v6456, %v6568
        %v6570 = vpop.f32.mrf.mxu0
        %v6571 = vadd.f32 %v6458, %v6570
        %v6572 = vpop.f32.mrf.mxu0
        %v6573 = vadd.f32 %v6460, %v6572
        %6574 = vmatprep.mubr.bf16.mxu0 %v5354
        %6575 = vmatmul.mubr.bf16.gmra.mxu0 %v5353
        %v6576 = vpop.f32.mrf.mxu0
        %v6577 = vadd.f32 %v6464, %v6576
        %v6578 = vpop.f32.mrf.mxu0
        %v6579 = vadd.f32 %v6466, %v6578
        %v6580 = vpop.f32.mrf.mxu0
        %v6581 = vadd.f32 %v6468, %v6580
        %v6582 = vpop.f32.mrf.mxu0
        %v6583 = vadd.f32 %v6470, %v6582
        %6584 = vmatprep.mubr.bf16.mxu0 %v5362
        %6585 = vmatmul.mubr.bf16.gmra.mxu0 %v5361
        %v6586 = vpop.f32.mrf.mxu0
        %v6587 = vadd.f32 %v6474, %v6586
        %v6588 = vpop.f32.mrf.mxu0
        %v6589 = vadd.f32 %v6476, %v6588
        %v6590 = vpop.f32.mrf.mxu0
        %v6591 = vadd.f32 %v6478, %v6590
        %v6592 = vpop.f32.mrf.mxu0
        %v6593 = vadd.f32 %v6480, %v6592
        %6594 = vdwg.mxu0
        %v6595 = vunpack.c.l.bf16 %v229
        %v6596 = vunpack.c.h.bf16 %v229
        %v6597 = vunpack.c.l.bf16 %v230
        %v6598 = vunpack.c.h.bf16 %v230
        %v6599 = vunpack.c.l.bf16 %v231
        %v6600 = vunpack.c.h.bf16 %v231
        %v6601 = vunpack.c.l.bf16 %v232
        %v6602 = vunpack.c.h.bf16 %v232
        %v6603 = vunpack.c.l.bf16 %v233
        %v6604 = vunpack.c.h.bf16 %v233
        %v6605 = vunpack.c.l.bf16 %v234
        %v6606 = vunpack.c.h.bf16 %v234
        %v6607 = vunpack.c.l.bf16 %v235
        %v6608 = vunpack.c.h.bf16 %v235
        %v6609 = vunpack.c.l.bf16 %v236
        %v6610 = vunpack.c.h.bf16 %v236
        %v6611 = vunpack.c.l.bf16 %v237
        %v6612 = vunpack.c.h.bf16 %v237
        %v6613 = vunpack.c.l.bf16 %v238
        %v6614 = vunpack.c.h.bf16 %v238
        %v6615 = vunpack.c.l.bf16 %v239
        %v6616 = vunpack.c.h.bf16 %v239
        %v6617 = vunpack.c.l.bf16 %v240
        %v6618 = vunpack.c.h.bf16 %v240
        %v6619 = vunpack.c.l.bf16 %v241
        %v6620 = vunpack.c.h.bf16 %v241
        %v6621 = vunpack.c.l.bf16 %v242
        %v6622 = vunpack.c.h.bf16 %v242
        %v6623 = vunpack.c.l.bf16 %v243
        %v6624 = vunpack.c.h.bf16 %v243
        %v6625 = vunpack.c.l.bf16 %v244
        %v6626 = vunpack.c.h.bf16 %v244
        %v6627 = vadd.f32 %v6517, %v6595
        %v6628 = vadd.f32 %v6519, %v6596
        %v6629 = vadd.f32 %v6521, %v6597
        %v6630 = vadd.f32 %v6523, %v6598
        %v6631 = vadd.f32 %v6527, %v6599
        %v6632 = vadd.f32 %v6529, %v6600
        %v6633 = vadd.f32 %v6531, %v6601
        %v6634 = vadd.f32 %v6533, %v6602
        %v6635 = vadd.f32 %v6537, %v6603
        %v6636 = vadd.f32 %v6539, %v6604
        %v6637 = vadd.f32 %v6541, %v6605
        %v6638 = vadd.f32 %v6543, %v6606
        %v6639 = vadd.f32 %v6547, %v6607
        %v6640 = vadd.f32 %v6549, %v6608
        %v6641 = vadd.f32 %v6551, %v6609
        %v6642 = vadd.f32 %v6553, %v6610
        %v6643 = vadd.f32 %v6557, %v6611
        %v6644 = vadd.f32 %v6559, %v6612
        %v6645 = vadd.f32 %v6561, %v6613
        %v6646 = vadd.f32 %v6563, %v6614
        %v6647 = vadd.f32 %v6567, %v6615
        %v6648 = vadd.f32 %v6569, %v6616
        %v6649 = vadd.f32 %v6571, %v6617
        %v6650 = vadd.f32 %v6573, %v6618
        %v6651 = vadd.f32 %v6577, %v6619
        %v6652 = vadd.f32 %v6579, %v6620
        %v6653 = vadd.f32 %v6581, %v6621
        %v6654 = vadd.f32 %v6583, %v6622
        %v6655 = vadd.f32 %v6587, %v6623
        %v6656 = vadd.f32 %v6589, %v6624
        %v6657 = vadd.f32 %v6591, %v6625
        %v6658 = vadd.f32 %v6593, %v6626
        %6659 = vst [vmem:[%s220] sm:$0xff] %v6627
        %6660 = vst [vmem:[%s220 + $0x8] sm:$0xff] %v6628
        %6661 = vst [vmem:[%s220 + $0x10] sm:$0xff] %v6629
        %6662 = vst [vmem:[%s220 + $0x18] sm:$0xff] %v6630
        %6663 = vst [vmem:[%s220 + $0x20] sm:$0xff] %v6631
        %6664 = vst [vmem:[%s220 + $0x28] sm:$0xff] %v6632
        %6665 = vst [vmem:[%s220 + $0x30] sm:$0xff] %v6633
        %6666 = vst [vmem:[%s220 + $0x38] sm:$0xff] %v6634
        %6667 = vst [vmem:[%s220 + $0x40] sm:$0xff] %v6635
        %6668 = vst [vmem:[%s220 + $0x48] sm:$0xff] %v6636
        %6669 = vst [vmem:[%s220 + $0x50] sm:$0xff] %v6637
        %6670 = vst [vmem:[%s220 + $0x58] sm:$0xff] %v6638
        %6671 = vst [vmem:[%s220 + $0x60] sm:$0xff] %v6639
        %6672 = vst [vmem:[%s220 + $0x68] sm:$0xff] %v6640
        %6673 = vst [vmem:[%s220 + $0x70] sm:$0xff] %v6641
        %6674 = vst [vmem:[%s220 + $0x78] sm:$0xff] %v6642
        %6675 = vst [vmem:[%s220 + $0x80] sm:$0xff] %v6643
        %6676 = vst [vmem:[%s220 + $0x88] sm:$0xff] %v6644
        %6677 = vst [vmem:[%s220 + $0x90] sm:$0xff] %v6645
        %6678 = vst [vmem:[%s220 + $0x98] sm:$0xff] %v6646
        %6679 = vst [vmem:[%s220 + $0xa0] sm:$0xff] %v6647
        %6680 = vst [vmem:[%s220 + $0xa8] sm:$0xff] %v6648
        %6681 = vst [vmem:[%s220 + $0xb0] sm:$0xff] %v6649
        %6682 = vst [vmem:[%s220 + $0xb8] sm:$0xff] %v6650
        %6683 = vst [vmem:[%s220 + $0xc0] sm:$0xff] %v6651
        %6684 = vst [vmem:[%s220 + $0xc8] sm:$0xff] %v6652
        %6685 = vst [vmem:[%s220 + $0xd0] sm:$0xff] %v6653
        %6686 = vst [vmem:[%s220 + $0xd8] sm:$0xff] %v6654
        %6687 = vst [vmem:[%s220 + $0xe0] sm:$0xff] %v6655
        %6688 = vst [vmem:[%s220 + $0xe8] sm:$0xff] %v6656
        %6689 = vst [vmem:[%s220 + $0xf0] sm:$0xff] %v6657
        %6690 = vst [vmem:[%s220 + $0xf8] sm:$0xff] %v6658
        %s6691 = sand.u32 %s137, 1
        %s6692 = scalar_lea.sflag [#allocation3], %s6691
        %s6693 = sand.u32 %s137, 1
        %s6694 = smul.addr %s6693, 256
        %s6695 = scalar_lea.vmem [#allocation2], %s6694
        // Predicated region
        $region41: #{ffn_forward.1} parent=39 // pred_check
          %p6696 = pneg %p147
        $region42: #{ffn_forward.1} parent=39 // pred_check_branch
          %6698 = sbr.rel (%p6696) target = $region44
        $region43: #{ffn_forward.1} parent=39 // pred_region
          %s6699 = smul.u32 16, %s19
          %s6701 = ssub.s32 4096, 4096
          %6702 = vsyncadd %s6692, %s6701
          %s6703 = smul.addr %s6699, 2
          %s6704 = smul.addr %s6703, 128
          %s6705 = scalar_lea.hbm %s5, %s6704
          %s6706 = sshll.u32 %s6695, 4
          %s6707 = int_to_ptr.vmem [resolvable:$true] %s6706
          %6712 = dma.vmem_to_hbm [thread:$0]  %s6707, 4096, %s6705, %s6692, 256, 256, 16
        $region44: #{ffn_forward.1} parent=39 // pred_fallthru
          _
      $region40: #{ffn_forward.1} parent=5 // pred_fallthru
        _
      %p6713 = scmp.le.s32.totalorder 2, %s14
      // Predicated region
      $region45: #{ffn_forward.1} parent=5 // pred_check
        %p6714 = pneg %p6713
      $region46: #{ffn_forward.1} parent=5 // pred_check_branch
        %6716 = sbr.rel (%p6714) target = $region48
      $region47: #{ffn_forward.1} parent=5 // pred_region
        %s6717 = ssub.s32 %s14, 2
        // Predicated region
        $region49: #{ffn_forward.1} parent=47 // pred_check
          %p6718 = pneg %p153
        $region50: #{ffn_forward.1} parent=47 // pred_check_branch
          %6720 = sbr.rel (%p6718) target = $region52
        $region51: #{ffn_forward.1} parent=47 // pred_region
          %s6721 = sand.u32 %s138, 1
          %s6722 = scalar_lea.sflag [#allocation3], %s6721
          %s6723 = sand.u32 %s138, 1
          %s6724 = smul.addr %s6723, 256
          %s6725 = scalar_lea.vmem [#allocation2], %s6724
          %6726 = dma.done %s6722, 4096
        $region52: #{ffn_forward.1} parent=47 // pred_fallthru
          _
      $region48: #{ffn_forward.1} parent=5 // pred_fallthru
        _
    $region6: #{ffn_forward.1} parent=1 // loop_footer
      %s18 = sadd.s32 1, %s14
    $region7: #{ffn_forward.1} parent=1 // loop_footer_branch
      %13 = sbr.rel target = $region3
    $region8: #{ffn_forward.1} parent=1 // loop_exit
      _
    %6727 = vsyncpa [#allocation3], 1
    %s6728 = scalar_lea.sflag [#allocation3], 1
    %6729 = vsyncpa %s6728, 1

</llo_original>
